<compile_context>
chip_gen: v6e
topology: v6e:2x2x1
jax: 0.10.0
libtpu: 0.0.40
codegen_flags: <defaults>
</compile_context>

<pallas_src>
import functools

import jax
import jax.numpy as jnp
import numpy as np
from jax.experimental import pallas as pl
from jax.experimental.pallas import tpu as pltpu


def _ball_query_kernel(q_ref, k_ref, tri_ref, out_ref,
                       cnt_ref, sel_ref, done_ref,
                       *, radius_sq, max_samples, n_points):
    # q_ref:    (1, tq, 3)   query tile  (points on sublanes, xyz on lanes)
    # k_ref:    (1, 3, tk)   key chunk   (xyz on sublanes, points lane-dense)
    # tri_ref:  (tk, tk)     bf16 upper-triangular ones, VMEM-resident constant
    # out_ref:  (1, tq, S)   int32 output block, written once at the last key chunk
    # cnt_ref:  (tq, 1)      int32 scratch, running in-ball count per query
    # sel_ref:  (tq, S)      int32 scratch, selection accumulator
    # done_ref: (1,)         int32 SMEM flag: all queries in this tile saturated
    tq = q_ref.shape[1]
    tk = k_ref.shape[2]
    kc = pl.program_id(2)
    big = jnp.int32(n_points)            # sentinel > any valid index

    @pl.when(kc == 0)
    def _init():
        cnt_ref[...] = jnp.zeros(cnt_ref.shape, jnp.int32)
        sel_ref[...] = jnp.full(sel_ref.shape, n_points, jnp.int32)
        done_ref[0] = jnp.int32(0)

    @pl.when(done_ref[0] == 0)
    def _compute():
        q = q_ref[0].astype(jnp.float32)     # (tq, 3)
        k = k_ref[0].astype(jnp.float32)     # (3, tk)

        # Exact per-coordinate squared distance on the VPU (no qq+kk-2qk cancellation).
        dx = q[:, 0:1] - k[0:1, :]           # (tq, tk)
        dy = q[:, 1:2] - k[1:2, :]
        dz = q[:, 2:3] - k[2:3, :]
        dist2 = dx * dx + dy * dy + dz * dz

        mask = dist2 < jnp.float32(radius_sq)            # (tq, tk)

        # Inclusive prefix count along the key (lane) axis on the MXU.
        # (mask @ tri)[i, j] = sum_{j' <= j} mask[i, j'];  bf16 inputs are exact 0/1
        # and accumulation is f32, so the integer count is exact for any tk.
        rank = jnp.dot(mask.astype(jnp.bfloat16), tri_ref[...],
                       preferred_element_type=jnp.float32).astype(jnp.int32)

        cnt = cnt_ref[...]                                # (tq, 1) count from prev chunks
        g_rank = cnt + rank                               # (tq, tk) global inclusive rank

        col = jax.lax.broadcasted_iota(jnp.int32, (tq, tk), 1)   # local lane index
        tk_sentinel = jnp.int32(tk)
        masked_j = jnp.where(mask, col, tk_sentinel)

        # Slot s holds the unique local j with mask and global rank == s+1 (if present).
        mins = []
        for s in range(max_samples):                      # static, small, unrolled
            cand = jnp.where(g_rank == (s + 1), masked_j, tk_sentinel)
            mins.append(jnp.min(cand, axis=-1, keepdims=True))       # (tq, 1)
        local_sel = jnp.concatenate(mins, axis=-1)                    # (tq, S) local idx
        chunk_sel = jnp.where(local_sel < tk_sentinel,
                              local_sel + kc * tk, big)              # (tq, S) global idx

        sel_ref[...] = jnp.minimum(sel_ref[...], chunk_sel)

        cnt_new = cnt + rank[:, tk - 1:tk]                # add this chunk's in-ball total
        cnt_ref[...] = cnt_new

        # Saturation early-exit: if every query in the tile already filled all slots,
        # later chunks cannot change the result -> skip their compute entirely.
        min_cnt = jnp.min(cnt_new.astype(jnp.float32))    # exact (counts << 2^24)
        done_ref[0] = jnp.where(min_cnt >= jnp.float32(max_samples),
                                jnp.int32(1), jnp.int32(0))

    @pl.when(kc == pl.num_programs(2) - 1)
    def _finalize():
        sel = sel_ref[...]                                # (tq, S)
        first = sel[:, 0:1]
        first_fill = jnp.where(first < big, first, jnp.int32(0))
        out_ref[0] = jnp.where(sel < big, sel, first_fill)


def _vmem_limit_bytes(tq, tk, max_samples):
    lane = 128
    resident = (
        2 * tq * lane * 4                      # double-buffered query tiles (lane-padded)
        + 2 * 8 * max(tk, lane) * 4            # double-buffered key chunks (sublane-padded)
        + 2 * tk * tk * 2                      # tri (bf16), double-buffered
        + 2 * tq * max(max_samples, lane) * 4  # resident output block
        + 2 * tq * lane * 4                    # cnt + sel scratch (lane-padded)
    )
    streamed = 24 * tq * tk * 4                # generous bound on live (tq, tk) temporaries
    return int(min(48 * 1024 * 1024, max(16 * 1024 * 1024, resident + streamed)))


def self_ball_point_query(pcs, radius, max_samples, *, tq=256, tk=256):
    """pcs: (B, 3, N) float -> (B, N, max_samples) int32 neighbor indices."""
    B, C, N = pcs.shape
    assert C == 3, "expected xyz point clouds of shape (B, 3, N)"
    tq = min(tq, N)
    tk = min(tk, N)
    # TODO(synk): no ragged-N / padding support; N must tile evenly and any upstream
    # zero-padded points must be masked (moved outside the radius) before calling.
    assert N % tq == 0 and tq % 8 == 0
    assert N % tk == 0 and (tk == N or tk % 128 == 0)

    # Keys are consumed lane-dense straight from (B, 3, N); only the query tiles need the
    # (B, N, 3) layout (points on sublanes), produced by one cheap XLA transpose.
    pts_t = jnp.transpose(pcs, (0, 2, 1))             # (B, N, 3)

    # Constant upper-triangular (incl. diagonal) ones: (mask @ tri) = inclusive prefix sum.
    tri = (jnp.arange(tk, dtype=jnp.int32)[:, None]
           <= jnp.arange(tk, dtype=jnp.int32)[None, :]).astype(jnp.bfloat16)

    kernel = functools.partial(
        _ball_query_kernel,
        radius_sq=float(radius) ** 2,
        max_samples=int(max_samples),
        n_points=N,
    )

    grid_spec = pltpu.PrefetchScalarGridSpec(
        num_scalar_prefetch=0,
        grid=(B, N // tq, N // tk),                   # key-chunk (reduction) axis last
        in_specs=[
            pl.BlockSpec((1, tq, 3), lambda b, qi, kc: (b, qi, 0)),   # query tile
            pl.BlockSpec((1, 3, tk), lambda b, qi, kc: (b, 0, kc)),   # key chunk
            pl.BlockSpec((tk, tk), lambda b, qi, kc: (0, 0)),         # tri (VMEM-resident)
        ],
        out_specs=pl.BlockSpec((1, tq, max_samples), lambda b, qi, kc: (b, qi, 0)),
        scratch_shapes=[
            pltpu.VMEM((tq, 1), jnp.int32),               # running in-ball count
            pltpu.VMEM((tq, max_samples), jnp.int32),     # selection accumulator
            pltpu.SMEM((1,), jnp.int32),                  # saturation flag
        ],
    )

    out = pl.pallas_call(
        kernel,
        out_shape=jax.ShapeDtypeStruct((B, N, max_samples), jnp.int32),
        grid_spec=grid_spec,
        compiler_params=pltpu.CompilerParams(
            dimension_semantics=("parallel", "parallel", "arbitrary"),
            vmem_limit_bytes=_vmem_limit_bytes(tq, tk, max_samples),
        ),
    )(pts_t, pcs, tri)
    # TODO(synk): PyTorch returns int64; int64 has no practical TPU/Pallas path, keeping int32.
    return out


def _reference(pcs, radius, max_samples):
    # Pure-JAX reference with identical semantics and identical distance expression.
    p = jnp.transpose(pcs, (0, 2, 1)).astype(jnp.float32)   # (B, N, 3)
    B, N, _ = p.shape
    dx = p[:, :, None, 0] - p[:, None, :, 0]
    dy = p[:, :, None, 1] - p[:, None, :, 1]
    dz = p[:, :, None, 2] - p[:, None, :, 2]
    d2 = dx * dx + dy * dy + dz * dz                        # (B, N, N)
    mask = d2 < radius * radius
    rank = jnp.cumsum(mask.astype(jnp.int32), axis=-1)
    j = jnp.arange(N, dtype=jnp.int32)[None, None, :]
    masked_j = jnp.where(mask, j, N)
    sels = []
    for s in range(max_samples):
        cand = jnp.where(rank == s + 1, masked_j, N)
        sels.append(jnp.min(cand, axis=-1))
    sel = jnp.stack(sels, axis=-1)
    first = sel[..., :1]
    first = jnp.where(first < N, first, 0)
    return jnp.where(sel < N, sel, first).astype(jnp.int32)


if __name__ == "__main__":
    key = jax.random.PRNGKey(0)
    B, N = 2, 256
    radius = 0.2
    max_samples = 8

    # points uniform in the unit cube, PyTorch layout (B, 3, N)
    pcs = jax.random.uniform(key, (B, 3, N), dtype=jnp.float32)

    ref = _reference(pcs, radius, max_samples)

    # Chunked configuration (grid = (B, 2, 2)): exercises cross-chunk accumulation,
    # the resident tri matmul and the saturation early-exit machinery.
    out_chunked = self_ball_point_query(pcs, radius, max_samples, tq=128, tk=128)
    out_chunked = jax.block_until_ready(out_chunked)
    np.testing.assert_array_equal(np.asarray(out_chunked), np.asarray(ref))

    # Default configuration (tq=tk=N here): single-chunk path (init+compute+finalize).
    out_default = self_ball_point_query(pcs, radius, max_samples)
    out_default = jax.block_until_ready(out_default)
    np.testing.assert_array_equal(np.asarray(out_default), np.asarray(ref))

    assert out_chunked.shape == (B, N, max_samples)
    print("KERNEL_OK")
</pallas_src>

<mosaic_0001>
module attributes {stable_mosaic.version = 11 : i64} {
  func.func @_ball_query_kernel(%arg0: i32, %arg1: i32, %arg2: i32, %arg3: memref<1x128x3xf32, #tpu.memory_space<vmem>>, %arg4: memref<1x3x128xf32, #tpu.memory_space<vmem>>, %arg5: memref<128x128xbf16, #tpu.memory_space<vmem>>, %arg6: memref<1x128x8xi32, #tpu.memory_space<vmem>>, %arg7: memref<128x1xi32, #tpu.memory_space<vmem>>, %arg8: memref<128x8xi32, #tpu.memory_space<vmem>>, %arg9: memref<1xi32, #tpu.memory_space<smem>>) attributes {dimension_semantics = [#tpu.dimension_semantics<parallel>, #tpu.dimension_semantics<parallel>, #tpu.dimension_semantics<arbitrary>], iteration_bounds = array<i64: 2, 2, 2>, scalar_prefetch = 0 : i64, scratch_operands = 3 : i64, tpu.core_type = #tpu.core_type<tc>, window_params = [{transform_indices = @transform_0, window_bounds = array<i64: 1, 128, 3>}, {transform_indices = @transform_1, window_bounds = array<i64: 1, 3, 128>}, {pipeline_mode = #tpu.pipeline_mode<synchronous>, transform_indices = @transform_2, window_bounds = array<i64: 128, 128>}, {transform_indices = @transform_3, window_bounds = array<i64: 1, 128, 8>}]} {
    %c0_i32 = arith.constant 0 : i32
    %0 = arith.cmpi eq, %arg2, %c0_i32 : i32
    %1 = arith.extui %0 : i1 to i32
    %c0_i32_0 = arith.constant 0 : i32
    %2 = arith.cmpi ne, %1, %c0_i32_0 : i32
    scf.if %2 {
      %c0_i32_5 = arith.constant 0 : i32
      %10 = vector.broadcast %c0_i32_5 : i32 to vector<128x1xi32>
      %c0_6 = arith.constant 0 : index
      %c0_7 = arith.constant 0 : index
      %11 = vector.load %arg7[%c0_6, %c0_7] : memref<128x1xi32, #tpu.memory_space<vmem>>, vector<128x1xi32>
      tpu.vector_store %arg7[%c0_6, %c0_7], %10 {strides = array<i32>} : memref<128x1xi32, #tpu.memory_space<vmem>>, vector<128x1xi32>,
      %c256_i32_8 = arith.constant 256 : i32
      %12 = vector.broadcast %c256_i32_8 : i32 to vector<128x8xi32>
      %c0_9 = arith.constant 0 : index
      %c0_10 = arith.constant 0 : index
      %13 = vector.load %arg8[%c0_9, %c0_10] : memref<128x8xi32, #tpu.memory_space<vmem>>, vector<128x8xi32>
      tpu.vector_store %arg8[%c0_9, %c0_10], %12 {strides = array<i32>} : memref<128x8xi32, #tpu.memory_space<vmem>>, vector<128x8xi32>,
      %c0_i32_11 = arith.constant 0 : i32
      %c0_12 = arith.constant 0 : index
      %14 = memref.load %arg9[%c0_12] : memref<1xi32, #tpu.memory_space<smem>>
      memref.store %c0_i32_11, %arg9[%c0_12] : memref<1xi32, #tpu.memory_space<smem>>
    } else {
    }
    %c0 = arith.constant 0 : index
    %3 = memref.load %arg9[%c0] : memref<1xi32, #tpu.memory_space<smem>>
    %c0_i32_1 = arith.constant 0 : i32
    %4 = arith.cmpi eq, %3, %c0_i32_1 : i32
    %5 = arith.extui %4 : i1 to i32
    %c256_i32 = arith.constant 256 : i32
    %c0_i32_2 = arith.constant 0 : i32
    %6 = arith.cmpi ne, %5, %c0_i32_2 : i32
    scf.if %6 {
      %c0_5 = arith.constant 0 : index
      %c0_6 = arith.constant 0 : index
      %c0_7 = arith.constant 0 : index
      %10 = vector.load %arg3[%c0_5, %c0_6, %c0_7] : memref<1x128x3xf32, #tpu.memory_space<vmem>>, vector<1x128x3xf32>
      %11 = vector.shape_cast %10 : vector<1x128x3xf32> to vector<128x3xf32>
      %c0_8 = arith.constant 0 : index
      %c0_9 = arith.constant 0 : index
      %c0_10 = arith.constant 0 : index
      %12 = vector.load %arg4[%c0_8, %c0_9, %c0_10] : memref<1x3x128xf32, #tpu.memory_space<vmem>>, vector<1x3x128xf32>
      %13 = vector.shape_cast %12 : vector<1x3x128xf32> to vector<3x128xf32>
      %14 = vector.extract_strided_slice %11 {offsets = [0, 0], sizes = [128, 1], strides = [1, 1]} : vector<128x3xf32> to vector<128x1xf32>
      %15 = vector.extract_strided_slice %13 {offsets = [0, 0], sizes = [1, 128], strides = [1, 1]} : vector<3x128xf32> to vector<1x128xf32>
      %16 = vector.broadcast %14 : vector<128x1xf32> to vector<128x128xf32>
      %17 = vector.broadcast %15 : vector<1x128xf32> to vector<128x128xf32>
      %18 = arith.subf %16, %17 : vector<128x128xf32>
      %19 = vector.extract_strided_slice %11 {offsets = [0, 1], sizes = [128, 1], strides = [1, 1]} : vector<128x3xf32> to vector<128x1xf32>
      %20 = vector.extract_strided_slice %13 {offsets = [1, 0], sizes = [1, 128], strides = [1, 1]} : vector<3x128xf32> to vector<1x128xf32>
      %21 = vector.broadcast %19 : vector<128x1xf32> to vector<128x128xf32>
      %22 = vector.broadcast %20 : vector<1x128xf32> to vector<128x128xf32>
      %23 = arith.subf %21, %22 : vector<128x128xf32>
      %24 = vector.extract_strided_slice %11 {offsets = [0, 2], sizes = [128, 1], strides = [1, 1]} : vector<128x3xf32> to vector<128x1xf32>
      %25 = vector.extract_strided_slice %13 {offsets = [2, 0], sizes = [1, 128], strides = [1, 1]} : vector<3x128xf32> to vector<1x128xf32>
      %26 = vector.broadcast %24 : vector<128x1xf32> to vector<128x128xf32>
      %27 = vector.broadcast %25 : vector<1x128xf32> to vector<128x128xf32>
      %28 = arith.subf %26, %27 : vector<128x128xf32>
      %29 = arith.mulf %18, %18 : vector<128x128xf32>
      %30 = arith.mulf %23, %23 : vector<128x128xf32>
      %31 = arith.addf %29, %30 : vector<128x128xf32>
      %32 = arith.mulf %28, %28 : vector<128x128xf32>
      %33 = arith.addf %31, %32 : vector<128x128xf32>
      %cst = arith.constant 4.000000e-02 : f32
      %34 = vector.broadcast %cst : f32 to vector<128x128xf32>
      %35 = arith.cmpf olt, %33, %34 : vector<128x128xf32>
      %36 = arith.extui %35 : vector<128x128xi1> to vector<128x128xi32>
      %37 = arith.sitofp %36 : vector<128x128xi32> to vector<128x128xf32>
      %38 = arith.truncf %37 : vector<128x128xf32> to vector<128x128xbf16>
      %c0_11 = arith.constant 0 : index
      %c0_12 = arith.constant 0 : index
      %39 = vector.load %arg5[%c0_11, %c0_12] : memref<128x128xbf16, #tpu.memory_space<vmem>>, vector<128x128xbf16>
      %cst_13 = arith.constant dense<0.000000e+00> : vector<128x128xf32>
      %40 = tpu.matmul %38, %39, %cst_13 {dimension_numbers = #tpu.dot_dimension_numbers<[1], [0], [0], [1], [0, 0, 1, 1], [], []>} : vector<128x128xbf16>, vector<128x128xbf16>, vector<128x128xf32> -> vector<128x128xf32>
      %41 = arith.fptosi %40 : vector<128x128xf32> to vector<128x128xi32>
      %c0_14 = arith.constant 0 : index
      %c0_15 = arith.constant 0 : index
      %42 = vector.load %arg7[%c0_14, %c0_15] : memref<128x1xi32, #tpu.memory_space<vmem>>, vector<128x1xi32>
      %43 = vector.broadcast %42 : vector<128x1xi32> to vector<128x128xi32>
      %44 = arith.addi %43, %41 : vector<128x128xi32>
      %45 = tpu.iota {dimensions = array<i32: 1>} : vector<128x128xi32>
      %c128_i32 = arith.constant 128 : i32
      %46 = vector.broadcast %c128_i32 : i32 to vector<128x128xi32>
      %47 = arith.select %35, %45, %46 : vector<128x128xi1>, vector<128x128xi32>
      %c1_i32_16 = arith.constant 1 : i32
      %48 = vector.broadcast %c1_i32_16 : i32 to vector<128x128xi32>
      %49 = arith.cmpi eq, %44, %48 : vector<128x128xi32>
      %c128_i32_17 = arith.constant 128 : i32
      %50 = vector.broadcast %c128_i32_17 : i32 to vector<128x128xi32>
      %51 = arith.select %49, %47, %50 : vector<128x128xi1>, vector<128x128xi32>
      %cst_18 = arith.constant dense<2147483647> : vector<128xi32>
      %52 = vector.multi_reduction <minsi>, %51, %cst_18 [1] : vector<128x128xi32> to vector<128xi32>
      %53 = vector.shape_cast %52 : vector<128xi32> to vector<128x1xi32>
      %c2_i32 = arith.constant 2 : i32
      %54 = vector.broadcast %c2_i32 : i32 to vector<128x128xi32>
      %55 = arith.cmpi eq, %44, %54 : vector<128x128xi32>
      %c128_i32_19 = arith.constant 128 : i32
      %56 = vector.broadcast %c128_i32_19 : i32 to vector<128x128xi32>
      %57 = arith.select %55, %47, %56 : vector<128x128xi1>, vector<128x128xi32>
      %cst_20 = arith.constant dense<2147483647> : vector<128xi32>
      %58 = vector.multi_reduction <minsi>, %57, %cst_20 [1] : vector<128x128xi32> to vector<128xi32>
      %59 = vector.shape_cast %58 : vector<128xi32> to vector<128x1xi32>
      %c3_i32 = arith.constant 3 : i32
      %60 = vector.broadcast %c3_i32 : i32 to vector<128x128xi32>
      %61 = arith.cmpi eq, %44, %60 : vector<128x128xi32>
      %c128_i32_21 = arith.constant 128 : i32
      %62 = vector.broadcast %c128_i32_21 : i32 to vector<128x128xi32>
      %63 = arith.select %61, %47, %62 : vector<128x128xi1>, vector<128x128xi32>
      %cst_22 = arith.constant dense<2147483647> : vector<128xi32>
      %64 = vector.multi_reduction <minsi>, %63, %cst_22 [1] : vector<128x128xi32> to vector<128xi32>
      %65 = vector.shape_cast %64 : vector<128xi32> to vector<128x1xi32>
      %c4_i32 = arith.constant 4 : i32
      %66 = vector.broadcast %c4_i32 : i32 to vector<128x128xi32>
      %67 = arith.cmpi eq, %44, %66 : vector<128x128xi32>
      %c128_i32_23 = arith.constant 128 : i32
      %68 = vector.broadcast %c128_i32_23 : i32 to vector<128x128xi32>
      %69 = arith.select %67, %47, %68 : vector<128x128xi1>, vector<128x128xi32>
      %cst_24 = arith.constant dense<2147483647> : vector<128xi32>
      %70 = vector.multi_reduction <minsi>, %69, %cst_24 [1] : vector<128x128xi32> to vector<128xi32>
      %71 = vector.shape_cast %70 : vector<128xi32> to vector<128x1xi32>
      %c5_i32 = arith.constant 5 : i32
      %72 = vector.broadcast %c5_i32 : i32 to vector<128x128xi32>
      %73 = arith.cmpi eq, %44, %72 : vector<128x128xi32>
      %c128_i32_25 = arith.constant 128 : i32
      %74 = vector.broadcast %c128_i32_25 : i32 to vector<128x128xi32>
      %75 = arith.select %73, %47, %74 : vector<128x128xi1>, vector<128x128xi32>
      %cst_26 = arith.constant dense<2147483647> : vector<128xi32>
      %76 = vector.multi_reduction <minsi>, %75, %cst_26 [1] : vector<128x128xi32> to vector<128xi32>
      %77 = vector.shape_cast %76 : vector<128xi32> to vector<128x1xi32>
      %c6_i32 = arith.constant 6 : i32
      %78 = vector.broadcast %c6_i32 : i32 to vector<128x128xi32>
      %79 = arith.cmpi eq, %44, %78 : vector<128x128xi32>
      %c128_i32_27 = arith.constant 128 : i32
      %80 = vector.broadcast %c128_i32_27 : i32 to vector<128x128xi32>
      %81 = arith.select %79, %47, %80 : vector<128x128xi1>, vector<128x128xi32>
      %cst_28 = arith.constant dense<2147483647> : vector<128xi32>
      %82 = vector.multi_reduction <minsi>, %81, %cst_28 [1] : vector<128x128xi32> to vector<128xi32>
      %83 = vector.shape_cast %82 : vector<128xi32> to vector<128x1xi32>
      %c7_i32 = arith.constant 7 : i32
      %84 = vector.broadcast %c7_i32 : i32 to vector<128x128xi32>
      %85 = arith.cmpi eq, %44, %84 : vector<128x128xi32>
      %c128_i32_29 = arith.constant 128 : i32
      %86 = vector.broadcast %c128_i32_29 : i32 to vector<128x128xi32>
      %87 = arith.select %85, %47, %86 : vector<128x128xi1>, vector<128x128xi32>
      %cst_30 = arith.constant dense<2147483647> : vector<128xi32>
      %88 = vector.multi_reduction <minsi>, %87, %cst_30 [1] : vector<128x128xi32> to vector<128xi32>
      %89 = vector.shape_cast %88 : vector<128xi32> to vector<128x1xi32>
      %c8_i32 = arith.constant 8 : i32
      %90 = vector.broadcast %c8_i32 : i32 to vector<128x128xi32>
      %91 = arith.cmpi eq, %44, %90 : vector<128x128xi32>
      %c128_i32_31 = arith.constant 128 : i32
      %92 = vector.broadcast %c128_i32_31 : i32 to vector<128x128xi32>
      %93 = arith.select %91, %47, %92 : vector<128x128xi1>, vector<128x128xi32>
      %cst_32 = arith.constant dense<2147483647> : vector<128xi32>
      %94 = vector.multi_reduction <minsi>, %93, %cst_32 [1] : vector<128x128xi32> to vector<128xi32>
      %95 = vector.shape_cast %94 : vector<128xi32> to vector<128x1xi32>
      %96 = tpu.concatenate %53, %59, %65, %71, %77, %83, %89, %95 in 1 : vector<128x1xi32>, vector<128x1xi32>, vector<128x1xi32>, vector<128x1xi32>, vector<128x1xi32>, vector<128x1xi32>, vector<128x1xi32>, vector<128x1xi32> -> vector<128x8xi32>
      %c128_i32_33 = arith.constant 128 : i32
      %97 = vector.broadcast %c128_i32_33 : i32 to vector<128x8xi32>
      %98 = arith.cmpi slt, %96, %97 : vector<128x8xi32>
      %c128_i32_34 = arith.constant 128 : i32
      %99 = arith.muli %arg2, %c128_i32_34 : i32
      %100 = vector.broadcast %99 : i32 to vector<128x8xi32>
      %101 = arith.addi %96, %100 : vector<128x8xi32>
      %102 = vector.broadcast %c256_i32 : i32 to vector<128x8xi32>
      %103 = arith.select %98, %101, %102 : vector<128x8xi1>, vector<128x8xi32>
      %c0_35 = arith.constant 0 : index
      %c0_36 = arith.constant 0 : index
      %104 = vector.load %arg8[%c0_35, %c0_36] : memref<128x8xi32, #tpu.memory_space<vmem>>, vector<128x8xi32>
      %105 = arith.minsi %104, %103 : vector<128x8xi32>
      %c0_37 = arith.constant 0 : index
      %c0_38 = arith.constant 0 : index
      %106 = vector.load %arg8[%c0_37, %c0_38] : memref<128x8xi32, #tpu.memory_space<vmem>>, vector<128x8xi32>
      tpu.vector_store %arg8[%c0_37, %c0_38], %105 {strides = array<i32>} : memref<128x8xi32, #tpu.memory_space<vmem>>, vector<128x8xi32>,
      %107 = vector.extract_strided_slice %41 {offsets = [0, 127], sizes = [128, 1], strides = [1, 1]} : vector<128x128xi32> to vector<128x1xi32>
      %108 = arith.addi %42, %107 : vector<128x1xi32>
      %c0_39 = arith.constant 0 : index
      %c0_40 = arith.constant 0 : index
      %109 = vector.load %arg7[%c0_39, %c0_40] : memref<128x1xi32, #tpu.memory_space<vmem>>, vector<128x1xi32>
      tpu.vector_store %arg7[%c0_39, %c0_40], %108 {strides = array<i32>} : memref<128x1xi32, #tpu.memory_space<vmem>>, vector<128x1xi32>,
      %110 = arith.sitofp %108 : vector<128x1xi32> to vector<128x1xf32>
      %111 = vector.shape_cast %110 : vector<128x1xf32> to vector<1x128x1xf32>
      %cst_41 = arith.constant dense<0x7F800000> : vector<1xf32>
      %112 = vector.multi_reduction <minimumf>, %111, %cst_41 [1, 2] : vector<1x128x1xf32> to vector<1xf32>
      %113 = vector.shape_cast %112 : vector<1xf32> to vector<1x1x1xf32>
      %114 = vector.extract %113[0, 0, 0] : f32 from vector<1x1x1xf32>
      %cst_42 = arith.constant 8.000000e+00 : f32
      %115 = arith.cmpf oge, %114, %cst_42 : f32
      %c1_i32_43 = arith.constant 1 : i32
      %c0_i32_44 = arith.constant 0 : i32
      %116 = arith.select %115, %c1_i32_43, %c0_i32_44 : i32
      %c0_45 = arith.constant 0 : index
      %117 = memref.load %arg9[%c0_45] : memref<1xi32, #tpu.memory_space<smem>>
      memref.store %116, %arg9[%c0_45] : memref<1xi32, #tpu.memory_space<smem>>
    } else {
    }
    %c1_i32 = arith.constant 1 : i32
    %7 = arith.cmpi eq, %arg2, %c1_i32 : i32
    %8 = arith.extui %7 : i1 to i32
    %c256_i32_3 = arith.constant 256 : i32
    %c0_i32_4 = arith.constant 0 : i32
    %9 = arith.cmpi ne, %8, %c0_i32_4 : i32
    scf.if %9 {
      %c0_5 = arith.constant 0 : index
      %c0_6 = arith.constant 0 : index
      %10 = vector.load %arg8[%c0_5, %c0_6] : memref<128x8xi32, #tpu.memory_space<vmem>>, vector<128x8xi32>
      %11 = vector.extract_strided_slice %10 {offsets = [0, 0], sizes = [128, 1], strides = [1, 1]} : vector<128x8xi32> to vector<128x1xi32>
      %12 = vector.broadcast %c256_i32_3 : i32 to vector<128x1xi32>
      %13 = arith.cmpi slt, %11, %12 : vector<128x1xi32>
      %c0_i32_7 = arith.constant 0 : i32
      %14 = vector.broadcast %c0_i32_7 : i32 to vector<128x1xi32>
      %15 = arith.select %13, %11, %14 : vector<128x1xi1>, vector<128x1xi32>
      %16 = vector.broadcast %c256_i32_3 : i32 to vector<128x8xi32>
      %17 = arith.cmpi slt, %10, %16 : vector<128x8xi32>
      %18 = vector.shape_cast %15 : vector<128x1xi32> to vector<128x1xi32>
      %19 = vector.broadcast %18 : vector<128x1xi32> to vector<128x8xi32>
      %20 = arith.select %17, %10, %19 : vector<128x8xi1>, vector<128x8xi32>
      %c0_8 = arith.constant 0 : index
      %c0_9 = arith.constant 0 : index
      %c0_10 = arith.constant 0 : index
      %21 = vector.load %arg6[%c0_8, %c0_9, %c0_10] : memref<1x128x8xi32, #tpu.memory_space<vmem>>, vector<1x128x8xi32>
      %22 = vector.shape_cast %21 : vector<1x128x8xi32> to vector<128x8xi32>
      %23 = vector.shape_cast %20 : vector<128x8xi32> to vector<1x128x8xi32>
      tpu.vector_store %arg6[%c0_8, %c0_9, %c0_10], %23 {strides = array<i32>} : memref<1x128x8xi32, #tpu.memory_space<vmem>>, vector<1x128x8xi32>,
    } else {
    }
    return
  }
  func.func @transform_0(%arg0: i32, %arg1: i32, %arg2: i32) -> (i32, i32, i32) {
    %c0_i32 = arith.constant 0 : i32
    %c0_i32_0 = arith.constant 0 : i32
    return %arg0, %arg1, %c0_i32 : i32, i32, i32
  }
  func.func @transform_1(%arg0: i32, %arg1: i32, %arg2: i32) -> (i32, i32, i32) {
    %c0_i32 = arith.constant 0 : i32
    %c0_i32_0 = arith.constant 0 : i32
    return %arg0, %c0_i32, %arg2 : i32, i32, i32
  }
  func.func @transform_2(%arg0: i32, %arg1: i32, %arg2: i32) -> (i32, i32) {
    %c0_i32 = arith.constant 0 : i32
    %c0_i32_0 = arith.constant 0 : i32
    %c0_i32_1 = arith.constant 0 : i32
    return %c0_i32, %c0_i32_0 : i32, i32
  }
  func.func @transform_3(%arg0: i32, %arg1: i32, %arg2: i32) -> (i32, i32, i32) {
    %c0_i32 = arith.constant 0 : i32
    %c0_i32_0 = arith.constant 0 : i32
    return %arg0, %arg1, %c0_i32 : i32, i32, i32
  }
}

</mosaic_0001>

<llo_original>
// kernel: tpu_custom_call.1
$region0: #{tpu_custom_call.1}
  #allocation0 [shape = 'u32[]', space=smem, size = 0x4, offset = 0x4, fixed_abs, tag = 'smem constant byte address 0x4 - core index']
  #allocation1 [shape = 'u32[144,128]{1,0:T(1,128)}', space=vmem, size = 0x12000, scoped, tag = 'internal scratch']
  #allocation2 [shape = 's32[128,1]{1,0:T(8,128)}', space=vmem, size = 0x10000, scoped, tag = 'scratch operand']
  #allocation3 [shape = 's32[128,8]{1,0:T(8,128)}', space=vmem, size = 0x10000, scoped, tag = 'scratch operand']
  #allocation4 [shape = 's32[1]{0:T(128)}', space=smem, size = 0x200, scoped, tag = 'scratch operand']
  %s0 = inlined_call_operand.vmem [shape: f32[2,256,3], index: 0, kind: input, shape index: {}]
  %s1 = inlined_call_operand.vmem [shape: f32[2,3,256], index: 1, kind: input, shape index: {}]
  %s2 = inlined_call_operand.vmem [shape: bf16[128,128], index: 2, kind: input, shape index: {}]
  %s3 = inlined_call_operand.vmem [shape: s32[2,256,8], index: 3, kind: output, shape index: {}]
  %s4 = sld [smem:[#allocation0]]
  $region57: #{tpu_custom_call.1} parent=0
    _
  %s6 = ssub.s32 1, %s4
  %s7 = scalar_select 0, %s6, %s4
  loop: start=0, step=1, limit=10
  $region2: #{tpu_custom_call.1} parent=0 // loop_pre_header
    _
  $region3: #{tpu_custom_call.1} parent=0 // loop_header
    %s9 = sphi 0, %s13
    %p10 = scmp.ge.s32.totalorder %s9, 10
    %s16 = sphi 0, %s35
    %s17 = sphi 0, %s31
    %s18 = sphi 0, %s27
    %s19 = sphi 0, %s16
    %s20 = sphi 0, %s17
    %s21 = sphi 0, %s18
    %s22 = sphi 0, %s19
    %s23 = sphi 0, %s20
    %s24 = sphi 0, %s21
    %s40 = sphi 0, %s42
    %s43 = sphi 0, %s40
    %s44 = sphi 0, %s43
    %s60 = sphi 0, %s44
    %s68 = sphi 0, %s70
    %s71 = sphi 0, %s68
    %s72 = sphi 0, %s71
    %s88 = sphi 0, %s72
    %s92 = sphi 0, %s92
    %s94 = sphi 0, %s92
    %s95 = sphi 0, %s94
    %s109 = sphi 0, %s95
    %s117 = sphi 0, %s119
    %s120 = sphi 0, %s117
    %s121 = sphi 0, %s120
    %s137 = sphi 0, %s121
  $region4: #{tpu_custom_call.1} parent=0 // loop_header_branch
    %12 = sbr.rel (%p10) target = $region8
  $region5: #{tpu_custom_call.1} parent=0 // loop_body
    %s14 = ssub.s32 %s9, 1
    %s15 = ssub.s32 %s9, 2
    %s25 = sadd.s32 1, %s18
    %p26 = scmp.ge.s32.totalorder %s25, 2
    %s27 = scalar_select %p26, 0, %s25
    %s28 = sadd.s32 1, %s17
    %s29 = scalar_select %p26, %s28, %s17
    %p30 = scmp.ge.s32.totalorder %s29, 2
    %s31 = scalar_select %p30, 0, %s29
    %s32 = sadd.s32 1, %s16
    %s33 = scalar_select %p30, %s32, %s16
    %p34 = scmp.ge.s32.totalorder %s33, 2
    %s35 = scalar_select %p34, 0, %s33
    %s36 = ssub.s32 %s16, %s35
    %s37 = ssub.s32 %s17, %s31
    %s38 = sor.u32 %s36, %s37
    %p39 = scmp.eq.s32.totalorder %s38, 0
    %s41 = sadd.s32 %s40, 1
    %s42 = scalar_select %p39, %s40, %s41
    %p45 = pneg %p39
    %p46 = scmp.eq.s32.totalorder %s9, 7
    %p47 = por %p45, %p46
    %p48 = scmp.ne.s32.totalorder %s40, %s43
    %p49 = scmp.eq.s32.totalorder %s9, 0
    %p50 = por %p48, %p49
    %p51 = scmp.ne.s32.totalorder %s40, %s43
    %p52 = scmp.eq.s32.totalorder %s14, 7
    %p53 = por %p51, %p52
    %p54 = scmp.ne.s32.totalorder %s43, %s44
    %p55 = scmp.eq.s32.totalorder %s14, 0
    %p56 = por %p54, %p55
    %p57 = scmp.ne.s32.totalorder %s43, %s44
    %p58 = scmp.eq.s32.totalorder %s15, 7
    %p59 = por %p57, %p58
    %p61 = scmp.ne.s32.totalorder %s44, %s60
    %p62 = scmp.eq.s32.totalorder %s15, 0
    %p63 = por %p61, %p62
    %s64 = ssub.s32 %s16, %s35
    %s65 = ssub.s32 %s18, %s27
    %s66 = sor.u32 %s64, %s65
    %p67 = scmp.eq.s32.totalorder %s66, 0
    %s69 = sadd.s32 %s68, 1
    %s70 = scalar_select %p67, %s68, %s69
    %p73 = pneg %p67
    %p74 = scmp.eq.s32.totalorder %s9, 7
    %p75 = por %p73, %p74
    %p76 = scmp.ne.s32.totalorder %s68, %s71
    %p77 = scmp.eq.s32.totalorder %s9, 0
    %p78 = por %p76, %p77
    %p79 = scmp.ne.s32.totalorder %s68, %s71
    %p80 = scmp.eq.s32.totalorder %s14, 7
    %p81 = por %p79, %p80
    %p82 = scmp.ne.s32.totalorder %s71, %s72
    %p83 = scmp.eq.s32.totalorder %s14, 0
    %p84 = por %p82, %p83
    %p85 = scmp.ne.s32.totalorder %s71, %s72
    %p86 = scmp.eq.s32.totalorder %s15, 7
    %p87 = por %p85, %p86
    %p89 = scmp.ne.s32.totalorder %s72, %s88
    %p90 = scmp.eq.s32.totalorder %s15, 0
    %p91 = por %p89, %p90
    %s93 = sadd.s32 %s92, 1
    %p96 = scmp.eq.s32.totalorder %s9, 7
    %p97 = scmp.ne.s32.totalorder %s92, %s94
    %p98 = scmp.eq.s32.totalorder %s9, 0
    %p99 = por %p97, %p98
    %p100 = scmp.ne.s32.totalorder %s92, %s94
    %p101 = scmp.eq.s32.totalorder %s14, 7
    %p102 = por %p100, %p101
    %p103 = scmp.ne.s32.totalorder %s94, %s95
    %p104 = scmp.eq.s32.totalorder %s14, 0
    %p105 = por %p103, %p104
    %p106 = scmp.ne.s32.totalorder %s94, %s95
    %p107 = scmp.eq.s32.totalorder %s15, 7
    %p108 = por %p106, %p107
    %p110 = scmp.ne.s32.totalorder %s95, %s109
    %p111 = scmp.eq.s32.totalorder %s15, 0
    %p112 = por %p110, %p111
    %s113 = ssub.s32 %s16, %s35
    %s114 = ssub.s32 %s17, %s31
    %s115 = sor.u32 %s113, %s114
    %p116 = scmp.eq.s32.totalorder %s115, 0
    %s118 = sadd.s32 %s117, 1
    %s119 = scalar_select %p116, %s117, %s118
    %p122 = pneg %p116
    %p123 = scmp.eq.s32.totalorder %s9, 7
    %p124 = por %p122, %p123
    %p125 = scmp.ne.s32.totalorder %s117, %s120
    %p126 = scmp.eq.s32.totalorder %s9, 0
    %p127 = por %p125, %p126
    %p128 = scmp.ne.s32.totalorder %s117, %s120
    %p129 = scmp.eq.s32.totalorder %s14, 7
    %p130 = por %p128, %p129
    %p131 = scmp.ne.s32.totalorder %s120, %s121
    %p132 = scmp.eq.s32.totalorder %s14, 0
    %p133 = por %p131, %p132
    %p134 = scmp.ne.s32.totalorder %s120, %s121
    %p135 = scmp.eq.s32.totalorder %s15, 7
    %p136 = por %p134, %p135
    %p138 = scmp.ne.s32.totalorder %s121, %s137
    %p139 = scmp.eq.s32.totalorder %s15, 0
    %p140 = por %p138, %p139
    %p141 = scmp.le.s32.totalorder 1, %s9
    %p142 = scmp.lt.s32.totalorder %s9, 9
    %p143 = pnand %p141, %p142
    %p144 = pneg %p143
    // Predicated region
    $region9: #{tpu_custom_call.1} parent=5 // pred_check
      _
    $region10: #{tpu_custom_call.1} parent=5 // pred_check_branch
      %146 = sbr.rel (%p143) target = $region12
    $region11: #{tpu_custom_call.1} parent=5 // pred_region
      %s147 = ssub.s32 %s9, 1
      // Predicated region
      $region13: #{tpu_custom_call.1} parent=11 // pred_check
        %p148 = pneg %p105
      $region14: #{tpu_custom_call.1} parent=11 // pred_check_branch
        %150 = sbr.rel (%p148) target = $region16
      $region15: #{tpu_custom_call.1} parent=11 // pred_region
        _
      $region16: #{tpu_custom_call.1} parent=11 // pred_fallthru
        _
    $region12: #{tpu_custom_call.1} parent=5 // pred_fallthru
      _
    %p151 = scmp.lt.s32.totalorder %s9, 8
    // Predicated region
    $region17: #{tpu_custom_call.1} parent=5 // pred_check
      %p152 = pneg %p151
    $region18: #{tpu_custom_call.1} parent=5 // pred_check_branch
      %154 = sbr.rel (%p152) target = $region20
    $region19: #{tpu_custom_call.1} parent=5 // pred_region
      // Predicated region
      $region21: #{tpu_custom_call.1} parent=19 // pred_check
        %p155 = pneg %p50
      $region22: #{tpu_custom_call.1} parent=19 // pred_check_branch
        %157 = sbr.rel (%p155) target = $region24
      $region23: #{tpu_custom_call.1} parent=19 // pred_region
        %s158 = smul.u32 16, %s17
        %p159 = scmp.lt.s32.totalorder %s16, 1
        %s160 = scalar_select %p159, %s16, 1
        %p161 = scmp.lt.s32.totalorder %s158, 31
        %s162 = scalar_select %p161, %s158, 31
        %s163 = smul.addr %s160, 32
        %s164 = sadd.s32 %s162, %s163
        %s165 = smul.addr %s164, 8
        %s166 = scalar_lea.vmem %s0, %s165
        %s167 = smul.u32 16, %s17
      $region24: #{tpu_custom_call.1} parent=19 // pred_fallthru
        _
      // Predicated region
      $region25: #{tpu_custom_call.1} parent=19 // pred_check
        %p168 = pneg %p78
      $region26: #{tpu_custom_call.1} parent=19 // pred_check_branch
        %170 = sbr.rel (%p168) target = $region28
      $region27: #{tpu_custom_call.1} parent=19 // pred_region
        %p171 = scmp.lt.s32.totalorder %s16, 1
        %s172 = scalar_select %p171, %s16, 1
        %p173 = scmp.lt.s32.totalorder %s18, 1
        %s174 = scalar_select %p173, %s18, 1
        %s175 = smul.addr %s172, 2
        %s176 = sadd.s32 %s174, %s175
        %s177 = smul.addr %s176, 4
        %s178 = scalar_lea.vmem %s1, %s177
      $region28: #{tpu_custom_call.1} parent=19 // pred_fallthru
        _
    $region20: #{tpu_custom_call.1} parent=5 // pred_fallthru
      _
    %p179 = scmp.le.s32.totalorder 1, %s9
    %p180 = scmp.lt.s32.totalorder %s9, 9
    %p181 = pnand %p179, %p180
    %p182 = pneg %p181
    // Predicated region
    $region29: #{tpu_custom_call.1} parent=5 // pred_check
      _
    $region30: #{tpu_custom_call.1} parent=5 // pred_check_branch
      %184 = sbr.rel (%p181) target = $region32
    $region31: #{tpu_custom_call.1} parent=5 // pred_region
      %s185 = ssub.s32 %s9, 1
      %s186 = smul.u32 16, %s20
      %p187 = scmp.lt.s32.totalorder %s19, 1
      %s188 = scalar_select %p187, %s19, 1
      %p189 = scmp.lt.s32.totalorder %s186, 31
      %s190 = scalar_select %p189, %s186, 31
      %s191 = smul.addr %s188, 32
      %s192 = sadd.s32 %s190, %s191
      %s193 = smul.addr %s192, 8
      %s194 = scalar_lea.vmem %s0, %s193
      %p195 = pneg %p56
      %p196 = pneg %p53
      %p197 = scmp.lt.s32.totalorder %s19, 1
      %s198 = scalar_select %p197, %s19, 1
      %p199 = scmp.lt.s32.totalorder %s21, 1
      %s200 = scalar_select %p199, %s21, 1
      %s201 = smul.addr %s198, 2
      %s202 = sadd.s32 %s200, %s201
      %s203 = smul.addr %s202, 4
      %s204 = scalar_lea.vmem %s1, %s203
      %p205 = pneg %p84
      %p206 = pneg %p81
      %p207 = pneg %p105
      %p208 = pneg %p102
      %p209 = pneg %p133
      %p210 = pneg %p130
      %s211 = smul.u32 16, %s20
      %p212 = scmp.lt.s32.totalorder %s19, 1
      %s213 = scalar_select %p212, %s19, 1
      %p214 = scmp.lt.s32.totalorder %s211, 31
      %s215 = scalar_select %p214, %s211, 31
      %s216 = smul.addr %s213, 32
      %s217 = sadd.s32 %s215, %s216
      %s218 = smul.addr %s217, 8
      %s219 = scalar_lea.vmem %s3, %s218
      %s220 = smul.u32 16, %s20
      %p221 = scmp.lt.s32.totalorder %s19, 1
      %s222 = scalar_select %p221, %s19, 1
      %p223 = scmp.lt.s32.totalorder %s220, 31
      %s224 = scalar_select %p223, %s220, 31
      %s225 = smul.addr %s222, 32
      %s226 = sadd.s32 %s224, %s225
      %s227 = smul.addr %s226, 8
      %s228 = scalar_lea.vmem %s0, %s227
      %s229 = smul.u32 16, %s20
      %p230 = scmp.lt.s32.totalorder %s19, 1
      %s231 = scalar_select %p230, %s19, 1
      %p232 = scmp.lt.s32.totalorder %s21, 1
      %s233 = scalar_select %p232, %s21, 1
      %s234 = smul.addr %s231, 2
      %s235 = sadd.s32 %s233, %s234
      %s236 = smul.addr %s235, 4
      %s237 = scalar_lea.vmem %s1, %s236
      %s238 = smul.u32 16, %s20
      %p239 = scmp.lt.s32.totalorder %s19, 1
      %s240 = scalar_select %p239, %s19, 1
      %p241 = scmp.lt.s32.totalorder %s238, 31
      %s242 = scalar_select %p241, %s238, 31
      %s243 = smul.addr %s240, 32
      %s244 = sadd.s32 %s242, %s243
      %s245 = smul.addr %s244, 8
      %s246 = scalar_lea.vmem %s3, %s245
      %s247 = smul.u32 16, %s20
      %p249 = scmp.eq.s32.totalorder %s21, 0
      // Predicated region
      $region33: #{tpu_custom_call.1} parent=31 // pred_check
        %p250 = pneg %p249
      $region34: #{tpu_custom_call.1} parent=31 // pred_check_branch
        %252 = sbr.rel (%p250) target = $region36
      $region35: #{tpu_custom_call.1} parent=31 // pred_region
        %vm253 = vcmask 7168
        %254 = vst.msk [vmem:[#allocation2] sm:$0xff] %vm253, 0
        %255 = vst.msk [vmem:[#allocation2 + $0x8] sm:$0xff] %vm253, 0
        %256 = vst.msk [vmem:[#allocation2 + $0x10] sm:$0xff] %vm253, 0
        %257 = vst.msk [vmem:[#allocation2 + $0x18] sm:$0xff] %vm253, 0
        %258 = vst.msk [vmem:[#allocation2 + $0x20] sm:$0xff] %vm253, 0
        %259 = vst.msk [vmem:[#allocation2 + $0x28] sm:$0xff] %vm253, 0
        %260 = vst.msk [vmem:[#allocation2 + $0x30] sm:$0xff] %vm253, 0
        %261 = vst.msk [vmem:[#allocation2 + $0x38] sm:$0xff] %vm253, 0
        %262 = vst.msk [vmem:[#allocation2 + $0x40] sm:$0xff] %vm253, 0
        %263 = vst.msk [vmem:[#allocation2 + $0x48] sm:$0xff] %vm253, 0
        %264 = vst.msk [vmem:[#allocation2 + $0x50] sm:$0xff] %vm253, 0
        %265 = vst.msk [vmem:[#allocation2 + $0x58] sm:$0xff] %vm253, 0
        %266 = vst.msk [vmem:[#allocation2 + $0x60] sm:$0xff] %vm253, 0
        %267 = vst.msk [vmem:[#allocation2 + $0x68] sm:$0xff] %vm253, 0
        %268 = vst.msk [vmem:[#allocation2 + $0x70] sm:$0xff] %vm253, 0
        %269 = vst.msk [vmem:[#allocation2 + $0x78] sm:$0xff] %vm253, 0
        %vm270 = vcmask 64512
        %271 = vst.msk [vmem:[#allocation3] sm:$0xff] %vm270, 256
        %272 = vst.msk [vmem:[#allocation3 + $0x8] sm:$0xff] %vm270, 256
        %273 = vst.msk [vmem:[#allocation3 + $0x10] sm:$0xff] %vm270, 256
        %274 = vst.msk [vmem:[#allocation3 + $0x18] sm:$0xff] %vm270, 256
        %275 = vst.msk [vmem:[#allocation3 + $0x20] sm:$0xff] %vm270, 256
        %276 = vst.msk [vmem:[#allocation3 + $0x28] sm:$0xff] %vm270, 256
        %277 = vst.msk [vmem:[#allocation3 + $0x30] sm:$0xff] %vm270, 256
        %278 = vst.msk [vmem:[#allocation3 + $0x38] sm:$0xff] %vm270, 256
        %279 = vst.msk [vmem:[#allocation3 + $0x40] sm:$0xff] %vm270, 256
        %280 = vst.msk [vmem:[#allocation3 + $0x48] sm:$0xff] %vm270, 256
        %281 = vst.msk [vmem:[#allocation3 + $0x50] sm:$0xff] %vm270, 256
        %282 = vst.msk [vmem:[#allocation3 + $0x58] sm:$0xff] %vm270, 256
        %283 = vst.msk [vmem:[#allocation3 + $0x60] sm:$0xff] %vm270, 256
        %284 = vst.msk [vmem:[#allocation3 + $0x68] sm:$0xff] %vm270, 256
        %285 = vst.msk [vmem:[#allocation3 + $0x70] sm:$0xff] %vm270, 256
        %286 = vst.msk [vmem:[#allocation3 + $0x78] sm:$0xff] %vm270, 256
        %s287 = scalar_lea.smem [#allocation4], 0
        %288 = sst [smem:[%s287]] 0
      $region36: #{tpu_custom_call.1} parent=31 // pred_fallthru
        _
      %s289 = sld [smem:[#allocation4]]
      %p290 = scmp.eq.s32.totalorder %s289, 0
      // Predicated region
      $region37: #{tpu_custom_call.1} parent=31 // pred_check
        %p291 = pneg %p290
      $region38: #{tpu_custom_call.1} parent=31 // pred_check_branch
        %293 = sbr.rel (%p291) target = $region40
      $region39: #{tpu_custom_call.1} parent=31 // pred_region
        %v294 = vld [vmem:[%s228] sm:$0xff]
        %v295 = vld [vmem:[%s228 + $0x8] sm:$0xff]
        %v296 = vld [vmem:[%s228 + $0x10] sm:$0xff]
        %v297 = vld [vmem:[%s228 + $0x18] sm:$0xff]
        %v298 = vld [vmem:[%s228 + $0x20] sm:$0xff]
        %v299 = vld [vmem:[%s228 + $0x28] sm:$0xff]
        %v300 = vld [vmem:[%s228 + $0x30] sm:$0xff]
        %v301 = vld [vmem:[%s228 + $0x38] sm:$0xff]
        %v302 = vld [vmem:[%s228 + $0x40] sm:$0xff]
        %v303 = vld [vmem:[%s228 + $0x48] sm:$0xff]
        %v304 = vld [vmem:[%s228 + $0x50] sm:$0xff]
        %v305 = vld [vmem:[%s228 + $0x58] sm:$0xff]
        %v306 = vld [vmem:[%s228 + $0x60] sm:$0xff]
        %v307 = vld [vmem:[%s228 + $0x68] sm:$0xff]
        %v308 = vld [vmem:[%s228 + $0x70] sm:$0xff]
        %v309 = vld [vmem:[%s228 + $0x78] sm:$0xff]
        %v310 = vld [vmem:[%s237] sm:$0x7]
        %312 = vset.pattern.permute.xlu0 0
        %313 = vperm.xlu0 %312, %v294
        %v314 = vpop.permute.xlu0 %313
        %317 = vset.pattern.permute.xlu0 0
        %318 = vperm.xlu0 %317, %v295
        %v319 = vpop.permute.xlu0 %318
        %322 = vset.pattern.permute.xlu0 0
        %323 = vperm.xlu0 %322, %v296
        %v324 = vpop.permute.xlu0 %323
        %327 = vset.pattern.permute.xlu0 0
        %328 = vperm.xlu0 %327, %v297
        %v329 = vpop.permute.xlu0 %328
        %332 = vset.pattern.permute.xlu0 0
        %333 = vperm.xlu0 %332, %v298
        %v334 = vpop.permute.xlu0 %333
        %337 = vset.pattern.permute.xlu0 0
        %338 = vperm.xlu0 %337, %v299
        %v339 = vpop.permute.xlu0 %338
        %342 = vset.pattern.permute.xlu0 0
        %343 = vperm.xlu0 %342, %v300
        %v344 = vpop.permute.xlu0 %343
        %347 = vset.pattern.permute.xlu0 0
        %348 = vperm.xlu0 %347, %v301
        %v349 = vpop.permute.xlu0 %348
        %352 = vset.pattern.permute.xlu0 0
        %353 = vperm.xlu0 %352, %v302
        %v354 = vpop.permute.xlu0 %353
        %357 = vset.pattern.permute.xlu0 0
        %358 = vperm.xlu0 %357, %v303
        %v359 = vpop.permute.xlu0 %358
        %362 = vset.pattern.permute.xlu0 0
        %363 = vperm.xlu0 %362, %v304
        %v364 = vpop.permute.xlu0 %363
        %367 = vset.pattern.permute.xlu0 0
        %368 = vperm.xlu0 %367, %v305
        %v369 = vpop.permute.xlu0 %368
        %372 = vset.pattern.permute.xlu0 0
        %373 = vperm.xlu0 %372, %v306
        %v374 = vpop.permute.xlu0 %373
        %377 = vset.pattern.permute.xlu0 0
        %378 = vperm.xlu0 %377, %v307
        %v379 = vpop.permute.xlu0 %378
        %382 = vset.pattern.permute.xlu0 0
        %383 = vperm.xlu0 %382, %v308
        %v384 = vpop.permute.xlu0 %383
        %387 = vset.pattern.permute.xlu0 0
        %388 = vperm.xlu0 %387, %v309
        %v389 = vpop.permute.xlu0 %388
        %v391 = vlaneseq
        %v392 = vshrl.u32 %v391, 7
        %v393 = vsub.s32 0, %v392
        %v394 = vrot.slane %v310, %v393
        %v395 = vsub.f32 %v314, %v394
        %v396 = vsub.f32 %v319, %v394
        %v397 = vsub.f32 %v324, %v394
        %v398 = vsub.f32 %v329, %v394
        %v399 = vsub.f32 %v334, %v394
        %v400 = vsub.f32 %v339, %v394
        %v401 = vsub.f32 %v344, %v394
        %v402 = vsub.f32 %v349, %v394
        %v403 = vsub.f32 %v354, %v394
        %v404 = vsub.f32 %v359, %v394
        %v405 = vsub.f32 %v364, %v394
        %v406 = vsub.f32 %v369, %v394
        %v407 = vsub.f32 %v374, %v394
        %v408 = vsub.f32 %v379, %v394
        %v409 = vsub.f32 %v384, %v394
        %v410 = vsub.f32 %v389, %v394
        %411 = vset.pattern.permute.xlu0 1
        %412 = vperm.xlu0 %411, %v294
        %v413 = vpop.permute.xlu0 %412
        %415 = vset.pattern.permute.xlu0 1
        %416 = vperm.xlu0 %415, %v295
        %v417 = vpop.permute.xlu0 %416
        %419 = vset.pattern.permute.xlu0 1
        %420 = vperm.xlu0 %419, %v296
        %v421 = vpop.permute.xlu0 %420
        %423 = vset.pattern.permute.xlu0 1
        %424 = vperm.xlu0 %423, %v297
        %v425 = vpop.permute.xlu0 %424
        %427 = vset.pattern.permute.xlu0 1
        %428 = vperm.xlu0 %427, %v298
        %v429 = vpop.permute.xlu0 %428
        %431 = vset.pattern.permute.xlu0 1
        %432 = vperm.xlu0 %431, %v299
        %v433 = vpop.permute.xlu0 %432
        %435 = vset.pattern.permute.xlu0 1
        %436 = vperm.xlu0 %435, %v300
        %v437 = vpop.permute.xlu0 %436
        %439 = vset.pattern.permute.xlu0 1
        %440 = vperm.xlu0 %439, %v301
        %v441 = vpop.permute.xlu0 %440
        %443 = vset.pattern.permute.xlu0 1
        %444 = vperm.xlu0 %443, %v302
        %v445 = vpop.permute.xlu0 %444
        %447 = vset.pattern.permute.xlu0 1
        %448 = vperm.xlu0 %447, %v303
        %v449 = vpop.permute.xlu0 %448
        %451 = vset.pattern.permute.xlu0 1
        %452 = vperm.xlu0 %451, %v304
        %v453 = vpop.permute.xlu0 %452
        %455 = vset.pattern.permute.xlu0 1
        %456 = vperm.xlu0 %455, %v305
        %v457 = vpop.permute.xlu0 %456
        %459 = vset.pattern.permute.xlu0 1
        %460 = vperm.xlu0 %459, %v306
        %v461 = vpop.permute.xlu0 %460
        %463 = vset.pattern.permute.xlu0 1
        %464 = vperm.xlu0 %463, %v307
        %v465 = vpop.permute.xlu0 %464
        %467 = vset.pattern.permute.xlu0 1
        %468 = vperm.xlu0 %467, %v308
        %v469 = vpop.permute.xlu0 %468
        %471 = vset.pattern.permute.xlu0 1
        %472 = vperm.xlu0 %471, %v309
        %v473 = vpop.permute.xlu0 %472
        %v475 = vlaneseq
        %v476 = vshrl.u32 %v475, 7
        %v477 = vsub.s32 1, %v476
        %v478 = vrot.slane %v310, %v477
        %v479 = vsub.f32 %v413, %v478
        %v480 = vsub.f32 %v417, %v478
        %v481 = vsub.f32 %v421, %v478
        %v482 = vsub.f32 %v425, %v478
        %v483 = vsub.f32 %v429, %v478
        %v484 = vsub.f32 %v433, %v478
        %v485 = vsub.f32 %v437, %v478
        %v486 = vsub.f32 %v441, %v478
        %v487 = vsub.f32 %v445, %v478
        %v488 = vsub.f32 %v449, %v478
        %v489 = vsub.f32 %v453, %v478
        %v490 = vsub.f32 %v457, %v478
        %v491 = vsub.f32 %v461, %v478
        %v492 = vsub.f32 %v465, %v478
        %v493 = vsub.f32 %v469, %v478
        %v494 = vsub.f32 %v473, %v478
        %495 = vset.pattern.permute.xlu0 2
        %496 = vperm.xlu0 %495, %v294
        %v497 = vpop.permute.xlu0 %496
        %499 = vset.pattern.permute.xlu0 2
        %500 = vperm.xlu0 %499, %v295
        %v501 = vpop.permute.xlu0 %500
        %503 = vset.pattern.permute.xlu0 2
        %504 = vperm.xlu0 %503, %v296
        %v505 = vpop.permute.xlu0 %504
        %507 = vset.pattern.permute.xlu0 2
        %508 = vperm.xlu0 %507, %v297
        %v509 = vpop.permute.xlu0 %508
        %511 = vset.pattern.permute.xlu0 2
        %512 = vperm.xlu0 %511, %v298
        %v513 = vpop.permute.xlu0 %512
        %515 = vset.pattern.permute.xlu0 2
        %516 = vperm.xlu0 %515, %v299
        %v517 = vpop.permute.xlu0 %516
        %519 = vset.pattern.permute.xlu0 2
        %520 = vperm.xlu0 %519, %v300
        %v521 = vpop.permute.xlu0 %520
        %523 = vset.pattern.permute.xlu0 2
        %524 = vperm.xlu0 %523, %v301
        %v525 = vpop.permute.xlu0 %524
        %527 = vset.pattern.permute.xlu0 2
        %528 = vperm.xlu0 %527, %v302
        %v529 = vpop.permute.xlu0 %528
        %531 = vset.pattern.permute.xlu0 2
        %532 = vperm.xlu0 %531, %v303
        %v533 = vpop.permute.xlu0 %532
        %535 = vset.pattern.permute.xlu0 2
        %536 = vperm.xlu0 %535, %v304
        %v537 = vpop.permute.xlu0 %536
        %539 = vset.pattern.permute.xlu0 2
        %540 = vperm.xlu0 %539, %v305
        %v541 = vpop.permute.xlu0 %540
        %543 = vset.pattern.permute.xlu0 2
        %544 = vperm.xlu0 %543, %v306
        %v545 = vpop.permute.xlu0 %544
        %547 = vset.pattern.permute.xlu0 2
        %548 = vperm.xlu0 %547, %v307
        %v549 = vpop.permute.xlu0 %548
        %551 = vset.pattern.permute.xlu0 2
        %552 = vperm.xlu0 %551, %v308
        %v553 = vpop.permute.xlu0 %552
        %555 = vset.pattern.permute.xlu0 2
        %556 = vperm.xlu0 %555, %v309
        %v557 = vpop.permute.xlu0 %556
        %v559 = vlaneseq
        %v560 = vshrl.u32 %v559, 7
        %v561 = vsub.s32 2, %v560
        %v562 = vrot.slane %v310, %v561
        %v563 = vsub.f32 %v497, %v562
        %v564 = vsub.f32 %v501, %v562
        %v565 = vsub.f32 %v505, %v562
        %v566 = vsub.f32 %v509, %v562
        %v567 = vsub.f32 %v513, %v562
        %v568 = vsub.f32 %v517, %v562
        %v569 = vsub.f32 %v521, %v562
        %v570 = vsub.f32 %v525, %v562
        %v571 = vsub.f32 %v529, %v562
        %v572 = vsub.f32 %v533, %v562
        %v573 = vsub.f32 %v537, %v562
        %v574 = vsub.f32 %v541, %v562
        %v575 = vsub.f32 %v545, %v562
        %v576 = vsub.f32 %v549, %v562
        %v577 = vsub.f32 %v553, %v562
        %v578 = vsub.f32 %v557, %v562
        %v579 = vmul.f32 %v395, %v395
        %v580 = vmul.f32 %v396, %v396
        %v581 = vmul.f32 %v397, %v397
        %v582 = vmul.f32 %v398, %v398
        %v583 = vmul.f32 %v399, %v399
        %v584 = vmul.f32 %v400, %v400
        %v585 = vmul.f32 %v401, %v401
        %v586 = vmul.f32 %v402, %v402
        %v587 = vmul.f32 %v403, %v403
        %v588 = vmul.f32 %v404, %v404
        %v589 = vmul.f32 %v405, %v405
        %v590 = vmul.f32 %v406, %v406
        %v591 = vmul.f32 %v407, %v407
        %v592 = vmul.f32 %v408, %v408
        %v593 = vmul.f32 %v409, %v409
        %v594 = vmul.f32 %v410, %v410
        %v595 = vmul.f32 %v479, %v479
        %v596 = vmul.f32 %v480, %v480
        %v597 = vmul.f32 %v481, %v481
        %v598 = vmul.f32 %v482, %v482
        %v599 = vmul.f32 %v483, %v483
        %v600 = vmul.f32 %v484, %v484
        %v601 = vmul.f32 %v485, %v485
        %v602 = vmul.f32 %v486, %v486
        %v603 = vmul.f32 %v487, %v487
        %v604 = vmul.f32 %v488, %v488
        %v605 = vmul.f32 %v489, %v489
        %v606 = vmul.f32 %v490, %v490
        %v607 = vmul.f32 %v491, %v491
        %v608 = vmul.f32 %v492, %v492
        %v609 = vmul.f32 %v493, %v493
        %v610 = vmul.f32 %v494, %v494
        %v611 = vadd.f32 %v579, %v595
        %v612 = vadd.f32 %v580, %v596
        %v613 = vadd.f32 %v581, %v597
        %v614 = vadd.f32 %v582, %v598
        %v615 = vadd.f32 %v583, %v599
        %v616 = vadd.f32 %v584, %v600
        %v617 = vadd.f32 %v585, %v601
        %v618 = vadd.f32 %v586, %v602
        %v619 = vadd.f32 %v587, %v603
        %v620 = vadd.f32 %v588, %v604
        %v621 = vadd.f32 %v589, %v605
        %v622 = vadd.f32 %v590, %v606
        %v623 = vadd.f32 %v591, %v607
        %v624 = vadd.f32 %v592, %v608
        %v625 = vadd.f32 %v593, %v609
        %v626 = vadd.f32 %v594, %v610
        %v627 = vmul.f32 %v563, %v563
        %v628 = vmul.f32 %v564, %v564
        %v629 = vmul.f32 %v565, %v565
        %v630 = vmul.f32 %v566, %v566
        %v631 = vmul.f32 %v567, %v567
        %v632 = vmul.f32 %v568, %v568
        %v633 = vmul.f32 %v569, %v569
        %v634 = vmul.f32 %v570, %v570
        %v635 = vmul.f32 %v571, %v571
        %v636 = vmul.f32 %v572, %v572
        %v637 = vmul.f32 %v573, %v573
        %v638 = vmul.f32 %v574, %v574
        %v639 = vmul.f32 %v575, %v575
        %v640 = vmul.f32 %v576, %v576
        %v641 = vmul.f32 %v577, %v577
        %v642 = vmul.f32 %v578, %v578
        %v643 = vadd.f32 %v611, %v627
        %v644 = vadd.f32 %v612, %v628
        %v645 = vadd.f32 %v613, %v629
        %v646 = vadd.f32 %v614, %v630
        %v647 = vadd.f32 %v615, %v631
        %v648 = vadd.f32 %v616, %v632
        %v649 = vadd.f32 %v617, %v633
        %v650 = vadd.f32 %v618, %v634
        %v651 = vadd.f32 %v619, %v635
        %v652 = vadd.f32 %v620, %v636
        %v653 = vadd.f32 %v621, %v637
        %v654 = vadd.f32 %v622, %v638
        %v655 = vadd.f32 %v623, %v639
        %v656 = vadd.f32 %v624, %v640
        %v657 = vadd.f32 %v625, %v641
        %v658 = vadd.f32 %v626, %v642
        %vm659 = vcmp.lt.f32.partialorder %v643, 0.04
        %vm660 = vcmp.lt.f32.partialorder %v644, 0.04
        %vm661 = vcmp.lt.f32.partialorder %v645, 0.04
        %vm662 = vcmp.lt.f32.partialorder %v646, 0.04
        %vm663 = vcmp.lt.f32.partialorder %v647, 0.04
        %vm664 = vcmp.lt.f32.partialorder %v648, 0.04
        %vm665 = vcmp.lt.f32.partialorder %v649, 0.04
        %vm666 = vcmp.lt.f32.partialorder %v650, 0.04
        %vm667 = vcmp.lt.f32.partialorder %v651, 0.04
        %vm668 = vcmp.lt.f32.partialorder %v652, 0.04
        %vm669 = vcmp.lt.f32.partialorder %v653, 0.04
        %vm670 = vcmp.lt.f32.partialorder %v654, 0.04
        %vm671 = vcmp.lt.f32.partialorder %v655, 0.04
        %vm672 = vcmp.lt.f32.partialorder %v656, 0.04
        %vm673 = vcmp.lt.f32.partialorder %v657, 0.04
        %vm674 = vcmp.lt.f32.partialorder %v658, 0.04
        %v675 = vsel %vm659, 1, 0
        %v676 = vsel %vm660, 1, 0
        %v677 = vsel %vm661, 1, 0
        %v678 = vsel %vm662, 1, 0
        %v679 = vsel %vm663, 1, 0
        %v680 = vsel %vm664, 1, 0
        %v681 = vsel %vm665, 1, 0
        %v682 = vsel %vm666, 1, 0
        %v683 = vsel %vm667, 1, 0
        %v684 = vsel %vm668, 1, 0
        %v685 = vsel %vm669, 1, 0
        %v686 = vsel %vm670, 1, 0
        %v687 = vsel %vm671, 1, 0
        %v688 = vsel %vm672, 1, 0
        %v689 = vsel %vm673, 1, 0
        %v690 = vsel %vm674, 1, 0
        %v691 = vcvt.s32.f32 %v675
        %v692 = vcvt.s32.f32 %v676
        %v693 = vcvt.s32.f32 %v677
        %v694 = vcvt.s32.f32 %v678
        %v695 = vcvt.s32.f32 %v679
        %v696 = vcvt.s32.f32 %v680
        %v697 = vcvt.s32.f32 %v681
        %v698 = vcvt.s32.f32 %v682
        %v699 = vcvt.s32.f32 %v683
        %v700 = vcvt.s32.f32 %v684
        %v701 = vcvt.s32.f32 %v685
        %v702 = vcvt.s32.f32 %v686
        %v703 = vcvt.s32.f32 %v687
        %v704 = vcvt.s32.f32 %v688
        %v705 = vcvt.s32.f32 %v689
        %v706 = vcvt.s32.f32 %v690
        %v707 = vpack.c.bf16 %v692, %v691
        %v708 = vpack.c.bf16 %v694, %v693
        %v709 = vpack.c.bf16 %v696, %v695
        %v710 = vpack.c.bf16 %v698, %v697
        %v711 = vpack.c.bf16 %v700, %v699
        %v712 = vpack.c.bf16 %v702, %v701
        %v713 = vpack.c.bf16 %v704, %v703
        %v714 = vpack.c.bf16 %v706, %v705
        %v715 = vld [vmem:[%s2] sm:$0xf]
        %v716 = vld [vmem:[%s2 + $0x4] sm:$0xf]
        %v717 = vld [vmem:[%s2 + $0x8] sm:$0xf]
        %v718 = vld [vmem:[%s2 + $0xc] sm:$0xf]
        %v719 = vld [vmem:[%s2 + $0x10] sm:$0xf]
        %v720 = vld [vmem:[%s2 + $0x14] sm:$0xf]
        %v721 = vld [vmem:[%s2 + $0x18] sm:$0xf]
        %v722 = vld [vmem:[%s2 + $0x1c] sm:$0xf]
        %v723 = vld [vmem:[%s2 + $0x20] sm:$0xf]
        %v724 = vld [vmem:[%s2 + $0x24] sm:$0xf]
        %v725 = vld [vmem:[%s2 + $0x28] sm:$0xf]
        %v726 = vld [vmem:[%s2 + $0x2c] sm:$0xf]
        %v727 = vld [vmem:[%s2 + $0x30] sm:$0xf]
        %v728 = vld [vmem:[%s2 + $0x34] sm:$0xf]
        %v729 = vld [vmem:[%s2 + $0x38] sm:$0xf]
        %v730 = vld [vmem:[%s2 + $0x3c] sm:$0xf]
        %v747 = vunpack.c.l.b16 %v715
        %v748 = vunpack.c.l.b16 %v716
        %v749 = vunpack.c.l.b16 %v717
        %v750 = vunpack.c.l.b16 %v718
        %v751 = vunpack.c.l.b16 %v719
        %v752 = vunpack.c.l.b16 %v720
        %v753 = vunpack.c.l.b16 %v721
        %v754 = vunpack.c.l.b16 %v722
        %v755 = vunpack.c.l.b16 %v723
        %v756 = vunpack.c.l.b16 %v724
        %v757 = vunpack.c.l.b16 %v725
        %v758 = vunpack.c.l.b16 %v726
        %v759 = vunpack.c.l.b16 %v727
        %v760 = vunpack.c.l.b16 %v728
        %v761 = vunpack.c.l.b16 %v729
        %v762 = vunpack.c.l.b16 %v730
        %v763 = vpack.c.b16 %v748, %v747
        %v764 = vpack.c.b16 %v750, %v749
        %v765 = vpack.c.b16 %v752, %v751
        %v766 = vpack.c.b16 %v754, %v753
        %v767 = vpack.c.b16 %v756, %v755
        %v768 = vpack.c.b16 %v758, %v757
        %v769 = vpack.c.b16 %v760, %v759
        %v770 = vpack.c.b16 %v762, %v761
        %779 = vmatprep.subr.bf16.mxu0 0
        %780 = vmatpush1.bf16.msra.mxu0 %v770
        %781 = vmatprep.subr.bf16.mxu0 0
        %782 = vmatpush1.bf16.msra.mxu0 %v769
        %783 = vmatprep.subr.bf16.mxu0 0
        %784 = vmatpush1.bf16.msra.mxu0 %v768
        %785 = vmatprep.subr.bf16.mxu0 0
        %786 = vmatpush1.bf16.msra.mxu0 %v767
        %787 = vmatprep.subr.bf16.mxu0 0
        %788 = vmatpush1.bf16.msra.mxu0 %v766
        %789 = vmatprep.subr.bf16.mxu0 0
        %790 = vmatpush1.bf16.msra.mxu0 %v765
        %791 = vmatprep.subr.bf16.mxu0 0
        %792 = vmatpush1.bf16.msra.mxu0 %v764
        %793 = vmatprep.subr.bf16.mxu0 0
        %794 = vmatpush1.bf16.msra.mxu0 %v763
        %795 = vmatprep.subr.bf16.mxu0 0
        %796 = vmatpush2.bf16.msra.mxu0 0
        %797 = vmatprep.subr.bf16.mxu0 0
        %798 = vmatpush2.bf16.msra.mxu0 0
        %799 = vmatprep.subr.bf16.mxu0 0
        %800 = vmatpush2.bf16.msra.mxu0 0
        %801 = vmatprep.subr.bf16.mxu0 0
        %802 = vmatpush2.bf16.msra.mxu0 0
        %803 = vmatprep.subr.bf16.mxu0 0
        %804 = vmatpush2.bf16.msra.mxu0 0
        %805 = vmatprep.subr.bf16.mxu0 0
        %806 = vmatpush2.bf16.msra.mxu0 0
        %807 = vmatprep.subr.bf16.mxu0 0
        %808 = vmatpush2.bf16.msra.mxu0 0
        %809 = vmatprep.subr.bf16.mxu0 0
        %810 = vmatpush2.bf16.msra.mxu0 0
        %811 = vmatprep.mubr.bf16.mxu0 0
        %812 = vmatmul.mubr.bf16.gmra.mxu0 %v707
        %v813 = vpop.f32.mrf.mxu0
        %v814 = vadd.f32 0.0, %v813
        %v815 = vpop.f32.mrf.mxu0
        %v816 = vpop.f32.mrf.mxu0
        %v817 = vadd.f32 0.0, %v816
        %v818 = vpop.f32.mrf.mxu0
        %819 = vmatprep.mubr.bf16.mxu0 0
        %820 = vmatmul.mubr.bf16.gmra.mxu0 %v708
        %v821 = vpop.f32.mrf.mxu0
        %v822 = vadd.f32 0.0, %v821
        %v823 = vpop.f32.mrf.mxu0
        %v824 = vpop.f32.mrf.mxu0
        %v825 = vadd.f32 0.0, %v824
        %v826 = vpop.f32.mrf.mxu0
        %827 = vmatprep.mubr.bf16.mxu0 0
        %828 = vmatmul.mubr.bf16.gmra.mxu0 %v709
        %v829 = vpop.f32.mrf.mxu0
        %v830 = vadd.f32 0.0, %v829
        %v831 = vpop.f32.mrf.mxu0
        %v832 = vpop.f32.mrf.mxu0
        %v833 = vadd.f32 0.0, %v832
        %v834 = vpop.f32.mrf.mxu0
        %835 = vmatprep.mubr.bf16.mxu0 0
        %836 = vmatmul.mubr.bf16.gmra.mxu0 %v710
        %v837 = vpop.f32.mrf.mxu0
        %v838 = vadd.f32 0.0, %v837
        %v839 = vpop.f32.mrf.mxu0
        %v840 = vpop.f32.mrf.mxu0
        %v841 = vadd.f32 0.0, %v840
        %v842 = vpop.f32.mrf.mxu0
        %843 = vmatprep.mubr.bf16.mxu0 0
        %844 = vmatmul.mubr.bf16.gmra.mxu0 %v711
        %v845 = vpop.f32.mrf.mxu0
        %v846 = vadd.f32 0.0, %v845
        %v847 = vpop.f32.mrf.mxu0
        %v848 = vpop.f32.mrf.mxu0
        %v849 = vadd.f32 0.0, %v848
        %v850 = vpop.f32.mrf.mxu0
        %851 = vmatprep.mubr.bf16.mxu0 0
        %852 = vmatmul.mubr.bf16.gmra.mxu0 %v712
        %v853 = vpop.f32.mrf.mxu0
        %v854 = vadd.f32 0.0, %v853
        %v855 = vpop.f32.mrf.mxu0
        %v856 = vpop.f32.mrf.mxu0
        %v857 = vadd.f32 0.0, %v856
        %v858 = vpop.f32.mrf.mxu0
        %859 = vmatprep.mubr.bf16.mxu0 0
        %860 = vmatmul.mubr.bf16.gmra.mxu0 %v713
        %v861 = vpop.f32.mrf.mxu0
        %v862 = vadd.f32 0.0, %v861
        %v863 = vpop.f32.mrf.mxu0
        %v864 = vpop.f32.mrf.mxu0
        %v865 = vadd.f32 0.0, %v864
        %v866 = vpop.f32.mrf.mxu0
        %867 = vmatprep.mubr.bf16.mxu0 0
        %868 = vmatmul.mubr.bf16.gmra.mxu0 %v714
        %v869 = vpop.f32.mrf.mxu0
        %v870 = vadd.f32 0.0, %v869
        %v871 = vpop.f32.mrf.mxu0
        %v872 = vpop.f32.mrf.mxu0
        %v873 = vadd.f32 0.0, %v872
        %v874 = vpop.f32.mrf.mxu0
        %875 = vdwg.mxu0
        %v876 = vcvt.f32.s32.to.zero.pseudo %v814
        %v877 = vcvt.f32.s32.to.zero.pseudo %v817
        %v878 = vcvt.f32.s32.to.zero.pseudo %v822
        %v879 = vcvt.f32.s32.to.zero.pseudo %v825
        %v880 = vcvt.f32.s32.to.zero.pseudo %v830
        %v881 = vcvt.f32.s32.to.zero.pseudo %v833
        %v882 = vcvt.f32.s32.to.zero.pseudo %v838
        %v883 = vcvt.f32.s32.to.zero.pseudo %v841
        %v884 = vcvt.f32.s32.to.zero.pseudo %v846
        %v885 = vcvt.f32.s32.to.zero.pseudo %v849
        %v886 = vcvt.f32.s32.to.zero.pseudo %v854
        %v887 = vcvt.f32.s32.to.zero.pseudo %v857
        %v888 = vcvt.f32.s32.to.zero.pseudo %v862
        %v889 = vcvt.f32.s32.to.zero.pseudo %v865
        %v890 = vcvt.f32.s32.to.zero.pseudo %v870
        %v891 = vcvt.f32.s32.to.zero.pseudo %v873
        %v892 = vld [vmem:[#allocation2] sm:$0xff]
        %v893 = vld [vmem:[#allocation2 + $0x8] sm:$0xff]
        %v894 = vld [vmem:[#allocation2 + $0x10] sm:$0xff]
        %v895 = vld [vmem:[#allocation2 + $0x18] sm:$0xff]
        %v896 = vld [vmem:[#allocation2 + $0x20] sm:$0xff]
        %v897 = vld [vmem:[#allocation2 + $0x28] sm:$0xff]
        %v898 = vld [vmem:[#allocation2 + $0x30] sm:$0xff]
        %v899 = vld [vmem:[#allocation2 + $0x38] sm:$0xff]
        %v900 = vld [vmem:[#allocation2 + $0x40] sm:$0xff]
        %v901 = vld [vmem:[#allocation2 + $0x48] sm:$0xff]
        %v902 = vld [vmem:[#allocation2 + $0x50] sm:$0xff]
        %v903 = vld [vmem:[#allocation2 + $0x58] sm:$0xff]
        %v904 = vld [vmem:[#allocation2 + $0x60] sm:$0xff]
        %v905 = vld [vmem:[#allocation2 + $0x68] sm:$0xff]
        %v906 = vld [vmem:[#allocation2 + $0x70] sm:$0xff]
        %v907 = vld [vmem:[#allocation2 + $0x78] sm:$0xff]
        %908 = vset.pattern.permute.xlu0 0
        %909 = vperm.xlu0 %908, %v892
        %v910 = vpop.permute.xlu0 %909
        %911 = vset.pattern.permute.xlu0 0
        %912 = vperm.xlu0 %911, %v893
        %v913 = vpop.permute.xlu0 %912
        %914 = vset.pattern.permute.xlu0 0
        %915 = vperm.xlu0 %914, %v894
        %v916 = vpop.permute.xlu0 %915
        %917 = vset.pattern.permute.xlu0 0
        %918 = vperm.xlu0 %917, %v895
        %v919 = vpop.permute.xlu0 %918
        %920 = vset.pattern.permute.xlu0 0
        %921 = vperm.xlu0 %920, %v896
        %v922 = vpop.permute.xlu0 %921
        %923 = vset.pattern.permute.xlu0 0
        %924 = vperm.xlu0 %923, %v897
        %v925 = vpop.permute.xlu0 %924
        %926 = vset.pattern.permute.xlu0 0
        %927 = vperm.xlu0 %926, %v898
        %v928 = vpop.permute.xlu0 %927
        %929 = vset.pattern.permute.xlu0 0
        %930 = vperm.xlu0 %929, %v899
        %v931 = vpop.permute.xlu0 %930
        %932 = vset.pattern.permute.xlu0 0
        %933 = vperm.xlu0 %932, %v900
        %v934 = vpop.permute.xlu0 %933
        %935 = vset.pattern.permute.xlu0 0
        %936 = vperm.xlu0 %935, %v901
        %v937 = vpop.permute.xlu0 %936
        %938 = vset.pattern.permute.xlu0 0
        %939 = vperm.xlu0 %938, %v902
        %v940 = vpop.permute.xlu0 %939
        %941 = vset.pattern.permute.xlu0 0
        %942 = vperm.xlu0 %941, %v903
        %v943 = vpop.permute.xlu0 %942
        %944 = vset.pattern.permute.xlu0 0
        %945 = vperm.xlu0 %944, %v904
        %v946 = vpop.permute.xlu0 %945
        %947 = vset.pattern.permute.xlu0 0
        %948 = vperm.xlu0 %947, %v905
        %v949 = vpop.permute.xlu0 %948
        %950 = vset.pattern.permute.xlu0 0
        %951 = vperm.xlu0 %950, %v906
        %v952 = vpop.permute.xlu0 %951
        %953 = vset.pattern.permute.xlu0 0
        %954 = vperm.xlu0 %953, %v907
        %v955 = vpop.permute.xlu0 %954
        %v956 = vadd.s32 %v910, %v876
        %v957 = vadd.s32 %v913, %v877
        %v958 = vadd.s32 %v916, %v878
        %v959 = vadd.s32 %v919, %v879
        %v960 = vadd.s32 %v922, %v880
        %v961 = vadd.s32 %v925, %v881
        %v962 = vadd.s32 %v928, %v882
        %v963 = vadd.s32 %v931, %v883
        %v964 = vadd.s32 %v934, %v884
        %v965 = vadd.s32 %v937, %v885
        %v966 = vadd.s32 %v940, %v886
        %v967 = vadd.s32 %v943, %v887
        %v968 = vadd.s32 %v946, %v888
        %v969 = vadd.s32 %v949, %v889
        %v970 = vadd.s32 %v952, %v890
        %v971 = vadd.s32 %v955, %v891
        %v972 = vlaneseq
        %v973 = vand.u32 %v972, 127
        %v974 = vsel %vm659, %v973, 128
        %v975 = vsel %vm660, %v973, 128
        %v976 = vsel %vm661, %v973, 128
        %v977 = vsel %vm662, %v973, 128
        %v978 = vsel %vm663, %v973, 128
        %v979 = vsel %vm664, %v973, 128
        %v980 = vsel %vm665, %v973, 128
        %v981 = vsel %vm666, %v973, 128
        %v982 = vsel %vm667, %v973, 128
        %v983 = vsel %vm668, %v973, 128
        %v984 = vsel %vm669, %v973, 128
        %v985 = vsel %vm670, %v973, 128
        %v986 = vsel %vm671, %v973, 128
        %v987 = vsel %vm672, %v973, 128
        %v988 = vsel %vm673, %v973, 128
        %v989 = vsel %vm674, %v973, 128
        %vm990 = vcmp.eq.s32.totalorder %v956, 1
        %vm991 = vcmp.eq.s32.totalorder %v957, 1
        %vm992 = vcmp.eq.s32.totalorder %v958, 1
        %vm993 = vcmp.eq.s32.totalorder %v959, 1
        %vm994 = vcmp.eq.s32.totalorder %v960, 1
        %vm995 = vcmp.eq.s32.totalorder %v961, 1
        %vm996 = vcmp.eq.s32.totalorder %v962, 1
        %vm997 = vcmp.eq.s32.totalorder %v963, 1
        %vm998 = vcmp.eq.s32.totalorder %v964, 1
        %vm999 = vcmp.eq.s32.totalorder %v965, 1
        %vm1000 = vcmp.eq.s32.totalorder %v966, 1
        %vm1001 = vcmp.eq.s32.totalorder %v967, 1
        %vm1002 = vcmp.eq.s32.totalorder %v968, 1
        %vm1003 = vcmp.eq.s32.totalorder %v969, 1
        %vm1004 = vcmp.eq.s32.totalorder %v970, 1
        %vm1005 = vcmp.eq.s32.totalorder %v971, 1
        %v1006 = vsel %vm990, %v974, 128
        %v1007 = vsel %vm991, %v975, 128
        %v1008 = vsel %vm992, %v976, 128
        %v1009 = vsel %vm993, %v977, 128
        %v1010 = vsel %vm994, %v978, 128
        %v1011 = vsel %vm995, %v979, 128
        %v1012 = vsel %vm996, %v980, 128
        %v1013 = vsel %vm997, %v981, 128
        %v1014 = vsel %vm998, %v982, 128
        %v1015 = vsel %vm999, %v983, 128
        %v1016 = vsel %vm1000, %v984, 128
        %v1017 = vsel %vm1001, %v985, 128
        %v1018 = vsel %vm1002, %v986, 128
        %v1019 = vsel %vm1003, %v987, 128
        %v1020 = vsel %vm1004, %v988, 128
        %v1021 = vsel %vm1005, %v989, 128
        %v1022 = vand.u32 %v1006, 65535
        %v1023 = vshra.s32 %v1006, 16
        %v1024 = vcvt.s32.f32 %v1022
        %v1025 = vcvt.s32.f32 %v1023
        %1026 = vmin.xlane.f32.xlu0 %v1025
        %v1027 = vpop.xlane.xlu0 %1026
        %vm1028 = vcmp.eq.f32.partialorder %v1025, %v1027
        %v1029 = vsel %vm1028, %v1024, inf
        %1030 = vmin.xlane.f32.xlu0 %v1029
        %v1031 = vpop.xlane.xlu0 %1030
        %v1032 = vcvt.f32.s32 %v1031
        %v1033 = vcvt.f32.s32 %v1027
        %v1034 = vshll.u32 %v1033, 16
        %v1035 = vadd.s32 %v1034, %v1032
        %v1036 = vand.u32 %v1007, 65535
        %v1037 = vshra.s32 %v1007, 16
        %v1038 = vcvt.s32.f32 %v1036
        %v1039 = vcvt.s32.f32 %v1037
        %1040 = vmin.xlane.f32.xlu0 %v1039
        %v1041 = vpop.xlane.xlu0 %1040
        %vm1042 = vcmp.eq.f32.partialorder %v1039, %v1041
        %v1043 = vsel %vm1042, %v1038, inf
        %1044 = vmin.xlane.f32.xlu0 %v1043
        %v1045 = vpop.xlane.xlu0 %1044
        %v1046 = vcvt.f32.s32 %v1045
        %v1047 = vcvt.f32.s32 %v1041
        %v1048 = vshll.u32 %v1047, 16
        %v1049 = vadd.s32 %v1048, %v1046
        %v1050 = vand.u32 %v1008, 65535
        %v1051 = vshra.s32 %v1008, 16
        %v1052 = vcvt.s32.f32 %v1050
        %v1053 = vcvt.s32.f32 %v1051
        %1054 = vmin.xlane.f32.xlu0 %v1053
        %v1055 = vpop.xlane.xlu0 %1054
        %vm1056 = vcmp.eq.f32.partialorder %v1053, %v1055
        %v1057 = vsel %vm1056, %v1052, inf
        %1058 = vmin.xlane.f32.xlu0 %v1057
        %v1059 = vpop.xlane.xlu0 %1058
        %v1060 = vcvt.f32.s32 %v1059
        %v1061 = vcvt.f32.s32 %v1055
        %v1062 = vshll.u32 %v1061, 16
        %v1063 = vadd.s32 %v1062, %v1060
        %v1064 = vand.u32 %v1009, 65535
        %v1065 = vshra.s32 %v1009, 16
        %v1066 = vcvt.s32.f32 %v1064
        %v1067 = vcvt.s32.f32 %v1065
        %1068 = vmin.xlane.f32.xlu0 %v1067
        %v1069 = vpop.xlane.xlu0 %1068
        %vm1070 = vcmp.eq.f32.partialorder %v1067, %v1069
        %v1071 = vsel %vm1070, %v1066, inf
        %1072 = vmin.xlane.f32.xlu0 %v1071
        %v1073 = vpop.xlane.xlu0 %1072
        %v1074 = vcvt.f32.s32 %v1073
        %v1075 = vcvt.f32.s32 %v1069
        %v1076 = vshll.u32 %v1075, 16
        %v1077 = vadd.s32 %v1076, %v1074
        %v1078 = vand.u32 %v1010, 65535
        %v1079 = vshra.s32 %v1010, 16
        %v1080 = vcvt.s32.f32 %v1078
        %v1081 = vcvt.s32.f32 %v1079
        %1082 = vmin.xlane.f32.xlu0 %v1081
        %v1083 = vpop.xlane.xlu0 %1082
        %vm1084 = vcmp.eq.f32.partialorder %v1081, %v1083
        %v1085 = vsel %vm1084, %v1080, inf
        %1086 = vmin.xlane.f32.xlu0 %v1085
        %v1087 = vpop.xlane.xlu0 %1086
        %v1088 = vcvt.f32.s32 %v1087
        %v1089 = vcvt.f32.s32 %v1083
        %v1090 = vshll.u32 %v1089, 16
        %v1091 = vadd.s32 %v1090, %v1088
        %v1092 = vand.u32 %v1011, 65535
        %v1093 = vshra.s32 %v1011, 16
        %v1094 = vcvt.s32.f32 %v1092
        %v1095 = vcvt.s32.f32 %v1093
        %1096 = vmin.xlane.f32.xlu0 %v1095
        %v1097 = vpop.xlane.xlu0 %1096
        %vm1098 = vcmp.eq.f32.partialorder %v1095, %v1097
        %v1099 = vsel %vm1098, %v1094, inf
        %1100 = vmin.xlane.f32.xlu0 %v1099
        %v1101 = vpop.xlane.xlu0 %1100
        %v1102 = vcvt.f32.s32 %v1101
        %v1103 = vcvt.f32.s32 %v1097
        %v1104 = vshll.u32 %v1103, 16
        %v1105 = vadd.s32 %v1104, %v1102
        %v1106 = vand.u32 %v1012, 65535
        %v1107 = vshra.s32 %v1012, 16
        %v1108 = vcvt.s32.f32 %v1106
        %v1109 = vcvt.s32.f32 %v1107
        %1110 = vmin.xlane.f32.xlu0 %v1109
        %v1111 = vpop.xlane.xlu0 %1110
        %vm1112 = vcmp.eq.f32.partialorder %v1109, %v1111
        %v1113 = vsel %vm1112, %v1108, inf
        %1114 = vmin.xlane.f32.xlu0 %v1113
        %v1115 = vpop.xlane.xlu0 %1114
        %v1116 = vcvt.f32.s32 %v1115
        %v1117 = vcvt.f32.s32 %v1111
        %v1118 = vshll.u32 %v1117, 16
        %v1119 = vadd.s32 %v1118, %v1116
        %v1120 = vand.u32 %v1013, 65535
        %v1121 = vshra.s32 %v1013, 16
        %v1122 = vcvt.s32.f32 %v1120
        %v1123 = vcvt.s32.f32 %v1121
        %1124 = vmin.xlane.f32.xlu0 %v1123
        %v1125 = vpop.xlane.xlu0 %1124
        %vm1126 = vcmp.eq.f32.partialorder %v1123, %v1125
        %v1127 = vsel %vm1126, %v1122, inf
        %1128 = vmin.xlane.f32.xlu0 %v1127
        %v1129 = vpop.xlane.xlu0 %1128
        %v1130 = vcvt.f32.s32 %v1129
        %v1131 = vcvt.f32.s32 %v1125
        %v1132 = vshll.u32 %v1131, 16
        %v1133 = vadd.s32 %v1132, %v1130
        %v1134 = vand.u32 %v1014, 65535
        %v1135 = vshra.s32 %v1014, 16
        %v1136 = vcvt.s32.f32 %v1134
        %v1137 = vcvt.s32.f32 %v1135
        %1138 = vmin.xlane.f32.xlu0 %v1137
        %v1139 = vpop.xlane.xlu0 %1138
        %vm1140 = vcmp.eq.f32.partialorder %v1137, %v1139
        %v1141 = vsel %vm1140, %v1136, inf
        %1142 = vmin.xlane.f32.xlu0 %v1141
        %v1143 = vpop.xlane.xlu0 %1142
        %v1144 = vcvt.f32.s32 %v1143
        %v1145 = vcvt.f32.s32 %v1139
        %v1146 = vshll.u32 %v1145, 16
        %v1147 = vadd.s32 %v1146, %v1144
        %v1148 = vand.u32 %v1015, 65535
        %v1149 = vshra.s32 %v1015, 16
        %v1150 = vcvt.s32.f32 %v1148
        %v1151 = vcvt.s32.f32 %v1149
        %1152 = vmin.xlane.f32.xlu0 %v1151
        %v1153 = vpop.xlane.xlu0 %1152
        %vm1154 = vcmp.eq.f32.partialorder %v1151, %v1153
        %v1155 = vsel %vm1154, %v1150, inf
        %1156 = vmin.xlane.f32.xlu0 %v1155
        %v1157 = vpop.xlane.xlu0 %1156
        %v1158 = vcvt.f32.s32 %v1157
        %v1159 = vcvt.f32.s32 %v1153
        %v1160 = vshll.u32 %v1159, 16
        %v1161 = vadd.s32 %v1160, %v1158
        %v1162 = vand.u32 %v1016, 65535
        %v1163 = vshra.s32 %v1016, 16
        %v1164 = vcvt.s32.f32 %v1162
        %v1165 = vcvt.s32.f32 %v1163
        %1166 = vmin.xlane.f32.xlu0 %v1165
        %v1167 = vpop.xlane.xlu0 %1166
        %vm1168 = vcmp.eq.f32.partialorder %v1165, %v1167
        %v1169 = vsel %vm1168, %v1164, inf
        %1170 = vmin.xlane.f32.xlu0 %v1169
        %v1171 = vpop.xlane.xlu0 %1170
        %v1172 = vcvt.f32.s32 %v1171
        %v1173 = vcvt.f32.s32 %v1167
        %v1174 = vshll.u32 %v1173, 16
        %v1175 = vadd.s32 %v1174, %v1172
        %v1176 = vand.u32 %v1017, 65535
        %v1177 = vshra.s32 %v1017, 16
        %v1178 = vcvt.s32.f32 %v1176
        %v1179 = vcvt.s32.f32 %v1177
        %1180 = vmin.xlane.f32.xlu0 %v1179
        %v1181 = vpop.xlane.xlu0 %1180
        %vm1182 = vcmp.eq.f32.partialorder %v1179, %v1181
        %v1183 = vsel %vm1182, %v1178, inf
        %1184 = vmin.xlane.f32.xlu0 %v1183
        %v1185 = vpop.xlane.xlu0 %1184
        %v1186 = vcvt.f32.s32 %v1185
        %v1187 = vcvt.f32.s32 %v1181
        %v1188 = vshll.u32 %v1187, 16
        %v1189 = vadd.s32 %v1188, %v1186
        %v1190 = vand.u32 %v1018, 65535
        %v1191 = vshra.s32 %v1018, 16
        %v1192 = vcvt.s32.f32 %v1190
        %v1193 = vcvt.s32.f32 %v1191
        %1194 = vmin.xlane.f32.xlu0 %v1193
        %v1195 = vpop.xlane.xlu0 %1194
        %vm1196 = vcmp.eq.f32.partialorder %v1193, %v1195
        %v1197 = vsel %vm1196, %v1192, inf
        %1198 = vmin.xlane.f32.xlu0 %v1197
        %v1199 = vpop.xlane.xlu0 %1198
        %v1200 = vcvt.f32.s32 %v1199
        %v1201 = vcvt.f32.s32 %v1195
        %v1202 = vshll.u32 %v1201, 16
        %v1203 = vadd.s32 %v1202, %v1200
        %v1204 = vand.u32 %v1019, 65535
        %v1205 = vshra.s32 %v1019, 16
        %v1206 = vcvt.s32.f32 %v1204
        %v1207 = vcvt.s32.f32 %v1205
        %1208 = vmin.xlane.f32.xlu0 %v1207
        %v1209 = vpop.xlane.xlu0 %1208
        %vm1210 = vcmp.eq.f32.partialorder %v1207, %v1209
        %v1211 = vsel %vm1210, %v1206, inf
        %1212 = vmin.xlane.f32.xlu0 %v1211
        %v1213 = vpop.xlane.xlu0 %1212
        %v1214 = vcvt.f32.s32 %v1213
        %v1215 = vcvt.f32.s32 %v1209
        %v1216 = vshll.u32 %v1215, 16
        %v1217 = vadd.s32 %v1216, %v1214
        %v1218 = vand.u32 %v1020, 65535
        %v1219 = vshra.s32 %v1020, 16
        %v1220 = vcvt.s32.f32 %v1218
        %v1221 = vcvt.s32.f32 %v1219
        %1222 = vmin.xlane.f32.xlu0 %v1221
        %v1223 = vpop.xlane.xlu0 %1222
        %vm1224 = vcmp.eq.f32.partialorder %v1221, %v1223
        %v1225 = vsel %vm1224, %v1220, inf
        %1226 = vmin.xlane.f32.xlu0 %v1225
        %v1227 = vpop.xlane.xlu0 %1226
        %v1228 = vcvt.f32.s32 %v1227
        %v1229 = vcvt.f32.s32 %v1223
        %v1230 = vshll.u32 %v1229, 16
        %v1231 = vadd.s32 %v1230, %v1228
        %v1232 = vand.u32 %v1021, 65535
        %v1233 = vshra.s32 %v1021, 16
        %v1234 = vcvt.s32.f32 %v1232
        %v1235 = vcvt.s32.f32 %v1233
        %1236 = vmin.xlane.f32.xlu0 %v1235
        %v1237 = vpop.xlane.xlu0 %1236
        %vm1238 = vcmp.eq.f32.partialorder %v1235, %v1237
        %v1239 = vsel %vm1238, %v1234, inf
        %1240 = vmin.xlane.f32.xlu0 %v1239
        %v1241 = vpop.xlane.xlu0 %1240
        %v1242 = vcvt.f32.s32 %v1241
        %v1243 = vcvt.f32.s32 %v1237
        %v1244 = vshll.u32 %v1243, 16
        %v1245 = vadd.s32 %v1244, %v1242
        %vm1246 = vcmp.eq.s32.totalorder %v956, 2
        %vm1247 = vcmp.eq.s32.totalorder %v957, 2
        %vm1248 = vcmp.eq.s32.totalorder %v958, 2
        %vm1249 = vcmp.eq.s32.totalorder %v959, 2
        %vm1250 = vcmp.eq.s32.totalorder %v960, 2
        %vm1251 = vcmp.eq.s32.totalorder %v961, 2
        %vm1252 = vcmp.eq.s32.totalorder %v962, 2
        %vm1253 = vcmp.eq.s32.totalorder %v963, 2
        %vm1254 = vcmp.eq.s32.totalorder %v964, 2
        %vm1255 = vcmp.eq.s32.totalorder %v965, 2
        %vm1256 = vcmp.eq.s32.totalorder %v966, 2
        %vm1257 = vcmp.eq.s32.totalorder %v967, 2
        %vm1258 = vcmp.eq.s32.totalorder %v968, 2
        %vm1259 = vcmp.eq.s32.totalorder %v969, 2
        %vm1260 = vcmp.eq.s32.totalorder %v970, 2
        %vm1261 = vcmp.eq.s32.totalorder %v971, 2
        %v1262 = vsel %vm1246, %v974, 128
        %v1263 = vsel %vm1247, %v975, 128
        %v1264 = vsel %vm1248, %v976, 128
        %v1265 = vsel %vm1249, %v977, 128
        %v1266 = vsel %vm1250, %v978, 128
        %v1267 = vsel %vm1251, %v979, 128
        %v1268 = vsel %vm1252, %v980, 128
        %v1269 = vsel %vm1253, %v981, 128
        %v1270 = vsel %vm1254, %v982, 128
        %v1271 = vsel %vm1255, %v983, 128
        %v1272 = vsel %vm1256, %v984, 128
        %v1273 = vsel %vm1257, %v985, 128
        %v1274 = vsel %vm1258, %v986, 128
        %v1275 = vsel %vm1259, %v987, 128
        %v1276 = vsel %vm1260, %v988, 128
        %v1277 = vsel %vm1261, %v989, 128
        %v1278 = vand.u32 %v1262, 65535
        %v1279 = vshra.s32 %v1262, 16
        %v1280 = vcvt.s32.f32 %v1278
        %v1281 = vcvt.s32.f32 %v1279
        %1282 = vmin.xlane.f32.xlu0 %v1281
        %v1283 = vpop.xlane.xlu0 %1282
        %vm1284 = vcmp.eq.f32.partialorder %v1281, %v1283
        %v1285 = vsel %vm1284, %v1280, inf
        %1286 = vmin.xlane.f32.xlu0 %v1285
        %v1287 = vpop.xlane.xlu0 %1286
        %v1288 = vcvt.f32.s32 %v1287
        %v1289 = vcvt.f32.s32 %v1283
        %v1290 = vshll.u32 %v1289, 16
        %v1291 = vadd.s32 %v1290, %v1288
        %v1292 = vand.u32 %v1263, 65535
        %v1293 = vshra.s32 %v1263, 16
        %v1294 = vcvt.s32.f32 %v1292
        %v1295 = vcvt.s32.f32 %v1293
        %1296 = vmin.xlane.f32.xlu0 %v1295
        %v1297 = vpop.xlane.xlu0 %1296
        %vm1298 = vcmp.eq.f32.partialorder %v1295, %v1297
        %v1299 = vsel %vm1298, %v1294, inf
        %1300 = vmin.xlane.f32.xlu0 %v1299
        %v1301 = vpop.xlane.xlu0 %1300
        %v1302 = vcvt.f32.s32 %v1301
        %v1303 = vcvt.f32.s32 %v1297
        %v1304 = vshll.u32 %v1303, 16
        %v1305 = vadd.s32 %v1304, %v1302
        %v1306 = vand.u32 %v1264, 65535
        %v1307 = vshra.s32 %v1264, 16
        %v1308 = vcvt.s32.f32 %v1306
        %v1309 = vcvt.s32.f32 %v1307
        %1310 = vmin.xlane.f32.xlu0 %v1309
        %v1311 = vpop.xlane.xlu0 %1310
        %vm1312 = vcmp.eq.f32.partialorder %v1309, %v1311
        %v1313 = vsel %vm1312, %v1308, inf
        %1314 = vmin.xlane.f32.xlu0 %v1313
        %v1315 = vpop.xlane.xlu0 %1314
        %v1316 = vcvt.f32.s32 %v1315
        %v1317 = vcvt.f32.s32 %v1311
        %v1318 = vshll.u32 %v1317, 16
        %v1319 = vadd.s32 %v1318, %v1316
        %v1320 = vand.u32 %v1265, 65535
        %v1321 = vshra.s32 %v1265, 16
        %v1322 = vcvt.s32.f32 %v1320
        %v1323 = vcvt.s32.f32 %v1321
        %1324 = vmin.xlane.f32.xlu0 %v1323
        %v1325 = vpop.xlane.xlu0 %1324
        %vm1326 = vcmp.eq.f32.partialorder %v1323, %v1325
        %v1327 = vsel %vm1326, %v1322, inf
        %1328 = vmin.xlane.f32.xlu0 %v1327
        %v1329 = vpop.xlane.xlu0 %1328
        %v1330 = vcvt.f32.s32 %v1329
        %v1331 = vcvt.f32.s32 %v1325
        %v1332 = vshll.u32 %v1331, 16
        %v1333 = vadd.s32 %v1332, %v1330
        %v1334 = vand.u32 %v1266, 65535
        %v1335 = vshra.s32 %v1266, 16
        %v1336 = vcvt.s32.f32 %v1334
        %v1337 = vcvt.s32.f32 %v1335
        %1338 = vmin.xlane.f32.xlu0 %v1337
        %v1339 = vpop.xlane.xlu0 %1338
        %vm1340 = vcmp.eq.f32.partialorder %v1337, %v1339
        %v1341 = vsel %vm1340, %v1336, inf
        %1342 = vmin.xlane.f32.xlu0 %v1341
        %v1343 = vpop.xlane.xlu0 %1342
        %v1344 = vcvt.f32.s32 %v1343
        %v1345 = vcvt.f32.s32 %v1339
        %v1346 = vshll.u32 %v1345, 16
        %v1347 = vadd.s32 %v1346, %v1344
        %v1348 = vand.u32 %v1267, 65535
        %v1349 = vshra.s32 %v1267, 16
        %v1350 = vcvt.s32.f32 %v1348
        %v1351 = vcvt.s32.f32 %v1349
        %1352 = vmin.xlane.f32.xlu0 %v1351
        %v1353 = vpop.xlane.xlu0 %1352
        %vm1354 = vcmp.eq.f32.partialorder %v1351, %v1353
        %v1355 = vsel %vm1354, %v1350, inf
        %1356 = vmin.xlane.f32.xlu0 %v1355
        %v1357 = vpop.xlane.xlu0 %1356
        %v1358 = vcvt.f32.s32 %v1357
        %v1359 = vcvt.f32.s32 %v1353
        %v1360 = vshll.u32 %v1359, 16
        %v1361 = vadd.s32 %v1360, %v1358
        %v1362 = vand.u32 %v1268, 65535
        %v1363 = vshra.s32 %v1268, 16
        %v1364 = vcvt.s32.f32 %v1362
        %v1365 = vcvt.s32.f32 %v1363
        %1366 = vmin.xlane.f32.xlu0 %v1365
        %v1367 = vpop.xlane.xlu0 %1366
        %vm1368 = vcmp.eq.f32.partialorder %v1365, %v1367
        %v1369 = vsel %vm1368, %v1364, inf
        %1370 = vmin.xlane.f32.xlu0 %v1369
        %v1371 = vpop.xlane.xlu0 %1370
        %v1372 = vcvt.f32.s32 %v1371
        %v1373 = vcvt.f32.s32 %v1367
        %v1374 = vshll.u32 %v1373, 16
        %v1375 = vadd.s32 %v1374, %v1372
        %v1376 = vand.u32 %v1269, 65535
        %v1377 = vshra.s32 %v1269, 16
        %v1378 = vcvt.s32.f32 %v1376
        %v1379 = vcvt.s32.f32 %v1377
        %1380 = vmin.xlane.f32.xlu0 %v1379
        %v1381 = vpop.xlane.xlu0 %1380
        %vm1382 = vcmp.eq.f32.partialorder %v1379, %v1381
        %v1383 = vsel %vm1382, %v1378, inf
        %1384 = vmin.xlane.f32.xlu0 %v1383
        %v1385 = vpop.xlane.xlu0 %1384
        %v1386 = vcvt.f32.s32 %v1385
        %v1387 = vcvt.f32.s32 %v1381
        %v1388 = vshll.u32 %v1387, 16
        %v1389 = vadd.s32 %v1388, %v1386
        %v1390 = vand.u32 %v1270, 65535
        %v1391 = vshra.s32 %v1270, 16
        %v1392 = vcvt.s32.f32 %v1390
        %v1393 = vcvt.s32.f32 %v1391
        %1394 = vmin.xlane.f32.xlu0 %v1393
        %v1395 = vpop.xlane.xlu0 %1394
        %vm1396 = vcmp.eq.f32.partialorder %v1393, %v1395
        %v1397 = vsel %vm1396, %v1392, inf
        %1398 = vmin.xlane.f32.xlu0 %v1397
        %v1399 = vpop.xlane.xlu0 %1398
        %v1400 = vcvt.f32.s32 %v1399
        %v1401 = vcvt.f32.s32 %v1395
        %v1402 = vshll.u32 %v1401, 16
        %v1403 = vadd.s32 %v1402, %v1400
        %v1404 = vand.u32 %v1271, 65535
        %v1405 = vshra.s32 %v1271, 16
        %v1406 = vcvt.s32.f32 %v1404
        %v1407 = vcvt.s32.f32 %v1405
        %1408 = vmin.xlane.f32.xlu0 %v1407
        %v1409 = vpop.xlane.xlu0 %1408
        %vm1410 = vcmp.eq.f32.partialorder %v1407, %v1409
        %v1411 = vsel %vm1410, %v1406, inf
        %1412 = vmin.xlane.f32.xlu0 %v1411
        %v1413 = vpop.xlane.xlu0 %1412
        %v1414 = vcvt.f32.s32 %v1413
        %v1415 = vcvt.f32.s32 %v1409
        %v1416 = vshll.u32 %v1415, 16
        %v1417 = vadd.s32 %v1416, %v1414
        %v1418 = vand.u32 %v1272, 65535
        %v1419 = vshra.s32 %v1272, 16
        %v1420 = vcvt.s32.f32 %v1418
        %v1421 = vcvt.s32.f32 %v1419
        %1422 = vmin.xlane.f32.xlu0 %v1421
        %v1423 = vpop.xlane.xlu0 %1422
        %vm1424 = vcmp.eq.f32.partialorder %v1421, %v1423
        %v1425 = vsel %vm1424, %v1420, inf
        %1426 = vmin.xlane.f32.xlu0 %v1425
        %v1427 = vpop.xlane.xlu0 %1426
        %v1428 = vcvt.f32.s32 %v1427
        %v1429 = vcvt.f32.s32 %v1423
        %v1430 = vshll.u32 %v1429, 16
        %v1431 = vadd.s32 %v1430, %v1428
        %v1432 = vand.u32 %v1273, 65535
        %v1433 = vshra.s32 %v1273, 16
        %v1434 = vcvt.s32.f32 %v1432
        %v1435 = vcvt.s32.f32 %v1433
        %1436 = vmin.xlane.f32.xlu0 %v1435
        %v1437 = vpop.xlane.xlu0 %1436
        %vm1438 = vcmp.eq.f32.partialorder %v1435, %v1437
        %v1439 = vsel %vm1438, %v1434, inf
        %1440 = vmin.xlane.f32.xlu0 %v1439
        %v1441 = vpop.xlane.xlu0 %1440
        %v1442 = vcvt.f32.s32 %v1441
        %v1443 = vcvt.f32.s32 %v1437
        %v1444 = vshll.u32 %v1443, 16
        %v1445 = vadd.s32 %v1444, %v1442
        %v1446 = vand.u32 %v1274, 65535
        %v1447 = vshra.s32 %v1274, 16
        %v1448 = vcvt.s32.f32 %v1446
        %v1449 = vcvt.s32.f32 %v1447
        %1450 = vmin.xlane.f32.xlu0 %v1449
        %v1451 = vpop.xlane.xlu0 %1450
        %vm1452 = vcmp.eq.f32.partialorder %v1449, %v1451
        %v1453 = vsel %vm1452, %v1448, inf
        %1454 = vmin.xlane.f32.xlu0 %v1453
        %v1455 = vpop.xlane.xlu0 %1454
        %v1456 = vcvt.f32.s32 %v1455
        %v1457 = vcvt.f32.s32 %v1451
        %v1458 = vshll.u32 %v1457, 16
        %v1459 = vadd.s32 %v1458, %v1456
        %v1460 = vand.u32 %v1275, 65535
        %v1461 = vshra.s32 %v1275, 16
        %v1462 = vcvt.s32.f32 %v1460
        %v1463 = vcvt.s32.f32 %v1461
        %1464 = vmin.xlane.f32.xlu0 %v1463
        %v1465 = vpop.xlane.xlu0 %1464
        %vm1466 = vcmp.eq.f32.partialorder %v1463, %v1465
        %v1467 = vsel %vm1466, %v1462, inf
        %1468 = vmin.xlane.f32.xlu0 %v1467
        %v1469 = vpop.xlane.xlu0 %1468
        %v1470 = vcvt.f32.s32 %v1469
        %v1471 = vcvt.f32.s32 %v1465
        %v1472 = vshll.u32 %v1471, 16
        %v1473 = vadd.s32 %v1472, %v1470
        %v1474 = vand.u32 %v1276, 65535
        %v1475 = vshra.s32 %v1276, 16
        %v1476 = vcvt.s32.f32 %v1474
        %v1477 = vcvt.s32.f32 %v1475
        %1478 = vmin.xlane.f32.xlu0 %v1477
        %v1479 = vpop.xlane.xlu0 %1478
        %vm1480 = vcmp.eq.f32.partialorder %v1477, %v1479
        %v1481 = vsel %vm1480, %v1476, inf
        %1482 = vmin.xlane.f32.xlu0 %v1481
        %v1483 = vpop.xlane.xlu0 %1482
        %v1484 = vcvt.f32.s32 %v1483
        %v1485 = vcvt.f32.s32 %v1479
        %v1486 = vshll.u32 %v1485, 16
        %v1487 = vadd.s32 %v1486, %v1484
        %v1488 = vand.u32 %v1277, 65535
        %v1489 = vshra.s32 %v1277, 16
        %v1490 = vcvt.s32.f32 %v1488
        %v1491 = vcvt.s32.f32 %v1489
        %1492 = vmin.xlane.f32.xlu0 %v1491
        %v1493 = vpop.xlane.xlu0 %1492
        %vm1494 = vcmp.eq.f32.partialorder %v1491, %v1493
        %v1495 = vsel %vm1494, %v1490, inf
        %1496 = vmin.xlane.f32.xlu0 %v1495
        %v1497 = vpop.xlane.xlu0 %1496
        %v1498 = vcvt.f32.s32 %v1497
        %v1499 = vcvt.f32.s32 %v1493
        %v1500 = vshll.u32 %v1499, 16
        %v1501 = vadd.s32 %v1500, %v1498
        %vm1502 = vcmp.eq.s32.totalorder %v956, 3
        %vm1503 = vcmp.eq.s32.totalorder %v957, 3
        %vm1504 = vcmp.eq.s32.totalorder %v958, 3
        %vm1505 = vcmp.eq.s32.totalorder %v959, 3
        %vm1506 = vcmp.eq.s32.totalorder %v960, 3
        %vm1507 = vcmp.eq.s32.totalorder %v961, 3
        %vm1508 = vcmp.eq.s32.totalorder %v962, 3
        %vm1509 = vcmp.eq.s32.totalorder %v963, 3
        %vm1510 = vcmp.eq.s32.totalorder %v964, 3
        %vm1511 = vcmp.eq.s32.totalorder %v965, 3
        %vm1512 = vcmp.eq.s32.totalorder %v966, 3
        %vm1513 = vcmp.eq.s32.totalorder %v967, 3
        %vm1514 = vcmp.eq.s32.totalorder %v968, 3
        %vm1515 = vcmp.eq.s32.totalorder %v969, 3
        %vm1516 = vcmp.eq.s32.totalorder %v970, 3
        %vm1517 = vcmp.eq.s32.totalorder %v971, 3
        %v1518 = vsel %vm1502, %v974, 128
        %v1519 = vsel %vm1503, %v975, 128
        %v1520 = vsel %vm1504, %v976, 128
        %v1521 = vsel %vm1505, %v977, 128
        %v1522 = vsel %vm1506, %v978, 128
        %v1523 = vsel %vm1507, %v979, 128
        %v1524 = vsel %vm1508, %v980, 128
        %v1525 = vsel %vm1509, %v981, 128
        %v1526 = vsel %vm1510, %v982, 128
        %v1527 = vsel %vm1511, %v983, 128
        %v1528 = vsel %vm1512, %v984, 128
        %v1529 = vsel %vm1513, %v985, 128
        %v1530 = vsel %vm1514, %v986, 128
        %v1531 = vsel %vm1515, %v987, 128
        %v1532 = vsel %vm1516, %v988, 128
        %v1533 = vsel %vm1517, %v989, 128
        %v1534 = vand.u32 %v1518, 65535
        %v1535 = vshra.s32 %v1518, 16
        %v1536 = vcvt.s32.f32 %v1534
        %v1537 = vcvt.s32.f32 %v1535
        %1538 = vmin.xlane.f32.xlu0 %v1537
        %v1539 = vpop.xlane.xlu0 %1538
        %vm1540 = vcmp.eq.f32.partialorder %v1537, %v1539
        %v1541 = vsel %vm1540, %v1536, inf
        %1542 = vmin.xlane.f32.xlu0 %v1541
        %v1543 = vpop.xlane.xlu0 %1542
        %v1544 = vcvt.f32.s32 %v1543
        %v1545 = vcvt.f32.s32 %v1539
        %v1546 = vshll.u32 %v1545, 16
        %v1547 = vadd.s32 %v1546, %v1544
        %v1548 = vand.u32 %v1519, 65535
        %v1549 = vshra.s32 %v1519, 16
        %v1550 = vcvt.s32.f32 %v1548
        %v1551 = vcvt.s32.f32 %v1549
        %1552 = vmin.xlane.f32.xlu0 %v1551
        %v1553 = vpop.xlane.xlu0 %1552
        %vm1554 = vcmp.eq.f32.partialorder %v1551, %v1553
        %v1555 = vsel %vm1554, %v1550, inf
        %1556 = vmin.xlane.f32.xlu0 %v1555
        %v1557 = vpop.xlane.xlu0 %1556
        %v1558 = vcvt.f32.s32 %v1557
        %v1559 = vcvt.f32.s32 %v1553
        %v1560 = vshll.u32 %v1559, 16
        %v1561 = vadd.s32 %v1560, %v1558
        %v1562 = vand.u32 %v1520, 65535
        %v1563 = vshra.s32 %v1520, 16
        %v1564 = vcvt.s32.f32 %v1562
        %v1565 = vcvt.s32.f32 %v1563
        %1566 = vmin.xlane.f32.xlu0 %v1565
        %v1567 = vpop.xlane.xlu0 %1566
        %vm1568 = vcmp.eq.f32.partialorder %v1565, %v1567
        %v1569 = vsel %vm1568, %v1564, inf
        %1570 = vmin.xlane.f32.xlu0 %v1569
        %v1571 = vpop.xlane.xlu0 %1570
        %v1572 = vcvt.f32.s32 %v1571
        %v1573 = vcvt.f32.s32 %v1567
        %v1574 = vshll.u32 %v1573, 16
        %v1575 = vadd.s32 %v1574, %v1572
        %v1576 = vand.u32 %v1521, 65535
        %v1577 = vshra.s32 %v1521, 16
        %v1578 = vcvt.s32.f32 %v1576
        %v1579 = vcvt.s32.f32 %v1577
        %1580 = vmin.xlane.f32.xlu0 %v1579
        %v1581 = vpop.xlane.xlu0 %1580
        %vm1582 = vcmp.eq.f32.partialorder %v1579, %v1581
        %v1583 = vsel %vm1582, %v1578, inf
        %1584 = vmin.xlane.f32.xlu0 %v1583
        %v1585 = vpop.xlane.xlu0 %1584
        %v1586 = vcvt.f32.s32 %v1585
        %v1587 = vcvt.f32.s32 %v1581
        %v1588 = vshll.u32 %v1587, 16
        %v1589 = vadd.s32 %v1588, %v1586
        %v1590 = vand.u32 %v1522, 65535
        %v1591 = vshra.s32 %v1522, 16
        %v1592 = vcvt.s32.f32 %v1590
        %v1593 = vcvt.s32.f32 %v1591
        %1594 = vmin.xlane.f32.xlu0 %v1593
        %v1595 = vpop.xlane.xlu0 %1594
        %vm1596 = vcmp.eq.f32.partialorder %v1593, %v1595
        %v1597 = vsel %vm1596, %v1592, inf
        %1598 = vmin.xlane.f32.xlu0 %v1597
        %v1599 = vpop.xlane.xlu0 %1598
        %v1600 = vcvt.f32.s32 %v1599
        %v1601 = vcvt.f32.s32 %v1595
        %v1602 = vshll.u32 %v1601, 16
        %v1603 = vadd.s32 %v1602, %v1600
        %v1604 = vand.u32 %v1523, 65535
        %v1605 = vshra.s32 %v1523, 16
        %v1606 = vcvt.s32.f32 %v1604
        %v1607 = vcvt.s32.f32 %v1605
        %1608 = vmin.xlane.f32.xlu0 %v1607
        %v1609 = vpop.xlane.xlu0 %1608
        %vm1610 = vcmp.eq.f32.partialorder %v1607, %v1609
        %v1611 = vsel %vm1610, %v1606, inf
        %1612 = vmin.xlane.f32.xlu0 %v1611
        %v1613 = vpop.xlane.xlu0 %1612
        %v1614 = vcvt.f32.s32 %v1613
        %v1615 = vcvt.f32.s32 %v1609
        %v1616 = vshll.u32 %v1615, 16
        %v1617 = vadd.s32 %v1616, %v1614
        %v1618 = vand.u32 %v1524, 65535
        %v1619 = vshra.s32 %v1524, 16
        %v1620 = vcvt.s32.f32 %v1618
        %v1621 = vcvt.s32.f32 %v1619
        %1622 = vmin.xlane.f32.xlu0 %v1621
        %v1623 = vpop.xlane.xlu0 %1622
        %vm1624 = vcmp.eq.f32.partialorder %v1621, %v1623
        %v1625 = vsel %vm1624, %v1620, inf
        %1626 = vmin.xlane.f32.xlu0 %v1625
        %v1627 = vpop.xlane.xlu0 %1626
        %v1628 = vcvt.f32.s32 %v1627
        %v1629 = vcvt.f32.s32 %v1623
        %v1630 = vshll.u32 %v1629, 16
        %v1631 = vadd.s32 %v1630, %v1628
        %v1632 = vand.u32 %v1525, 65535
        %v1633 = vshra.s32 %v1525, 16
        %v1634 = vcvt.s32.f32 %v1632
        %v1635 = vcvt.s32.f32 %v1633
        %1636 = vmin.xlane.f32.xlu0 %v1635
        %v1637 = vpop.xlane.xlu0 %1636
        %vm1638 = vcmp.eq.f32.partialorder %v1635, %v1637
        %v1639 = vsel %vm1638, %v1634, inf
        %1640 = vmin.xlane.f32.xlu0 %v1639
        %v1641 = vpop.xlane.xlu0 %1640
        %v1642 = vcvt.f32.s32 %v1641
        %v1643 = vcvt.f32.s32 %v1637
        %v1644 = vshll.u32 %v1643, 16
        %v1645 = vadd.s32 %v1644, %v1642
        %v1646 = vand.u32 %v1526, 65535
        %v1647 = vshra.s32 %v1526, 16
        %v1648 = vcvt.s32.f32 %v1646
        %v1649 = vcvt.s32.f32 %v1647
        %1650 = vmin.xlane.f32.xlu0 %v1649
        %v1651 = vpop.xlane.xlu0 %1650
        %vm1652 = vcmp.eq.f32.partialorder %v1649, %v1651
        %v1653 = vsel %vm1652, %v1648, inf
        %1654 = vmin.xlane.f32.xlu0 %v1653
        %v1655 = vpop.xlane.xlu0 %1654
        %v1656 = vcvt.f32.s32 %v1655
        %v1657 = vcvt.f32.s32 %v1651
        %v1658 = vshll.u32 %v1657, 16
        %v1659 = vadd.s32 %v1658, %v1656
        %v1660 = vand.u32 %v1527, 65535
        %v1661 = vshra.s32 %v1527, 16
        %v1662 = vcvt.s32.f32 %v1660
        %v1663 = vcvt.s32.f32 %v1661
        %1664 = vmin.xlane.f32.xlu0 %v1663
        %v1665 = vpop.xlane.xlu0 %1664
        %vm1666 = vcmp.eq.f32.partialorder %v1663, %v1665
        %v1667 = vsel %vm1666, %v1662, inf
        %1668 = vmin.xlane.f32.xlu0 %v1667
        %v1669 = vpop.xlane.xlu0 %1668
        %v1670 = vcvt.f32.s32 %v1669
        %v1671 = vcvt.f32.s32 %v1665
        %v1672 = vshll.u32 %v1671, 16
        %v1673 = vadd.s32 %v1672, %v1670
        %v1674 = vand.u32 %v1528, 65535
        %v1675 = vshra.s32 %v1528, 16
        %v1676 = vcvt.s32.f32 %v1674
        %v1677 = vcvt.s32.f32 %v1675
        %1678 = vmin.xlane.f32.xlu0 %v1677
        %v1679 = vpop.xlane.xlu0 %1678
        %vm1680 = vcmp.eq.f32.partialorder %v1677, %v1679
        %v1681 = vsel %vm1680, %v1676, inf
        %1682 = vmin.xlane.f32.xlu0 %v1681
        %v1683 = vpop.xlane.xlu0 %1682
        %v1684 = vcvt.f32.s32 %v1683
        %v1685 = vcvt.f32.s32 %v1679
        %v1686 = vshll.u32 %v1685, 16
        %v1687 = vadd.s32 %v1686, %v1684
        %v1688 = vand.u32 %v1529, 65535
        %v1689 = vshra.s32 %v1529, 16
        %v1690 = vcvt.s32.f32 %v1688
        %v1691 = vcvt.s32.f32 %v1689
        %1692 = vmin.xlane.f32.xlu0 %v1691
        %v1693 = vpop.xlane.xlu0 %1692
        %vm1694 = vcmp.eq.f32.partialorder %v1691, %v1693
        %v1695 = vsel %vm1694, %v1690, inf
        %1696 = vmin.xlane.f32.xlu0 %v1695
        %v1697 = vpop.xlane.xlu0 %1696
        %v1698 = vcvt.f32.s32 %v1697
        %v1699 = vcvt.f32.s32 %v1693
        %v1700 = vshll.u32 %v1699, 16
        %v1701 = vadd.s32 %v1700, %v1698
        %v1702 = vand.u32 %v1530, 65535
        %v1703 = vshra.s32 %v1530, 16
        %v1704 = vcvt.s32.f32 %v1702
        %v1705 = vcvt.s32.f32 %v1703
        %1706 = vmin.xlane.f32.xlu0 %v1705
        %v1707 = vpop.xlane.xlu0 %1706
        %vm1708 = vcmp.eq.f32.partialorder %v1705, %v1707
        %v1709 = vsel %vm1708, %v1704, inf
        %1710 = vmin.xlane.f32.xlu0 %v1709
        %v1711 = vpop.xlane.xlu0 %1710
        %v1712 = vcvt.f32.s32 %v1711
        %v1713 = vcvt.f32.s32 %v1707
        %v1714 = vshll.u32 %v1713, 16
        %v1715 = vadd.s32 %v1714, %v1712
        %v1716 = vand.u32 %v1531, 65535
        %v1717 = vshra.s32 %v1531, 16
        %v1718 = vcvt.s32.f32 %v1716
        %v1719 = vcvt.s32.f32 %v1717
        %1720 = vmin.xlane.f32.xlu0 %v1719
        %v1721 = vpop.xlane.xlu0 %1720
        %vm1722 = vcmp.eq.f32.partialorder %v1719, %v1721
        %v1723 = vsel %vm1722, %v1718, inf
        %1724 = vmin.xlane.f32.xlu0 %v1723
        %v1725 = vpop.xlane.xlu0 %1724
        %v1726 = vcvt.f32.s32 %v1725
        %v1727 = vcvt.f32.s32 %v1721
        %v1728 = vshll.u32 %v1727, 16
        %v1729 = vadd.s32 %v1728, %v1726
        %v1730 = vand.u32 %v1532, 65535
        %v1731 = vshra.s32 %v1532, 16
        %v1732 = vcvt.s32.f32 %v1730
        %v1733 = vcvt.s32.f32 %v1731
        %1734 = vmin.xlane.f32.xlu0 %v1733
        %v1735 = vpop.xlane.xlu0 %1734
        %vm1736 = vcmp.eq.f32.partialorder %v1733, %v1735
        %v1737 = vsel %vm1736, %v1732, inf
        %1738 = vmin.xlane.f32.xlu0 %v1737
        %v1739 = vpop.xlane.xlu0 %1738
        %v1740 = vcvt.f32.s32 %v1739
        %v1741 = vcvt.f32.s32 %v1735
        %v1742 = vshll.u32 %v1741, 16
        %v1743 = vadd.s32 %v1742, %v1740
        %v1744 = vand.u32 %v1533, 65535
        %v1745 = vshra.s32 %v1533, 16
        %v1746 = vcvt.s32.f32 %v1744
        %v1747 = vcvt.s32.f32 %v1745
        %1748 = vmin.xlane.f32.xlu0 %v1747
        %v1749 = vpop.xlane.xlu0 %1748
        %vm1750 = vcmp.eq.f32.partialorder %v1747, %v1749
        %v1751 = vsel %vm1750, %v1746, inf
        %1752 = vmin.xlane.f32.xlu0 %v1751
        %v1753 = vpop.xlane.xlu0 %1752
        %v1754 = vcvt.f32.s32 %v1753
        %v1755 = vcvt.f32.s32 %v1749
        %v1756 = vshll.u32 %v1755, 16
        %v1757 = vadd.s32 %v1756, %v1754
        %vm1758 = vcmp.eq.s32.totalorder %v956, 4
        %vm1759 = vcmp.eq.s32.totalorder %v957, 4
        %vm1760 = vcmp.eq.s32.totalorder %v958, 4
        %vm1761 = vcmp.eq.s32.totalorder %v959, 4
        %vm1762 = vcmp.eq.s32.totalorder %v960, 4
        %vm1763 = vcmp.eq.s32.totalorder %v961, 4
        %vm1764 = vcmp.eq.s32.totalorder %v962, 4
        %vm1765 = vcmp.eq.s32.totalorder %v963, 4
        %vm1766 = vcmp.eq.s32.totalorder %v964, 4
        %vm1767 = vcmp.eq.s32.totalorder %v965, 4
        %vm1768 = vcmp.eq.s32.totalorder %v966, 4
        %vm1769 = vcmp.eq.s32.totalorder %v967, 4
        %vm1770 = vcmp.eq.s32.totalorder %v968, 4
        %vm1771 = vcmp.eq.s32.totalorder %v969, 4
        %vm1772 = vcmp.eq.s32.totalorder %v970, 4
        %vm1773 = vcmp.eq.s32.totalorder %v971, 4
        %v1774 = vsel %vm1758, %v974, 128
        %v1775 = vsel %vm1759, %v975, 128
        %v1776 = vsel %vm1760, %v976, 128
        %v1777 = vsel %vm1761, %v977, 128
        %v1778 = vsel %vm1762, %v978, 128
        %v1779 = vsel %vm1763, %v979, 128
        %v1780 = vsel %vm1764, %v980, 128
        %v1781 = vsel %vm1765, %v981, 128
        %v1782 = vsel %vm1766, %v982, 128
        %v1783 = vsel %vm1767, %v983, 128
        %v1784 = vsel %vm1768, %v984, 128
        %v1785 = vsel %vm1769, %v985, 128
        %v1786 = vsel %vm1770, %v986, 128
        %v1787 = vsel %vm1771, %v987, 128
        %v1788 = vsel %vm1772, %v988, 128
        %v1789 = vsel %vm1773, %v989, 128
        %v1790 = vand.u32 %v1774, 65535
        %v1791 = vshra.s32 %v1774, 16
        %v1792 = vcvt.s32.f32 %v1790
        %v1793 = vcvt.s32.f32 %v1791
        %1794 = vmin.xlane.f32.xlu0 %v1793
        %v1795 = vpop.xlane.xlu0 %1794
        %vm1796 = vcmp.eq.f32.partialorder %v1793, %v1795
        %v1797 = vsel %vm1796, %v1792, inf
        %1798 = vmin.xlane.f32.xlu0 %v1797
        %v1799 = vpop.xlane.xlu0 %1798
        %v1800 = vcvt.f32.s32 %v1799
        %v1801 = vcvt.f32.s32 %v1795
        %v1802 = vshll.u32 %v1801, 16
        %v1803 = vadd.s32 %v1802, %v1800
        %v1804 = vand.u32 %v1775, 65535
        %v1805 = vshra.s32 %v1775, 16
        %v1806 = vcvt.s32.f32 %v1804
        %v1807 = vcvt.s32.f32 %v1805
        %1808 = vmin.xlane.f32.xlu0 %v1807
        %v1809 = vpop.xlane.xlu0 %1808
        %vm1810 = vcmp.eq.f32.partialorder %v1807, %v1809
        %v1811 = vsel %vm1810, %v1806, inf
        %1812 = vmin.xlane.f32.xlu0 %v1811
        %v1813 = vpop.xlane.xlu0 %1812
        %v1814 = vcvt.f32.s32 %v1813
        %v1815 = vcvt.f32.s32 %v1809
        %v1816 = vshll.u32 %v1815, 16
        %v1817 = vadd.s32 %v1816, %v1814
        %v1818 = vand.u32 %v1776, 65535
        %v1819 = vshra.s32 %v1776, 16
        %v1820 = vcvt.s32.f32 %v1818
        %v1821 = vcvt.s32.f32 %v1819
        %1822 = vmin.xlane.f32.xlu0 %v1821
        %v1823 = vpop.xlane.xlu0 %1822
        %vm1824 = vcmp.eq.f32.partialorder %v1821, %v1823
        %v1825 = vsel %vm1824, %v1820, inf
        %1826 = vmin.xlane.f32.xlu0 %v1825
        %v1827 = vpop.xlane.xlu0 %1826
        %v1828 = vcvt.f32.s32 %v1827
        %v1829 = vcvt.f32.s32 %v1823
        %v1830 = vshll.u32 %v1829, 16
        %v1831 = vadd.s32 %v1830, %v1828
        %v1832 = vand.u32 %v1777, 65535
        %v1833 = vshra.s32 %v1777, 16
        %v1834 = vcvt.s32.f32 %v1832
        %v1835 = vcvt.s32.f32 %v1833
        %1836 = vmin.xlane.f32.xlu0 %v1835
        %v1837 = vpop.xlane.xlu0 %1836
        %vm1838 = vcmp.eq.f32.partialorder %v1835, %v1837
        %v1839 = vsel %vm1838, %v1834, inf
        %1840 = vmin.xlane.f32.xlu0 %v1839
        %v1841 = vpop.xlane.xlu0 %1840
        %v1842 = vcvt.f32.s32 %v1841
        %v1843 = vcvt.f32.s32 %v1837
        %v1844 = vshll.u32 %v1843, 16
        %v1845 = vadd.s32 %v1844, %v1842
        %v1846 = vand.u32 %v1778, 65535
        %v1847 = vshra.s32 %v1778, 16
        %v1848 = vcvt.s32.f32 %v1846
        %v1849 = vcvt.s32.f32 %v1847
        %1850 = vmin.xlane.f32.xlu0 %v1849
        %v1851 = vpop.xlane.xlu0 %1850
        %vm1852 = vcmp.eq.f32.partialorder %v1849, %v1851
        %v1853 = vsel %vm1852, %v1848, inf
        %1854 = vmin.xlane.f32.xlu0 %v1853
        %v1855 = vpop.xlane.xlu0 %1854
        %v1856 = vcvt.f32.s32 %v1855
        %v1857 = vcvt.f32.s32 %v1851
        %v1858 = vshll.u32 %v1857, 16
        %v1859 = vadd.s32 %v1858, %v1856
        %v1860 = vand.u32 %v1779, 65535
        %v1861 = vshra.s32 %v1779, 16
        %v1862 = vcvt.s32.f32 %v1860
        %v1863 = vcvt.s32.f32 %v1861
        %1864 = vmin.xlane.f32.xlu0 %v1863
        %v1865 = vpop.xlane.xlu0 %1864
        %vm1866 = vcmp.eq.f32.partialorder %v1863, %v1865
        %v1867 = vsel %vm1866, %v1862, inf
        %1868 = vmin.xlane.f32.xlu0 %v1867
        %v1869 = vpop.xlane.xlu0 %1868
        %v1870 = vcvt.f32.s32 %v1869
        %v1871 = vcvt.f32.s32 %v1865
        %v1872 = vshll.u32 %v1871, 16
        %v1873 = vadd.s32 %v1872, %v1870
        %v1874 = vand.u32 %v1780, 65535
        %v1875 = vshra.s32 %v1780, 16
        %v1876 = vcvt.s32.f32 %v1874
        %v1877 = vcvt.s32.f32 %v1875
        %1878 = vmin.xlane.f32.xlu0 %v1877
        %v1879 = vpop.xlane.xlu0 %1878
        %vm1880 = vcmp.eq.f32.partialorder %v1877, %v1879
        %v1881 = vsel %vm1880, %v1876, inf
        %1882 = vmin.xlane.f32.xlu0 %v1881
        %v1883 = vpop.xlane.xlu0 %1882
        %v1884 = vcvt.f32.s32 %v1883
        %v1885 = vcvt.f32.s32 %v1879
        %v1886 = vshll.u32 %v1885, 16
        %v1887 = vadd.s32 %v1886, %v1884
        %v1888 = vand.u32 %v1781, 65535
        %v1889 = vshra.s32 %v1781, 16
        %v1890 = vcvt.s32.f32 %v1888
        %v1891 = vcvt.s32.f32 %v1889
        %1892 = vmin.xlane.f32.xlu0 %v1891
        %v1893 = vpop.xlane.xlu0 %1892
        %vm1894 = vcmp.eq.f32.partialorder %v1891, %v1893
        %v1895 = vsel %vm1894, %v1890, inf
        %1896 = vmin.xlane.f32.xlu0 %v1895
        %v1897 = vpop.xlane.xlu0 %1896
        %v1898 = vcvt.f32.s32 %v1897
        %v1899 = vcvt.f32.s32 %v1893
        %v1900 = vshll.u32 %v1899, 16
        %v1901 = vadd.s32 %v1900, %v1898
        %v1902 = vand.u32 %v1782, 65535
        %v1903 = vshra.s32 %v1782, 16
        %v1904 = vcvt.s32.f32 %v1902
        %v1905 = vcvt.s32.f32 %v1903
        %1906 = vmin.xlane.f32.xlu0 %v1905
        %v1907 = vpop.xlane.xlu0 %1906
        %vm1908 = vcmp.eq.f32.partialorder %v1905, %v1907
        %v1909 = vsel %vm1908, %v1904, inf
        %1910 = vmin.xlane.f32.xlu0 %v1909
        %v1911 = vpop.xlane.xlu0 %1910
        %v1912 = vcvt.f32.s32 %v1911
        %v1913 = vcvt.f32.s32 %v1907
        %v1914 = vshll.u32 %v1913, 16
        %v1915 = vadd.s32 %v1914, %v1912
        %v1916 = vand.u32 %v1783, 65535
        %v1917 = vshra.s32 %v1783, 16
        %v1918 = vcvt.s32.f32 %v1916
        %v1919 = vcvt.s32.f32 %v1917
        %1920 = vmin.xlane.f32.xlu0 %v1919
        %v1921 = vpop.xlane.xlu0 %1920
        %vm1922 = vcmp.eq.f32.partialorder %v1919, %v1921
        %v1923 = vsel %vm1922, %v1918, inf
        %1924 = vmin.xlane.f32.xlu0 %v1923
        %v1925 = vpop.xlane.xlu0 %1924
        %v1926 = vcvt.f32.s32 %v1925
        %v1927 = vcvt.f32.s32 %v1921
        %v1928 = vshll.u32 %v1927, 16
        %v1929 = vadd.s32 %v1928, %v1926
        %v1930 = vand.u32 %v1784, 65535
        %v1931 = vshra.s32 %v1784, 16
        %v1932 = vcvt.s32.f32 %v1930
        %v1933 = vcvt.s32.f32 %v1931
        %1934 = vmin.xlane.f32.xlu0 %v1933
        %v1935 = vpop.xlane.xlu0 %1934
        %vm1936 = vcmp.eq.f32.partialorder %v1933, %v1935
        %v1937 = vsel %vm1936, %v1932, inf
        %1938 = vmin.xlane.f32.xlu0 %v1937
        %v1939 = vpop.xlane.xlu0 %1938
        %v1940 = vcvt.f32.s32 %v1939
        %v1941 = vcvt.f32.s32 %v1935
        %v1942 = vshll.u32 %v1941, 16
        %v1943 = vadd.s32 %v1942, %v1940
        %v1944 = vand.u32 %v1785, 65535
        %v1945 = vshra.s32 %v1785, 16
        %v1946 = vcvt.s32.f32 %v1944
        %v1947 = vcvt.s32.f32 %v1945
        %1948 = vmin.xlane.f32.xlu0 %v1947
        %v1949 = vpop.xlane.xlu0 %1948
        %vm1950 = vcmp.eq.f32.partialorder %v1947, %v1949
        %v1951 = vsel %vm1950, %v1946, inf
        %1952 = vmin.xlane.f32.xlu0 %v1951
        %v1953 = vpop.xlane.xlu0 %1952
        %v1954 = vcvt.f32.s32 %v1953
        %v1955 = vcvt.f32.s32 %v1949
        %v1956 = vshll.u32 %v1955, 16
        %v1957 = vadd.s32 %v1956, %v1954
        %v1958 = vand.u32 %v1786, 65535
        %v1959 = vshra.s32 %v1786, 16
        %v1960 = vcvt.s32.f32 %v1958
        %v1961 = vcvt.s32.f32 %v1959
        %1962 = vmin.xlane.f32.xlu0 %v1961
        %v1963 = vpop.xlane.xlu0 %1962
        %vm1964 = vcmp.eq.f32.partialorder %v1961, %v1963
        %v1965 = vsel %vm1964, %v1960, inf
        %1966 = vmin.xlane.f32.xlu0 %v1965
        %v1967 = vpop.xlane.xlu0 %1966
        %v1968 = vcvt.f32.s32 %v1967
        %v1969 = vcvt.f32.s32 %v1963
        %v1970 = vshll.u32 %v1969, 16
        %v1971 = vadd.s32 %v1970, %v1968
        %v1972 = vand.u32 %v1787, 65535
        %v1973 = vshra.s32 %v1787, 16
        %v1974 = vcvt.s32.f32 %v1972
        %v1975 = vcvt.s32.f32 %v1973
        %1976 = vmin.xlane.f32.xlu0 %v1975
        %v1977 = vpop.xlane.xlu0 %1976
        %vm1978 = vcmp.eq.f32.partialorder %v1975, %v1977
        %v1979 = vsel %vm1978, %v1974, inf
        %1980 = vmin.xlane.f32.xlu0 %v1979
        %v1981 = vpop.xlane.xlu0 %1980
        %v1982 = vcvt.f32.s32 %v1981
        %v1983 = vcvt.f32.s32 %v1977
        %v1984 = vshll.u32 %v1983, 16
        %v1985 = vadd.s32 %v1984, %v1982
        %v1986 = vand.u32 %v1788, 65535
        %v1987 = vshra.s32 %v1788, 16
        %v1988 = vcvt.s32.f32 %v1986
        %v1989 = vcvt.s32.f32 %v1987
        %1990 = vmin.xlane.f32.xlu0 %v1989
        %v1991 = vpop.xlane.xlu0 %1990
        %vm1992 = vcmp.eq.f32.partialorder %v1989, %v1991
        %v1993 = vsel %vm1992, %v1988, inf
        %1994 = vmin.xlane.f32.xlu0 %v1993
        %v1995 = vpop.xlane.xlu0 %1994
        %v1996 = vcvt.f32.s32 %v1995
        %v1997 = vcvt.f32.s32 %v1991
        %v1998 = vshll.u32 %v1997, 16
        %v1999 = vadd.s32 %v1998, %v1996
        %v2000 = vand.u32 %v1789, 65535
        %v2001 = vshra.s32 %v1789, 16
        %v2002 = vcvt.s32.f32 %v2000
        %v2003 = vcvt.s32.f32 %v2001
        %2004 = vmin.xlane.f32.xlu0 %v2003
        %v2005 = vpop.xlane.xlu0 %2004
        %vm2006 = vcmp.eq.f32.partialorder %v2003, %v2005
        %v2007 = vsel %vm2006, %v2002, inf
        %2008 = vmin.xlane.f32.xlu0 %v2007
        %v2009 = vpop.xlane.xlu0 %2008
        %v2010 = vcvt.f32.s32 %v2009
        %v2011 = vcvt.f32.s32 %v2005
        %v2012 = vshll.u32 %v2011, 16
        %v2013 = vadd.s32 %v2012, %v2010
        %vm2014 = vcmp.eq.s32.totalorder %v956, 5
        %vm2015 = vcmp.eq.s32.totalorder %v957, 5
        %vm2016 = vcmp.eq.s32.totalorder %v958, 5
        %vm2017 = vcmp.eq.s32.totalorder %v959, 5
        %vm2018 = vcmp.eq.s32.totalorder %v960, 5
        %vm2019 = vcmp.eq.s32.totalorder %v961, 5
        %vm2020 = vcmp.eq.s32.totalorder %v962, 5
        %vm2021 = vcmp.eq.s32.totalorder %v963, 5
        %vm2022 = vcmp.eq.s32.totalorder %v964, 5
        %vm2023 = vcmp.eq.s32.totalorder %v965, 5
        %vm2024 = vcmp.eq.s32.totalorder %v966, 5
        %vm2025 = vcmp.eq.s32.totalorder %v967, 5
        %vm2026 = vcmp.eq.s32.totalorder %v968, 5
        %vm2027 = vcmp.eq.s32.totalorder %v969, 5
        %vm2028 = vcmp.eq.s32.totalorder %v970, 5
        %vm2029 = vcmp.eq.s32.totalorder %v971, 5
        %v2030 = vsel %vm2014, %v974, 128
        %v2031 = vsel %vm2015, %v975, 128
        %v2032 = vsel %vm2016, %v976, 128
        %v2033 = vsel %vm2017, %v977, 128
        %v2034 = vsel %vm2018, %v978, 128
        %v2035 = vsel %vm2019, %v979, 128
        %v2036 = vsel %vm2020, %v980, 128
        %v2037 = vsel %vm2021, %v981, 128
        %v2038 = vsel %vm2022, %v982, 128
        %v2039 = vsel %vm2023, %v983, 128
        %v2040 = vsel %vm2024, %v984, 128
        %v2041 = vsel %vm2025, %v985, 128
        %v2042 = vsel %vm2026, %v986, 128
        %v2043 = vsel %vm2027, %v987, 128
        %v2044 = vsel %vm2028, %v988, 128
        %v2045 = vsel %vm2029, %v989, 128
        %v2046 = vand.u32 %v2030, 65535
        %v2047 = vshra.s32 %v2030, 16
        %v2048 = vcvt.s32.f32 %v2046
        %v2049 = vcvt.s32.f32 %v2047
        %2050 = vmin.xlane.f32.xlu0 %v2049
        %v2051 = vpop.xlane.xlu0 %2050
        %vm2052 = vcmp.eq.f32.partialorder %v2049, %v2051
        %v2053 = vsel %vm2052, %v2048, inf
        %2054 = vmin.xlane.f32.xlu0 %v2053
        %v2055 = vpop.xlane.xlu0 %2054
        %v2056 = vcvt.f32.s32 %v2055
        %v2057 = vcvt.f32.s32 %v2051
        %v2058 = vshll.u32 %v2057, 16
        %v2059 = vadd.s32 %v2058, %v2056
        %v2060 = vand.u32 %v2031, 65535
        %v2061 = vshra.s32 %v2031, 16
        %v2062 = vcvt.s32.f32 %v2060
        %v2063 = vcvt.s32.f32 %v2061
        %2064 = vmin.xlane.f32.xlu0 %v2063
        %v2065 = vpop.xlane.xlu0 %2064
        %vm2066 = vcmp.eq.f32.partialorder %v2063, %v2065
        %v2067 = vsel %vm2066, %v2062, inf
        %2068 = vmin.xlane.f32.xlu0 %v2067
        %v2069 = vpop.xlane.xlu0 %2068
        %v2070 = vcvt.f32.s32 %v2069
        %v2071 = vcvt.f32.s32 %v2065
        %v2072 = vshll.u32 %v2071, 16
        %v2073 = vadd.s32 %v2072, %v2070
        %v2074 = vand.u32 %v2032, 65535
        %v2075 = vshra.s32 %v2032, 16
        %v2076 = vcvt.s32.f32 %v2074
        %v2077 = vcvt.s32.f32 %v2075
        %2078 = vmin.xlane.f32.xlu0 %v2077
        %v2079 = vpop.xlane.xlu0 %2078
        %vm2080 = vcmp.eq.f32.partialorder %v2077, %v2079
        %v2081 = vsel %vm2080, %v2076, inf
        %2082 = vmin.xlane.f32.xlu0 %v2081
        %v2083 = vpop.xlane.xlu0 %2082
        %v2084 = vcvt.f32.s32 %v2083
        %v2085 = vcvt.f32.s32 %v2079
        %v2086 = vshll.u32 %v2085, 16
        %v2087 = vadd.s32 %v2086, %v2084
        %v2088 = vand.u32 %v2033, 65535
        %v2089 = vshra.s32 %v2033, 16
        %v2090 = vcvt.s32.f32 %v2088
        %v2091 = vcvt.s32.f32 %v2089
        %2092 = vmin.xlane.f32.xlu0 %v2091
        %v2093 = vpop.xlane.xlu0 %2092
        %vm2094 = vcmp.eq.f32.partialorder %v2091, %v2093
        %v2095 = vsel %vm2094, %v2090, inf
        %2096 = vmin.xlane.f32.xlu0 %v2095
        %v2097 = vpop.xlane.xlu0 %2096
        %v2098 = vcvt.f32.s32 %v2097
        %v2099 = vcvt.f32.s32 %v2093
        %v2100 = vshll.u32 %v2099, 16
        %v2101 = vadd.s32 %v2100, %v2098
        %v2102 = vand.u32 %v2034, 65535
        %v2103 = vshra.s32 %v2034, 16
        %v2104 = vcvt.s32.f32 %v2102
        %v2105 = vcvt.s32.f32 %v2103
        %2106 = vmin.xlane.f32.xlu0 %v2105
        %v2107 = vpop.xlane.xlu0 %2106
        %vm2108 = vcmp.eq.f32.partialorder %v2105, %v2107
        %v2109 = vsel %vm2108, %v2104, inf
        %2110 = vmin.xlane.f32.xlu0 %v2109
        %v2111 = vpop.xlane.xlu0 %2110
        %v2112 = vcvt.f32.s32 %v2111
        %v2113 = vcvt.f32.s32 %v2107
        %v2114 = vshll.u32 %v2113, 16
        %v2115 = vadd.s32 %v2114, %v2112
        %v2116 = vand.u32 %v2035, 65535
        %v2117 = vshra.s32 %v2035, 16
        %v2118 = vcvt.s32.f32 %v2116
        %v2119 = vcvt.s32.f32 %v2117
        %2120 = vmin.xlane.f32.xlu0 %v2119
        %v2121 = vpop.xlane.xlu0 %2120
        %vm2122 = vcmp.eq.f32.partialorder %v2119, %v2121
        %v2123 = vsel %vm2122, %v2118, inf
        %2124 = vmin.xlane.f32.xlu0 %v2123
        %v2125 = vpop.xlane.xlu0 %2124
        %v2126 = vcvt.f32.s32 %v2125
        %v2127 = vcvt.f32.s32 %v2121
        %v2128 = vshll.u32 %v2127, 16
        %v2129 = vadd.s32 %v2128, %v2126
        %v2130 = vand.u32 %v2036, 65535
        %v2131 = vshra.s32 %v2036, 16
        %v2132 = vcvt.s32.f32 %v2130
        %v2133 = vcvt.s32.f32 %v2131
        %2134 = vmin.xlane.f32.xlu0 %v2133
        %v2135 = vpop.xlane.xlu0 %2134
        %vm2136 = vcmp.eq.f32.partialorder %v2133, %v2135
        %v2137 = vsel %vm2136, %v2132, inf
        %2138 = vmin.xlane.f32.xlu0 %v2137
        %v2139 = vpop.xlane.xlu0 %2138
        %v2140 = vcvt.f32.s32 %v2139
        %v2141 = vcvt.f32.s32 %v2135
        %v2142 = vshll.u32 %v2141, 16
        %v2143 = vadd.s32 %v2142, %v2140
        %v2144 = vand.u32 %v2037, 65535
        %v2145 = vshra.s32 %v2037, 16
        %v2146 = vcvt.s32.f32 %v2144
        %v2147 = vcvt.s32.f32 %v2145
        %2148 = vmin.xlane.f32.xlu0 %v2147
        %v2149 = vpop.xlane.xlu0 %2148
        %vm2150 = vcmp.eq.f32.partialorder %v2147, %v2149
        %v2151 = vsel %vm2150, %v2146, inf
        %2152 = vmin.xlane.f32.xlu0 %v2151
        %v2153 = vpop.xlane.xlu0 %2152
        %v2154 = vcvt.f32.s32 %v2153
        %v2155 = vcvt.f32.s32 %v2149
        %v2156 = vshll.u32 %v2155, 16
        %v2157 = vadd.s32 %v2156, %v2154
        %v2158 = vand.u32 %v2038, 65535
        %v2159 = vshra.s32 %v2038, 16
        %v2160 = vcvt.s32.f32 %v2158
        %v2161 = vcvt.s32.f32 %v2159
        %2162 = vmin.xlane.f32.xlu0 %v2161
        %v2163 = vpop.xlane.xlu0 %2162
        %vm2164 = vcmp.eq.f32.partialorder %v2161, %v2163
        %v2165 = vsel %vm2164, %v2160, inf
        %2166 = vmin.xlane.f32.xlu0 %v2165
        %v2167 = vpop.xlane.xlu0 %2166
        %v2168 = vcvt.f32.s32 %v2167
        %v2169 = vcvt.f32.s32 %v2163
        %v2170 = vshll.u32 %v2169, 16
        %v2171 = vadd.s32 %v2170, %v2168
        %v2172 = vand.u32 %v2039, 65535
        %v2173 = vshra.s32 %v2039, 16
        %v2174 = vcvt.s32.f32 %v2172
        %v2175 = vcvt.s32.f32 %v2173
        %2176 = vmin.xlane.f32.xlu0 %v2175
        %v2177 = vpop.xlane.xlu0 %2176
        %vm2178 = vcmp.eq.f32.partialorder %v2175, %v2177
        %v2179 = vsel %vm2178, %v2174, inf
        %2180 = vmin.xlane.f32.xlu0 %v2179
        %v2181 = vpop.xlane.xlu0 %2180
        %v2182 = vcvt.f32.s32 %v2181
        %v2183 = vcvt.f32.s32 %v2177
        %v2184 = vshll.u32 %v2183, 16
        %v2185 = vadd.s32 %v2184, %v2182
        %v2186 = vand.u32 %v2040, 65535
        %v2187 = vshra.s32 %v2040, 16
        %v2188 = vcvt.s32.f32 %v2186
        %v2189 = vcvt.s32.f32 %v2187
        %2190 = vmin.xlane.f32.xlu0 %v2189
        %v2191 = vpop.xlane.xlu0 %2190
        %vm2192 = vcmp.eq.f32.partialorder %v2189, %v2191
        %v2193 = vsel %vm2192, %v2188, inf
        %2194 = vmin.xlane.f32.xlu0 %v2193
        %v2195 = vpop.xlane.xlu0 %2194
        %v2196 = vcvt.f32.s32 %v2195
        %v2197 = vcvt.f32.s32 %v2191
        %v2198 = vshll.u32 %v2197, 16
        %v2199 = vadd.s32 %v2198, %v2196
        %v2200 = vand.u32 %v2041, 65535
        %v2201 = vshra.s32 %v2041, 16
        %v2202 = vcvt.s32.f32 %v2200
        %v2203 = vcvt.s32.f32 %v2201
        %2204 = vmin.xlane.f32.xlu0 %v2203
        %v2205 = vpop.xlane.xlu0 %2204
        %vm2206 = vcmp.eq.f32.partialorder %v2203, %v2205
        %v2207 = vsel %vm2206, %v2202, inf
        %2208 = vmin.xlane.f32.xlu0 %v2207
        %v2209 = vpop.xlane.xlu0 %2208
        %v2210 = vcvt.f32.s32 %v2209
        %v2211 = vcvt.f32.s32 %v2205
        %v2212 = vshll.u32 %v2211, 16
        %v2213 = vadd.s32 %v2212, %v2210
        %v2214 = vand.u32 %v2042, 65535
        %v2215 = vshra.s32 %v2042, 16
        %v2216 = vcvt.s32.f32 %v2214
        %v2217 = vcvt.s32.f32 %v2215
        %2218 = vmin.xlane.f32.xlu0 %v2217
        %v2219 = vpop.xlane.xlu0 %2218
        %vm2220 = vcmp.eq.f32.partialorder %v2217, %v2219
        %v2221 = vsel %vm2220, %v2216, inf
        %2222 = vmin.xlane.f32.xlu0 %v2221
        %v2223 = vpop.xlane.xlu0 %2222
        %v2224 = vcvt.f32.s32 %v2223
        %v2225 = vcvt.f32.s32 %v2219
        %v2226 = vshll.u32 %v2225, 16
        %v2227 = vadd.s32 %v2226, %v2224
        %v2228 = vand.u32 %v2043, 65535
        %v2229 = vshra.s32 %v2043, 16
        %v2230 = vcvt.s32.f32 %v2228
        %v2231 = vcvt.s32.f32 %v2229
        %2232 = vmin.xlane.f32.xlu0 %v2231
        %v2233 = vpop.xlane.xlu0 %2232
        %vm2234 = vcmp.eq.f32.partialorder %v2231, %v2233
        %v2235 = vsel %vm2234, %v2230, inf
        %2236 = vmin.xlane.f32.xlu0 %v2235
        %v2237 = vpop.xlane.xlu0 %2236
        %v2238 = vcvt.f32.s32 %v2237
        %v2239 = vcvt.f32.s32 %v2233
        %v2240 = vshll.u32 %v2239, 16
        %v2241 = vadd.s32 %v2240, %v2238
        %v2242 = vand.u32 %v2044, 65535
        %v2243 = vshra.s32 %v2044, 16
        %v2244 = vcvt.s32.f32 %v2242
        %v2245 = vcvt.s32.f32 %v2243
        %2246 = vmin.xlane.f32.xlu0 %v2245
        %v2247 = vpop.xlane.xlu0 %2246
        %vm2248 = vcmp.eq.f32.partialorder %v2245, %v2247
        %v2249 = vsel %vm2248, %v2244, inf
        %2250 = vmin.xlane.f32.xlu0 %v2249
        %v2251 = vpop.xlane.xlu0 %2250
        %v2252 = vcvt.f32.s32 %v2251
        %v2253 = vcvt.f32.s32 %v2247
        %v2254 = vshll.u32 %v2253, 16
        %v2255 = vadd.s32 %v2254, %v2252
        %v2256 = vand.u32 %v2045, 65535
        %v2257 = vshra.s32 %v2045, 16
        %v2258 = vcvt.s32.f32 %v2256
        %v2259 = vcvt.s32.f32 %v2257
        %2260 = vmin.xlane.f32.xlu0 %v2259
        %v2261 = vpop.xlane.xlu0 %2260
        %vm2262 = vcmp.eq.f32.partialorder %v2259, %v2261
        %v2263 = vsel %vm2262, %v2258, inf
        %2264 = vmin.xlane.f32.xlu0 %v2263
        %v2265 = vpop.xlane.xlu0 %2264
        %v2266 = vcvt.f32.s32 %v2265
        %v2267 = vcvt.f32.s32 %v2261
        %v2268 = vshll.u32 %v2267, 16
        %v2269 = vadd.s32 %v2268, %v2266
        %vm2270 = vcmp.eq.s32.totalorder %v956, 6
        %vm2271 = vcmp.eq.s32.totalorder %v957, 6
        %vm2272 = vcmp.eq.s32.totalorder %v958, 6
        %vm2273 = vcmp.eq.s32.totalorder %v959, 6
        %vm2274 = vcmp.eq.s32.totalorder %v960, 6
        %vm2275 = vcmp.eq.s32.totalorder %v961, 6
        %vm2276 = vcmp.eq.s32.totalorder %v962, 6
        %vm2277 = vcmp.eq.s32.totalorder %v963, 6
        %vm2278 = vcmp.eq.s32.totalorder %v964, 6
        %vm2279 = vcmp.eq.s32.totalorder %v965, 6
        %vm2280 = vcmp.eq.s32.totalorder %v966, 6
        %vm2281 = vcmp.eq.s32.totalorder %v967, 6
        %vm2282 = vcmp.eq.s32.totalorder %v968, 6
        %vm2283 = vcmp.eq.s32.totalorder %v969, 6
        %vm2284 = vcmp.eq.s32.totalorder %v970, 6
        %vm2285 = vcmp.eq.s32.totalorder %v971, 6
        %v2286 = vsel %vm2270, %v974, 128
        %v2287 = vsel %vm2271, %v975, 128
        %v2288 = vsel %vm2272, %v976, 128
        %v2289 = vsel %vm2273, %v977, 128
        %v2290 = vsel %vm2274, %v978, 128
        %v2291 = vsel %vm2275, %v979, 128
        %v2292 = vsel %vm2276, %v980, 128
        %v2293 = vsel %vm2277, %v981, 128
        %v2294 = vsel %vm2278, %v982, 128
        %v2295 = vsel %vm2279, %v983, 128
        %v2296 = vsel %vm2280, %v984, 128
        %v2297 = vsel %vm2281, %v985, 128
        %v2298 = vsel %vm2282, %v986, 128
        %v2299 = vsel %vm2283, %v987, 128
        %v2300 = vsel %vm2284, %v988, 128
        %v2301 = vsel %vm2285, %v989, 128
        %v2302 = vand.u32 %v2286, 65535
        %v2303 = vshra.s32 %v2286, 16
        %v2304 = vcvt.s32.f32 %v2302
        %v2305 = vcvt.s32.f32 %v2303
        %2306 = vmin.xlane.f32.xlu0 %v2305
        %v2307 = vpop.xlane.xlu0 %2306
        %vm2308 = vcmp.eq.f32.partialorder %v2305, %v2307
        %v2309 = vsel %vm2308, %v2304, inf
        %2310 = vmin.xlane.f32.xlu0 %v2309
        %v2311 = vpop.xlane.xlu0 %2310
        %v2312 = vcvt.f32.s32 %v2311
        %v2313 = vcvt.f32.s32 %v2307
        %v2314 = vshll.u32 %v2313, 16
        %v2315 = vadd.s32 %v2314, %v2312
        %v2316 = vand.u32 %v2287, 65535
        %v2317 = vshra.s32 %v2287, 16
        %v2318 = vcvt.s32.f32 %v2316
        %v2319 = vcvt.s32.f32 %v2317
        %2320 = vmin.xlane.f32.xlu0 %v2319
        %v2321 = vpop.xlane.xlu0 %2320
        %vm2322 = vcmp.eq.f32.partialorder %v2319, %v2321
        %v2323 = vsel %vm2322, %v2318, inf
        %2324 = vmin.xlane.f32.xlu0 %v2323
        %v2325 = vpop.xlane.xlu0 %2324
        %v2326 = vcvt.f32.s32 %v2325
        %v2327 = vcvt.f32.s32 %v2321
        %v2328 = vshll.u32 %v2327, 16
        %v2329 = vadd.s32 %v2328, %v2326
        %v2330 = vand.u32 %v2288, 65535
        %v2331 = vshra.s32 %v2288, 16
        %v2332 = vcvt.s32.f32 %v2330
        %v2333 = vcvt.s32.f32 %v2331
        %2334 = vmin.xlane.f32.xlu0 %v2333
        %v2335 = vpop.xlane.xlu0 %2334
        %vm2336 = vcmp.eq.f32.partialorder %v2333, %v2335
        %v2337 = vsel %vm2336, %v2332, inf
        %2338 = vmin.xlane.f32.xlu0 %v2337
        %v2339 = vpop.xlane.xlu0 %2338
        %v2340 = vcvt.f32.s32 %v2339
        %v2341 = vcvt.f32.s32 %v2335
        %v2342 = vshll.u32 %v2341, 16
        %v2343 = vadd.s32 %v2342, %v2340
        %v2344 = vand.u32 %v2289, 65535
        %v2345 = vshra.s32 %v2289, 16
        %v2346 = vcvt.s32.f32 %v2344
        %v2347 = vcvt.s32.f32 %v2345
        %2348 = vmin.xlane.f32.xlu0 %v2347
        %v2349 = vpop.xlane.xlu0 %2348
        %vm2350 = vcmp.eq.f32.partialorder %v2347, %v2349
        %v2351 = vsel %vm2350, %v2346, inf
        %2352 = vmin.xlane.f32.xlu0 %v2351
        %v2353 = vpop.xlane.xlu0 %2352
        %v2354 = vcvt.f32.s32 %v2353
        %v2355 = vcvt.f32.s32 %v2349
        %v2356 = vshll.u32 %v2355, 16
        %v2357 = vadd.s32 %v2356, %v2354
        %v2358 = vand.u32 %v2290, 65535
        %v2359 = vshra.s32 %v2290, 16
        %v2360 = vcvt.s32.f32 %v2358
        %v2361 = vcvt.s32.f32 %v2359
        %2362 = vmin.xlane.f32.xlu0 %v2361
        %v2363 = vpop.xlane.xlu0 %2362
        %vm2364 = vcmp.eq.f32.partialorder %v2361, %v2363
        %v2365 = vsel %vm2364, %v2360, inf
        %2366 = vmin.xlane.f32.xlu0 %v2365
        %v2367 = vpop.xlane.xlu0 %2366
        %v2368 = vcvt.f32.s32 %v2367
        %v2369 = vcvt.f32.s32 %v2363
        %v2370 = vshll.u32 %v2369, 16
        %v2371 = vadd.s32 %v2370, %v2368
        %v2372 = vand.u32 %v2291, 65535
        %v2373 = vshra.s32 %v2291, 16
        %v2374 = vcvt.s32.f32 %v2372
        %v2375 = vcvt.s32.f32 %v2373
        %2376 = vmin.xlane.f32.xlu0 %v2375
        %v2377 = vpop.xlane.xlu0 %2376
        %vm2378 = vcmp.eq.f32.partialorder %v2375, %v2377
        %v2379 = vsel %vm2378, %v2374, inf
        %2380 = vmin.xlane.f32.xlu0 %v2379
        %v2381 = vpop.xlane.xlu0 %2380
        %v2382 = vcvt.f32.s32 %v2381
        %v2383 = vcvt.f32.s32 %v2377
        %v2384 = vshll.u32 %v2383, 16
        %v2385 = vadd.s32 %v2384, %v2382
        %v2386 = vand.u32 %v2292, 65535
        %v2387 = vshra.s32 %v2292, 16
        %v2388 = vcvt.s32.f32 %v2386
        %v2389 = vcvt.s32.f32 %v2387
        %2390 = vmin.xlane.f32.xlu0 %v2389
        %v2391 = vpop.xlane.xlu0 %2390
        %vm2392 = vcmp.eq.f32.partialorder %v2389, %v2391
        %v2393 = vsel %vm2392, %v2388, inf
        %2394 = vmin.xlane.f32.xlu0 %v2393
        %v2395 = vpop.xlane.xlu0 %2394
        %v2396 = vcvt.f32.s32 %v2395
        %v2397 = vcvt.f32.s32 %v2391
        %v2398 = vshll.u32 %v2397, 16
        %v2399 = vadd.s32 %v2398, %v2396
        %v2400 = vand.u32 %v2293, 65535
        %v2401 = vshra.s32 %v2293, 16
        %v2402 = vcvt.s32.f32 %v2400
        %v2403 = vcvt.s32.f32 %v2401
        %2404 = vmin.xlane.f32.xlu0 %v2403
        %v2405 = vpop.xlane.xlu0 %2404
        %vm2406 = vcmp.eq.f32.partialorder %v2403, %v2405
        %v2407 = vsel %vm2406, %v2402, inf
        %2408 = vmin.xlane.f32.xlu0 %v2407
        %v2409 = vpop.xlane.xlu0 %2408
        %v2410 = vcvt.f32.s32 %v2409
        %v2411 = vcvt.f32.s32 %v2405
        %v2412 = vshll.u32 %v2411, 16
        %v2413 = vadd.s32 %v2412, %v2410
        %v2414 = vand.u32 %v2294, 65535
        %v2415 = vshra.s32 %v2294, 16
        %v2416 = vcvt.s32.f32 %v2414
        %v2417 = vcvt.s32.f32 %v2415
        %2418 = vmin.xlane.f32.xlu0 %v2417
        %v2419 = vpop.xlane.xlu0 %2418
        %vm2420 = vcmp.eq.f32.partialorder %v2417, %v2419
        %v2421 = vsel %vm2420, %v2416, inf
        %2422 = vmin.xlane.f32.xlu0 %v2421
        %v2423 = vpop.xlane.xlu0 %2422
        %v2424 = vcvt.f32.s32 %v2423
        %v2425 = vcvt.f32.s32 %v2419
        %v2426 = vshll.u32 %v2425, 16
        %v2427 = vadd.s32 %v2426, %v2424
        %v2428 = vand.u32 %v2295, 65535
        %v2429 = vshra.s32 %v2295, 16
        %v2430 = vcvt.s32.f32 %v2428
        %v2431 = vcvt.s32.f32 %v2429
        %2432 = vmin.xlane.f32.xlu0 %v2431
        %v2433 = vpop.xlane.xlu0 %2432
        %vm2434 = vcmp.eq.f32.partialorder %v2431, %v2433
        %v2435 = vsel %vm2434, %v2430, inf
        %2436 = vmin.xlane.f32.xlu0 %v2435
        %v2437 = vpop.xlane.xlu0 %2436
        %v2438 = vcvt.f32.s32 %v2437
        %v2439 = vcvt.f32.s32 %v2433
        %v2440 = vshll.u32 %v2439, 16
        %v2441 = vadd.s32 %v2440, %v2438
        %v2442 = vand.u32 %v2296, 65535
        %v2443 = vshra.s32 %v2296, 16
        %v2444 = vcvt.s32.f32 %v2442
        %v2445 = vcvt.s32.f32 %v2443
        %2446 = vmin.xlane.f32.xlu0 %v2445
        %v2447 = vpop.xlane.xlu0 %2446
        %vm2448 = vcmp.eq.f32.partialorder %v2445, %v2447
        %v2449 = vsel %vm2448, %v2444, inf
        %2450 = vmin.xlane.f32.xlu0 %v2449
        %v2451 = vpop.xlane.xlu0 %2450
        %v2452 = vcvt.f32.s32 %v2451
        %v2453 = vcvt.f32.s32 %v2447
        %v2454 = vshll.u32 %v2453, 16
        %v2455 = vadd.s32 %v2454, %v2452
        %v2456 = vand.u32 %v2297, 65535
        %v2457 = vshra.s32 %v2297, 16
        %v2458 = vcvt.s32.f32 %v2456
        %v2459 = vcvt.s32.f32 %v2457
        %2460 = vmin.xlane.f32.xlu0 %v2459
        %v2461 = vpop.xlane.xlu0 %2460
        %vm2462 = vcmp.eq.f32.partialorder %v2459, %v2461
        %v2463 = vsel %vm2462, %v2458, inf
        %2464 = vmin.xlane.f32.xlu0 %v2463
        %v2465 = vpop.xlane.xlu0 %2464
        %v2466 = vcvt.f32.s32 %v2465
        %v2467 = vcvt.f32.s32 %v2461
        %v2468 = vshll.u32 %v2467, 16
        %v2469 = vadd.s32 %v2468, %v2466
        %v2470 = vand.u32 %v2298, 65535
        %v2471 = vshra.s32 %v2298, 16
        %v2472 = vcvt.s32.f32 %v2470
        %v2473 = vcvt.s32.f32 %v2471
        %2474 = vmin.xlane.f32.xlu0 %v2473
        %v2475 = vpop.xlane.xlu0 %2474
        %vm2476 = vcmp.eq.f32.partialorder %v2473, %v2475
        %v2477 = vsel %vm2476, %v2472, inf
        %2478 = vmin.xlane.f32.xlu0 %v2477
        %v2479 = vpop.xlane.xlu0 %2478
        %v2480 = vcvt.f32.s32 %v2479
        %v2481 = vcvt.f32.s32 %v2475
        %v2482 = vshll.u32 %v2481, 16
        %v2483 = vadd.s32 %v2482, %v2480
        %v2484 = vand.u32 %v2299, 65535
        %v2485 = vshra.s32 %v2299, 16
        %v2486 = vcvt.s32.f32 %v2484
        %v2487 = vcvt.s32.f32 %v2485
        %2488 = vmin.xlane.f32.xlu0 %v2487
        %v2489 = vpop.xlane.xlu0 %2488
        %vm2490 = vcmp.eq.f32.partialorder %v2487, %v2489
        %v2491 = vsel %vm2490, %v2486, inf
        %2492 = vmin.xlane.f32.xlu0 %v2491
        %v2493 = vpop.xlane.xlu0 %2492
        %v2494 = vcvt.f32.s32 %v2493
        %v2495 = vcvt.f32.s32 %v2489
        %v2496 = vshll.u32 %v2495, 16
        %v2497 = vadd.s32 %v2496, %v2494
        %v2498 = vand.u32 %v2300, 65535
        %v2499 = vshra.s32 %v2300, 16
        %v2500 = vcvt.s32.f32 %v2498
        %v2501 = vcvt.s32.f32 %v2499
        %2502 = vmin.xlane.f32.xlu0 %v2501
        %v2503 = vpop.xlane.xlu0 %2502
        %vm2504 = vcmp.eq.f32.partialorder %v2501, %v2503
        %v2505 = vsel %vm2504, %v2500, inf
        %2506 = vmin.xlane.f32.xlu0 %v2505
        %v2507 = vpop.xlane.xlu0 %2506
        %v2508 = vcvt.f32.s32 %v2507
        %v2509 = vcvt.f32.s32 %v2503
        %v2510 = vshll.u32 %v2509, 16
        %v2511 = vadd.s32 %v2510, %v2508
        %v2512 = vand.u32 %v2301, 65535
        %v2513 = vshra.s32 %v2301, 16
        %v2514 = vcvt.s32.f32 %v2512
        %v2515 = vcvt.s32.f32 %v2513
        %2516 = vmin.xlane.f32.xlu0 %v2515
        %v2517 = vpop.xlane.xlu0 %2516
        %vm2518 = vcmp.eq.f32.partialorder %v2515, %v2517
        %v2519 = vsel %vm2518, %v2514, inf
        %2520 = vmin.xlane.f32.xlu0 %v2519
        %v2521 = vpop.xlane.xlu0 %2520
        %v2522 = vcvt.f32.s32 %v2521
        %v2523 = vcvt.f32.s32 %v2517
        %v2524 = vshll.u32 %v2523, 16
        %v2525 = vadd.s32 %v2524, %v2522
        %vm2526 = vcmp.eq.s32.totalorder %v956, 7
        %vm2527 = vcmp.eq.s32.totalorder %v957, 7
        %vm2528 = vcmp.eq.s32.totalorder %v958, 7
        %vm2529 = vcmp.eq.s32.totalorder %v959, 7
        %vm2530 = vcmp.eq.s32.totalorder %v960, 7
        %vm2531 = vcmp.eq.s32.totalorder %v961, 7
        %vm2532 = vcmp.eq.s32.totalorder %v962, 7
        %vm2533 = vcmp.eq.s32.totalorder %v963, 7
        %vm2534 = vcmp.eq.s32.totalorder %v964, 7
        %vm2535 = vcmp.eq.s32.totalorder %v965, 7
        %vm2536 = vcmp.eq.s32.totalorder %v966, 7
        %vm2537 = vcmp.eq.s32.totalorder %v967, 7
        %vm2538 = vcmp.eq.s32.totalorder %v968, 7
        %vm2539 = vcmp.eq.s32.totalorder %v969, 7
        %vm2540 = vcmp.eq.s32.totalorder %v970, 7
        %vm2541 = vcmp.eq.s32.totalorder %v971, 7
        %v2542 = vsel %vm2526, %v974, 128
        %v2543 = vsel %vm2527, %v975, 128
        %v2544 = vsel %vm2528, %v976, 128
        %v2545 = vsel %vm2529, %v977, 128
        %v2546 = vsel %vm2530, %v978, 128
        %v2547 = vsel %vm2531, %v979, 128
        %v2548 = vsel %vm2532, %v980, 128
        %v2549 = vsel %vm2533, %v981, 128
        %v2550 = vsel %vm2534, %v982, 128
        %v2551 = vsel %vm2535, %v983, 128
        %v2552 = vsel %vm2536, %v984, 128
        %v2553 = vsel %vm2537, %v985, 128
        %v2554 = vsel %vm2538, %v986, 128
        %v2555 = vsel %vm2539, %v987, 128
        %v2556 = vsel %vm2540, %v988, 128
        %v2557 = vsel %vm2541, %v989, 128
        %v2558 = vand.u32 %v2542, 65535
        %v2559 = vshra.s32 %v2542, 16
        %v2560 = vcvt.s32.f32 %v2558
        %v2561 = vcvt.s32.f32 %v2559
        %2562 = vmin.xlane.f32.xlu0 %v2561
        %v2563 = vpop.xlane.xlu0 %2562
        %vm2564 = vcmp.eq.f32.partialorder %v2561, %v2563
        %v2565 = vsel %vm2564, %v2560, inf
        %2566 = vmin.xlane.f32.xlu0 %v2565
        %v2567 = vpop.xlane.xlu0 %2566
        %v2568 = vcvt.f32.s32 %v2567
        %v2569 = vcvt.f32.s32 %v2563
        %v2570 = vshll.u32 %v2569, 16
        %v2571 = vadd.s32 %v2570, %v2568
        %v2572 = vand.u32 %v2543, 65535
        %v2573 = vshra.s32 %v2543, 16
        %v2574 = vcvt.s32.f32 %v2572
        %v2575 = vcvt.s32.f32 %v2573
        %2576 = vmin.xlane.f32.xlu0 %v2575
        %v2577 = vpop.xlane.xlu0 %2576
        %vm2578 = vcmp.eq.f32.partialorder %v2575, %v2577
        %v2579 = vsel %vm2578, %v2574, inf
        %2580 = vmin.xlane.f32.xlu0 %v2579
        %v2581 = vpop.xlane.xlu0 %2580
        %v2582 = vcvt.f32.s32 %v2581
        %v2583 = vcvt.f32.s32 %v2577
        %v2584 = vshll.u32 %v2583, 16
        %v2585 = vadd.s32 %v2584, %v2582
        %v2586 = vand.u32 %v2544, 65535
        %v2587 = vshra.s32 %v2544, 16
        %v2588 = vcvt.s32.f32 %v2586
        %v2589 = vcvt.s32.f32 %v2587
        %2590 = vmin.xlane.f32.xlu0 %v2589
        %v2591 = vpop.xlane.xlu0 %2590
        %vm2592 = vcmp.eq.f32.partialorder %v2589, %v2591
        %v2593 = vsel %vm2592, %v2588, inf
        %2594 = vmin.xlane.f32.xlu0 %v2593
        %v2595 = vpop.xlane.xlu0 %2594
        %v2596 = vcvt.f32.s32 %v2595
        %v2597 = vcvt.f32.s32 %v2591
        %v2598 = vshll.u32 %v2597, 16
        %v2599 = vadd.s32 %v2598, %v2596
        %v2600 = vand.u32 %v2545, 65535
        %v2601 = vshra.s32 %v2545, 16
        %v2602 = vcvt.s32.f32 %v2600
        %v2603 = vcvt.s32.f32 %v2601
        %2604 = vmin.xlane.f32.xlu0 %v2603
        %v2605 = vpop.xlane.xlu0 %2604
        %vm2606 = vcmp.eq.f32.partialorder %v2603, %v2605
        %v2607 = vsel %vm2606, %v2602, inf
        %2608 = vmin.xlane.f32.xlu0 %v2607
        %v2609 = vpop.xlane.xlu0 %2608
        %v2610 = vcvt.f32.s32 %v2609
        %v2611 = vcvt.f32.s32 %v2605
        %v2612 = vshll.u32 %v2611, 16
        %v2613 = vadd.s32 %v2612, %v2610
        %v2614 = vand.u32 %v2546, 65535
        %v2615 = vshra.s32 %v2546, 16
        %v2616 = vcvt.s32.f32 %v2614
        %v2617 = vcvt.s32.f32 %v2615
        %2618 = vmin.xlane.f32.xlu0 %v2617
        %v2619 = vpop.xlane.xlu0 %2618
        %vm2620 = vcmp.eq.f32.partialorder %v2617, %v2619
        %v2621 = vsel %vm2620, %v2616, inf
        %2622 = vmin.xlane.f32.xlu0 %v2621
        %v2623 = vpop.xlane.xlu0 %2622
        %v2624 = vcvt.f32.s32 %v2623
        %v2625 = vcvt.f32.s32 %v2619
        %v2626 = vshll.u32 %v2625, 16
        %v2627 = vadd.s32 %v2626, %v2624
        %v2628 = vand.u32 %v2547, 65535
        %v2629 = vshra.s32 %v2547, 16
        %v2630 = vcvt.s32.f32 %v2628
        %v2631 = vcvt.s32.f32 %v2629
        %2632 = vmin.xlane.f32.xlu0 %v2631
        %v2633 = vpop.xlane.xlu0 %2632
        %vm2634 = vcmp.eq.f32.partialorder %v2631, %v2633
        %v2635 = vsel %vm2634, %v2630, inf
        %2636 = vmin.xlane.f32.xlu0 %v2635
        %v2637 = vpop.xlane.xlu0 %2636
        %v2638 = vcvt.f32.s32 %v2637
        %v2639 = vcvt.f32.s32 %v2633
        %v2640 = vshll.u32 %v2639, 16
        %v2641 = vadd.s32 %v2640, %v2638
        %v2642 = vand.u32 %v2548, 65535
        %v2643 = vshra.s32 %v2548, 16
        %v2644 = vcvt.s32.f32 %v2642
        %v2645 = vcvt.s32.f32 %v2643
        %2646 = vmin.xlane.f32.xlu0 %v2645
        %v2647 = vpop.xlane.xlu0 %2646
        %vm2648 = vcmp.eq.f32.partialorder %v2645, %v2647
        %v2649 = vsel %vm2648, %v2644, inf
        %2650 = vmin.xlane.f32.xlu0 %v2649
        %v2651 = vpop.xlane.xlu0 %2650
        %v2652 = vcvt.f32.s32 %v2651
        %v2653 = vcvt.f32.s32 %v2647
        %v2654 = vshll.u32 %v2653, 16
        %v2655 = vadd.s32 %v2654, %v2652
        %v2656 = vand.u32 %v2549, 65535
        %v2657 = vshra.s32 %v2549, 16
        %v2658 = vcvt.s32.f32 %v2656
        %v2659 = vcvt.s32.f32 %v2657
        %2660 = vmin.xlane.f32.xlu0 %v2659
        %v2661 = vpop.xlane.xlu0 %2660
        %vm2662 = vcmp.eq.f32.partialorder %v2659, %v2661
        %v2663 = vsel %vm2662, %v2658, inf
        %2664 = vmin.xlane.f32.xlu0 %v2663
        %v2665 = vpop.xlane.xlu0 %2664
        %v2666 = vcvt.f32.s32 %v2665
        %v2667 = vcvt.f32.s32 %v2661
        %v2668 = vshll.u32 %v2667, 16
        %v2669 = vadd.s32 %v2668, %v2666
        %v2670 = vand.u32 %v2550, 65535
        %v2671 = vshra.s32 %v2550, 16
        %v2672 = vcvt.s32.f32 %v2670
        %v2673 = vcvt.s32.f32 %v2671
        %2674 = vmin.xlane.f32.xlu0 %v2673
        %v2675 = vpop.xlane.xlu0 %2674
        %vm2676 = vcmp.eq.f32.partialorder %v2673, %v2675
        %v2677 = vsel %vm2676, %v2672, inf
        %2678 = vmin.xlane.f32.xlu0 %v2677
        %v2679 = vpop.xlane.xlu0 %2678
        %v2680 = vcvt.f32.s32 %v2679
        %v2681 = vcvt.f32.s32 %v2675
        %v2682 = vshll.u32 %v2681, 16
        %v2683 = vadd.s32 %v2682, %v2680
        %v2684 = vand.u32 %v2551, 65535
        %v2685 = vshra.s32 %v2551, 16
        %v2686 = vcvt.s32.f32 %v2684
        %v2687 = vcvt.s32.f32 %v2685
        %2688 = vmin.xlane.f32.xlu0 %v2687
        %v2689 = vpop.xlane.xlu0 %2688
        %vm2690 = vcmp.eq.f32.partialorder %v2687, %v2689
        %v2691 = vsel %vm2690, %v2686, inf
        %2692 = vmin.xlane.f32.xlu0 %v2691
        %v2693 = vpop.xlane.xlu0 %2692
        %v2694 = vcvt.f32.s32 %v2693
        %v2695 = vcvt.f32.s32 %v2689
        %v2696 = vshll.u32 %v2695, 16
        %v2697 = vadd.s32 %v2696, %v2694
        %v2698 = vand.u32 %v2552, 65535
        %v2699 = vshra.s32 %v2552, 16
        %v2700 = vcvt.s32.f32 %v2698
        %v2701 = vcvt.s32.f32 %v2699
        %2702 = vmin.xlane.f32.xlu0 %v2701
        %v2703 = vpop.xlane.xlu0 %2702
        %vm2704 = vcmp.eq.f32.partialorder %v2701, %v2703
        %v2705 = vsel %vm2704, %v2700, inf
        %2706 = vmin.xlane.f32.xlu0 %v2705
        %v2707 = vpop.xlane.xlu0 %2706
        %v2708 = vcvt.f32.s32 %v2707
        %v2709 = vcvt.f32.s32 %v2703
        %v2710 = vshll.u32 %v2709, 16
        %v2711 = vadd.s32 %v2710, %v2708
        %v2712 = vand.u32 %v2553, 65535
        %v2713 = vshra.s32 %v2553, 16
        %v2714 = vcvt.s32.f32 %v2712
        %v2715 = vcvt.s32.f32 %v2713
        %2716 = vmin.xlane.f32.xlu0 %v2715
        %v2717 = vpop.xlane.xlu0 %2716
        %vm2718 = vcmp.eq.f32.partialorder %v2715, %v2717
        %v2719 = vsel %vm2718, %v2714, inf
        %2720 = vmin.xlane.f32.xlu0 %v2719
        %v2721 = vpop.xlane.xlu0 %2720
        %v2722 = vcvt.f32.s32 %v2721
        %v2723 = vcvt.f32.s32 %v2717
        %v2724 = vshll.u32 %v2723, 16
        %v2725 = vadd.s32 %v2724, %v2722
        %v2726 = vand.u32 %v2554, 65535
        %v2727 = vshra.s32 %v2554, 16
        %v2728 = vcvt.s32.f32 %v2726
        %v2729 = vcvt.s32.f32 %v2727
        %2730 = vmin.xlane.f32.xlu0 %v2729
        %v2731 = vpop.xlane.xlu0 %2730
        %vm2732 = vcmp.eq.f32.partialorder %v2729, %v2731
        %v2733 = vsel %vm2732, %v2728, inf
        %2734 = vmin.xlane.f32.xlu0 %v2733
        %v2735 = vpop.xlane.xlu0 %2734
        %v2736 = vcvt.f32.s32 %v2735
        %v2737 = vcvt.f32.s32 %v2731
        %v2738 = vshll.u32 %v2737, 16
        %v2739 = vadd.s32 %v2738, %v2736
        %v2740 = vand.u32 %v2555, 65535
        %v2741 = vshra.s32 %v2555, 16
        %v2742 = vcvt.s32.f32 %v2740
        %v2743 = vcvt.s32.f32 %v2741
        %2744 = vmin.xlane.f32.xlu0 %v2743
        %v2745 = vpop.xlane.xlu0 %2744
        %vm2746 = vcmp.eq.f32.partialorder %v2743, %v2745
        %v2747 = vsel %vm2746, %v2742, inf
        %2748 = vmin.xlane.f32.xlu0 %v2747
        %v2749 = vpop.xlane.xlu0 %2748
        %v2750 = vcvt.f32.s32 %v2749
        %v2751 = vcvt.f32.s32 %v2745
        %v2752 = vshll.u32 %v2751, 16
        %v2753 = vadd.s32 %v2752, %v2750
        %v2754 = vand.u32 %v2556, 65535
        %v2755 = vshra.s32 %v2556, 16
        %v2756 = vcvt.s32.f32 %v2754
        %v2757 = vcvt.s32.f32 %v2755
        %2758 = vmin.xlane.f32.xlu0 %v2757
        %v2759 = vpop.xlane.xlu0 %2758
        %vm2760 = vcmp.eq.f32.partialorder %v2757, %v2759
        %v2761 = vsel %vm2760, %v2756, inf
        %2762 = vmin.xlane.f32.xlu0 %v2761
        %v2763 = vpop.xlane.xlu0 %2762
        %v2764 = vcvt.f32.s32 %v2763
        %v2765 = vcvt.f32.s32 %v2759
        %v2766 = vshll.u32 %v2765, 16
        %v2767 = vadd.s32 %v2766, %v2764
        %v2768 = vand.u32 %v2557, 65535
        %v2769 = vshra.s32 %v2557, 16
        %v2770 = vcvt.s32.f32 %v2768
        %v2771 = vcvt.s32.f32 %v2769
        %2772 = vmin.xlane.f32.xlu0 %v2771
        %v2773 = vpop.xlane.xlu0 %2772
        %vm2774 = vcmp.eq.f32.partialorder %v2771, %v2773
        %v2775 = vsel %vm2774, %v2770, inf
        %2776 = vmin.xlane.f32.xlu0 %v2775
        %v2777 = vpop.xlane.xlu0 %2776
        %v2778 = vcvt.f32.s32 %v2777
        %v2779 = vcvt.f32.s32 %v2773
        %v2780 = vshll.u32 %v2779, 16
        %v2781 = vadd.s32 %v2780, %v2778
        %vm2782 = vcmp.eq.s32.totalorder %v956, 8
        %vm2783 = vcmp.eq.s32.totalorder %v957, 8
        %vm2784 = vcmp.eq.s32.totalorder %v958, 8
        %vm2785 = vcmp.eq.s32.totalorder %v959, 8
        %vm2786 = vcmp.eq.s32.totalorder %v960, 8
        %vm2787 = vcmp.eq.s32.totalorder %v961, 8
        %vm2788 = vcmp.eq.s32.totalorder %v962, 8
        %vm2789 = vcmp.eq.s32.totalorder %v963, 8
        %vm2790 = vcmp.eq.s32.totalorder %v964, 8
        %vm2791 = vcmp.eq.s32.totalorder %v965, 8
        %vm2792 = vcmp.eq.s32.totalorder %v966, 8
        %vm2793 = vcmp.eq.s32.totalorder %v967, 8
        %vm2794 = vcmp.eq.s32.totalorder %v968, 8
        %vm2795 = vcmp.eq.s32.totalorder %v969, 8
        %vm2796 = vcmp.eq.s32.totalorder %v970, 8
        %vm2797 = vcmp.eq.s32.totalorder %v971, 8
        %v2798 = vsel %vm2782, %v974, 128
        %v2799 = vsel %vm2783, %v975, 128
        %v2800 = vsel %vm2784, %v976, 128
        %v2801 = vsel %vm2785, %v977, 128
        %v2802 = vsel %vm2786, %v978, 128
        %v2803 = vsel %vm2787, %v979, 128
        %v2804 = vsel %vm2788, %v980, 128
        %v2805 = vsel %vm2789, %v981, 128
        %v2806 = vsel %vm2790, %v982, 128
        %v2807 = vsel %vm2791, %v983, 128
        %v2808 = vsel %vm2792, %v984, 128
        %v2809 = vsel %vm2793, %v985, 128
        %v2810 = vsel %vm2794, %v986, 128
        %v2811 = vsel %vm2795, %v987, 128
        %v2812 = vsel %vm2796, %v988, 128
        %v2813 = vsel %vm2797, %v989, 128
        %v2814 = vand.u32 %v2798, 65535
        %v2815 = vshra.s32 %v2798, 16
        %v2816 = vcvt.s32.f32 %v2814
        %v2817 = vcvt.s32.f32 %v2815
        %2818 = vmin.xlane.f32.xlu0 %v2817
        %v2819 = vpop.xlane.xlu0 %2818
        %vm2820 = vcmp.eq.f32.partialorder %v2817, %v2819
        %v2821 = vsel %vm2820, %v2816, inf
        %2822 = vmin.xlane.f32.xlu0 %v2821
        %v2823 = vpop.xlane.xlu0 %2822
        %v2824 = vcvt.f32.s32 %v2823
        %v2825 = vcvt.f32.s32 %v2819
        %v2826 = vshll.u32 %v2825, 16
        %v2827 = vadd.s32 %v2826, %v2824
        %v2828 = vand.u32 %v2799, 65535
        %v2829 = vshra.s32 %v2799, 16
        %v2830 = vcvt.s32.f32 %v2828
        %v2831 = vcvt.s32.f32 %v2829
        %2832 = vmin.xlane.f32.xlu0 %v2831
        %v2833 = vpop.xlane.xlu0 %2832
        %vm2834 = vcmp.eq.f32.partialorder %v2831, %v2833
        %v2835 = vsel %vm2834, %v2830, inf
        %2836 = vmin.xlane.f32.xlu0 %v2835
        %v2837 = vpop.xlane.xlu0 %2836
        %v2838 = vcvt.f32.s32 %v2837
        %v2839 = vcvt.f32.s32 %v2833
        %v2840 = vshll.u32 %v2839, 16
        %v2841 = vadd.s32 %v2840, %v2838
        %v2842 = vand.u32 %v2800, 65535
        %v2843 = vshra.s32 %v2800, 16
        %v2844 = vcvt.s32.f32 %v2842
        %v2845 = vcvt.s32.f32 %v2843
        %2846 = vmin.xlane.f32.xlu0 %v2845
        %v2847 = vpop.xlane.xlu0 %2846
        %vm2848 = vcmp.eq.f32.partialorder %v2845, %v2847
        %v2849 = vsel %vm2848, %v2844, inf
        %2850 = vmin.xlane.f32.xlu0 %v2849
        %v2851 = vpop.xlane.xlu0 %2850
        %v2852 = vcvt.f32.s32 %v2851
        %v2853 = vcvt.f32.s32 %v2847
        %v2854 = vshll.u32 %v2853, 16
        %v2855 = vadd.s32 %v2854, %v2852
        %v2856 = vand.u32 %v2801, 65535
        %v2857 = vshra.s32 %v2801, 16
        %v2858 = vcvt.s32.f32 %v2856
        %v2859 = vcvt.s32.f32 %v2857
        %2860 = vmin.xlane.f32.xlu0 %v2859
        %v2861 = vpop.xlane.xlu0 %2860
        %vm2862 = vcmp.eq.f32.partialorder %v2859, %v2861
        %v2863 = vsel %vm2862, %v2858, inf
        %2864 = vmin.xlane.f32.xlu0 %v2863
        %v2865 = vpop.xlane.xlu0 %2864
        %v2866 = vcvt.f32.s32 %v2865
        %v2867 = vcvt.f32.s32 %v2861
        %v2868 = vshll.u32 %v2867, 16
        %v2869 = vadd.s32 %v2868, %v2866
        %v2870 = vand.u32 %v2802, 65535
        %v2871 = vshra.s32 %v2802, 16
        %v2872 = vcvt.s32.f32 %v2870
        %v2873 = vcvt.s32.f32 %v2871
        %2874 = vmin.xlane.f32.xlu0 %v2873
        %v2875 = vpop.xlane.xlu0 %2874
        %vm2876 = vcmp.eq.f32.partialorder %v2873, %v2875
        %v2877 = vsel %vm2876, %v2872, inf
        %2878 = vmin.xlane.f32.xlu0 %v2877
        %v2879 = vpop.xlane.xlu0 %2878
        %v2880 = vcvt.f32.s32 %v2879
        %v2881 = vcvt.f32.s32 %v2875
        %v2882 = vshll.u32 %v2881, 16
        %v2883 = vadd.s32 %v2882, %v2880
        %v2884 = vand.u32 %v2803, 65535
        %v2885 = vshra.s32 %v2803, 16
        %v2886 = vcvt.s32.f32 %v2884
        %v2887 = vcvt.s32.f32 %v2885
        %2888 = vmin.xlane.f32.xlu0 %v2887
        %v2889 = vpop.xlane.xlu0 %2888
        %vm2890 = vcmp.eq.f32.partialorder %v2887, %v2889
        %v2891 = vsel %vm2890, %v2886, inf
        %2892 = vmin.xlane.f32.xlu0 %v2891
        %v2893 = vpop.xlane.xlu0 %2892
        %v2894 = vcvt.f32.s32 %v2893
        %v2895 = vcvt.f32.s32 %v2889
        %v2896 = vshll.u32 %v2895, 16
        %v2897 = vadd.s32 %v2896, %v2894
        %v2898 = vand.u32 %v2804, 65535
        %v2899 = vshra.s32 %v2804, 16
        %v2900 = vcvt.s32.f32 %v2898
        %v2901 = vcvt.s32.f32 %v2899
        %2902 = vmin.xlane.f32.xlu0 %v2901
        %v2903 = vpop.xlane.xlu0 %2902
        %vm2904 = vcmp.eq.f32.partialorder %v2901, %v2903
        %v2905 = vsel %vm2904, %v2900, inf
        %2906 = vmin.xlane.f32.xlu0 %v2905
        %v2907 = vpop.xlane.xlu0 %2906
        %v2908 = vcvt.f32.s32 %v2907
        %v2909 = vcvt.f32.s32 %v2903
        %v2910 = vshll.u32 %v2909, 16
        %v2911 = vadd.s32 %v2910, %v2908
        %v2912 = vand.u32 %v2805, 65535
        %v2913 = vshra.s32 %v2805, 16
        %v2914 = vcvt.s32.f32 %v2912
        %v2915 = vcvt.s32.f32 %v2913
        %2916 = vmin.xlane.f32.xlu0 %v2915
        %v2917 = vpop.xlane.xlu0 %2916
        %vm2918 = vcmp.eq.f32.partialorder %v2915, %v2917
        %v2919 = vsel %vm2918, %v2914, inf
        %2920 = vmin.xlane.f32.xlu0 %v2919
        %v2921 = vpop.xlane.xlu0 %2920
        %v2922 = vcvt.f32.s32 %v2921
        %v2923 = vcvt.f32.s32 %v2917
        %v2924 = vshll.u32 %v2923, 16
        %v2925 = vadd.s32 %v2924, %v2922
        %v2926 = vand.u32 %v2806, 65535
        %v2927 = vshra.s32 %v2806, 16
        %v2928 = vcvt.s32.f32 %v2926
        %v2929 = vcvt.s32.f32 %v2927
        %2930 = vmin.xlane.f32.xlu0 %v2929
        %v2931 = vpop.xlane.xlu0 %2930
        %vm2932 = vcmp.eq.f32.partialorder %v2929, %v2931
        %v2933 = vsel %vm2932, %v2928, inf
        %2934 = vmin.xlane.f32.xlu0 %v2933
        %v2935 = vpop.xlane.xlu0 %2934
        %v2936 = vcvt.f32.s32 %v2935
        %v2937 = vcvt.f32.s32 %v2931
        %v2938 = vshll.u32 %v2937, 16
        %v2939 = vadd.s32 %v2938, %v2936
        %v2940 = vand.u32 %v2807, 65535
        %v2941 = vshra.s32 %v2807, 16
        %v2942 = vcvt.s32.f32 %v2940
        %v2943 = vcvt.s32.f32 %v2941
        %2944 = vmin.xlane.f32.xlu0 %v2943
        %v2945 = vpop.xlane.xlu0 %2944
        %vm2946 = vcmp.eq.f32.partialorder %v2943, %v2945
        %v2947 = vsel %vm2946, %v2942, inf
        %2948 = vmin.xlane.f32.xlu0 %v2947
        %v2949 = vpop.xlane.xlu0 %2948
        %v2950 = vcvt.f32.s32 %v2949
        %v2951 = vcvt.f32.s32 %v2945
        %v2952 = vshll.u32 %v2951, 16
        %v2953 = vadd.s32 %v2952, %v2950
        %v2954 = vand.u32 %v2808, 65535
        %v2955 = vshra.s32 %v2808, 16
        %v2956 = vcvt.s32.f32 %v2954
        %v2957 = vcvt.s32.f32 %v2955
        %2958 = vmin.xlane.f32.xlu0 %v2957
        %v2959 = vpop.xlane.xlu0 %2958
        %vm2960 = vcmp.eq.f32.partialorder %v2957, %v2959
        %v2961 = vsel %vm2960, %v2956, inf
        %2962 = vmin.xlane.f32.xlu0 %v2961
        %v2963 = vpop.xlane.xlu0 %2962
        %v2964 = vcvt.f32.s32 %v2963
        %v2965 = vcvt.f32.s32 %v2959
        %v2966 = vshll.u32 %v2965, 16
        %v2967 = vadd.s32 %v2966, %v2964
        %v2968 = vand.u32 %v2809, 65535
        %v2969 = vshra.s32 %v2809, 16
        %v2970 = vcvt.s32.f32 %v2968
        %v2971 = vcvt.s32.f32 %v2969
        %2972 = vmin.xlane.f32.xlu0 %v2971
        %v2973 = vpop.xlane.xlu0 %2972
        %vm2974 = vcmp.eq.f32.partialorder %v2971, %v2973
        %v2975 = vsel %vm2974, %v2970, inf
        %2976 = vmin.xlane.f32.xlu0 %v2975
        %v2977 = vpop.xlane.xlu0 %2976
        %v2978 = vcvt.f32.s32 %v2977
        %v2979 = vcvt.f32.s32 %v2973
        %v2980 = vshll.u32 %v2979, 16
        %v2981 = vadd.s32 %v2980, %v2978
        %v2982 = vand.u32 %v2810, 65535
        %v2983 = vshra.s32 %v2810, 16
        %v2984 = vcvt.s32.f32 %v2982
        %v2985 = vcvt.s32.f32 %v2983
        %2986 = vmin.xlane.f32.xlu0 %v2985
        %v2987 = vpop.xlane.xlu0 %2986
        %vm2988 = vcmp.eq.f32.partialorder %v2985, %v2987
        %v2989 = vsel %vm2988, %v2984, inf
        %2990 = vmin.xlane.f32.xlu0 %v2989
        %v2991 = vpop.xlane.xlu0 %2990
        %v2992 = vcvt.f32.s32 %v2991
        %v2993 = vcvt.f32.s32 %v2987
        %v2994 = vshll.u32 %v2993, 16
        %v2995 = vadd.s32 %v2994, %v2992
        %v2996 = vand.u32 %v2811, 65535
        %v2997 = vshra.s32 %v2811, 16
        %v2998 = vcvt.s32.f32 %v2996
        %v2999 = vcvt.s32.f32 %v2997
        %3000 = vmin.xlane.f32.xlu0 %v2999
        %v3001 = vpop.xlane.xlu0 %3000
        %vm3002 = vcmp.eq.f32.partialorder %v2999, %v3001
        %v3003 = vsel %vm3002, %v2998, inf
        %3004 = vmin.xlane.f32.xlu0 %v3003
        %v3005 = vpop.xlane.xlu0 %3004
        %v3006 = vcvt.f32.s32 %v3005
        %v3007 = vcvt.f32.s32 %v3001
        %v3008 = vshll.u32 %v3007, 16
        %v3009 = vadd.s32 %v3008, %v3006
        %v3010 = vand.u32 %v2812, 65535
        %v3011 = vshra.s32 %v2812, 16
        %v3012 = vcvt.s32.f32 %v3010
        %v3013 = vcvt.s32.f32 %v3011
        %3014 = vmin.xlane.f32.xlu0 %v3013
        %v3015 = vpop.xlane.xlu0 %3014
        %vm3016 = vcmp.eq.f32.partialorder %v3013, %v3015
        %v3017 = vsel %vm3016, %v3012, inf
        %3018 = vmin.xlane.f32.xlu0 %v3017
        %v3019 = vpop.xlane.xlu0 %3018
        %v3020 = vcvt.f32.s32 %v3019
        %v3021 = vcvt.f32.s32 %v3015
        %v3022 = vshll.u32 %v3021, 16
        %v3023 = vadd.s32 %v3022, %v3020
        %v3024 = vand.u32 %v2813, 65535
        %v3025 = vshra.s32 %v2813, 16
        %v3026 = vcvt.s32.f32 %v3024
        %v3027 = vcvt.s32.f32 %v3025
        %3028 = vmin.xlane.f32.xlu0 %v3027
        %v3029 = vpop.xlane.xlu0 %3028
        %vm3030 = vcmp.eq.f32.partialorder %v3027, %v3029
        %v3031 = vsel %vm3030, %v3026, inf
        %3032 = vmin.xlane.f32.xlu0 %v3031
        %v3033 = vpop.xlane.xlu0 %3032
        %v3034 = vcvt.f32.s32 %v3033
        %v3035 = vcvt.f32.s32 %v3029
        %v3036 = vshll.u32 %v3035, 16
        %v3037 = vadd.s32 %v3036, %v3034
        %vm3038 = vcmask 7168
        %v3039 = vsel %vm3038, %v1035, %v1291
        %v3040 = vsel %vm3038, %v1049, %v1305
        %v3041 = vsel %vm3038, %v1063, %v1319
        %v3042 = vsel %vm3038, %v1077, %v1333
        %v3043 = vsel %vm3038, %v1091, %v1347
        %v3044 = vsel %vm3038, %v1105, %v1361
        %v3045 = vsel %vm3038, %v1119, %v1375
        %v3046 = vsel %vm3038, %v1133, %v1389
        %v3047 = vsel %vm3038, %v1147, %v1403
        %v3048 = vsel %vm3038, %v1161, %v1417
        %v3049 = vsel %vm3038, %v1175, %v1431
        %v3050 = vsel %vm3038, %v1189, %v1445
        %v3051 = vsel %vm3038, %v1203, %v1459
        %v3052 = vsel %vm3038, %v1217, %v1473
        %v3053 = vsel %vm3038, %v1231, %v1487
        %v3054 = vsel %vm3038, %v1245, %v1501
        %vm3055 = vcmask 15360
        %v3056 = vsel %vm3055, %v3039, %v1547
        %v3057 = vsel %vm3055, %v3040, %v1561
        %v3058 = vsel %vm3055, %v3041, %v1575
        %v3059 = vsel %vm3055, %v3042, %v1589
        %v3060 = vsel %vm3055, %v3043, %v1603
        %v3061 = vsel %vm3055, %v3044, %v1617
        %v3062 = vsel %vm3055, %v3045, %v1631
        %v3063 = vsel %vm3055, %v3046, %v1645
        %v3064 = vsel %vm3055, %v3047, %v1659
        %v3065 = vsel %vm3055, %v3048, %v1673
        %v3066 = vsel %vm3055, %v3049, %v1687
        %v3067 = vsel %vm3055, %v3050, %v1701
        %v3068 = vsel %vm3055, %v3051, %v1715
        %v3069 = vsel %vm3055, %v3052, %v1729
        %v3070 = vsel %vm3055, %v3053, %v1743
        %v3071 = vsel %vm3055, %v3054, %v1757
        %vm3072 = vcmask 23552
        %v3073 = vsel %vm3072, %v3056, %v1803
        %v3074 = vsel %vm3072, %v3057, %v1817
        %v3075 = vsel %vm3072, %v3058, %v1831
        %v3076 = vsel %vm3072, %v3059, %v1845
        %v3077 = vsel %vm3072, %v3060, %v1859
        %v3078 = vsel %vm3072, %v3061, %v1873
        %v3079 = vsel %vm3072, %v3062, %v1887
        %v3080 = vsel %vm3072, %v3063, %v1901
        %v3081 = vsel %vm3072, %v3064, %v1915
        %v3082 = vsel %vm3072, %v3065, %v1929
        %v3083 = vsel %vm3072, %v3066, %v1943
        %v3084 = vsel %vm3072, %v3067, %v1957
        %v3085 = vsel %vm3072, %v3068, %v1971
        %v3086 = vsel %vm3072, %v3069, %v1985
        %v3087 = vsel %vm3072, %v3070, %v1999
        %v3088 = vsel %vm3072, %v3071, %v2013
        %vm3089 = vcmask 31744
        %v3090 = vsel %vm3089, %v3073, %v2059
        %v3091 = vsel %vm3089, %v3074, %v2073
        %v3092 = vsel %vm3089, %v3075, %v2087
        %v3093 = vsel %vm3089, %v3076, %v2101
        %v3094 = vsel %vm3089, %v3077, %v2115
        %v3095 = vsel %vm3089, %v3078, %v2129
        %v3096 = vsel %vm3089, %v3079, %v2143
        %v3097 = vsel %vm3089, %v3080, %v2157
        %v3098 = vsel %vm3089, %v3081, %v2171
        %v3099 = vsel %vm3089, %v3082, %v2185
        %v3100 = vsel %vm3089, %v3083, %v2199
        %v3101 = vsel %vm3089, %v3084, %v2213
        %v3102 = vsel %vm3089, %v3085, %v2227
        %v3103 = vsel %vm3089, %v3086, %v2241
        %v3104 = vsel %vm3089, %v3087, %v2255
        %v3105 = vsel %vm3089, %v3088, %v2269
        %vm3106 = vcmask 39936
        %v3107 = vsel %vm3106, %v3090, %v2315
        %v3108 = vsel %vm3106, %v3091, %v2329
        %v3109 = vsel %vm3106, %v3092, %v2343
        %v3110 = vsel %vm3106, %v3093, %v2357
        %v3111 = vsel %vm3106, %v3094, %v2371
        %v3112 = vsel %vm3106, %v3095, %v2385
        %v3113 = vsel %vm3106, %v3096, %v2399
        %v3114 = vsel %vm3106, %v3097, %v2413
        %v3115 = vsel %vm3106, %v3098, %v2427
        %v3116 = vsel %vm3106, %v3099, %v2441
        %v3117 = vsel %vm3106, %v3100, %v2455
        %v3118 = vsel %vm3106, %v3101, %v2469
        %v3119 = vsel %vm3106, %v3102, %v2483
        %v3120 = vsel %vm3106, %v3103, %v2497
        %v3121 = vsel %vm3106, %v3104, %v2511
        %v3122 = vsel %vm3106, %v3105, %v2525
        %vm3123 = vcmask 48128
        %v3124 = vsel %vm3123, %v3107, %v2571
        %v3125 = vsel %vm3123, %v3108, %v2585
        %v3126 = vsel %vm3123, %v3109, %v2599
        %v3127 = vsel %vm3123, %v3110, %v2613
        %v3128 = vsel %vm3123, %v3111, %v2627
        %v3129 = vsel %vm3123, %v3112, %v2641
        %v3130 = vsel %vm3123, %v3113, %v2655
        %v3131 = vsel %vm3123, %v3114, %v2669
        %v3132 = vsel %vm3123, %v3115, %v2683
        %v3133 = vsel %vm3123, %v3116, %v2697
        %v3134 = vsel %vm3123, %v3117, %v2711
        %v3135 = vsel %vm3123, %v3118, %v2725
        %v3136 = vsel %vm3123, %v3119, %v2739
        %v3137 = vsel %vm3123, %v3120, %v2753
        %v3138 = vsel %vm3123, %v3121, %v2767
        %v3139 = vsel %vm3123, %v3122, %v2781
        %vm3140 = vcmask 56320
        %v3141 = vsel %vm3140, %v3124, %v2827
        %v3142 = vsel %vm3140, %v3125, %v2841
        %v3143 = vsel %vm3140, %v3126, %v2855
        %v3144 = vsel %vm3140, %v3127, %v2869
        %v3145 = vsel %vm3140, %v3128, %v2883
        %v3146 = vsel %vm3140, %v3129, %v2897
        %v3147 = vsel %vm3140, %v3130, %v2911
        %v3148 = vsel %vm3140, %v3131, %v2925
        %v3149 = vsel %vm3140, %v3132, %v2939
        %v3150 = vsel %vm3140, %v3133, %v2953
        %v3151 = vsel %vm3140, %v3134, %v2967
        %v3152 = vsel %vm3140, %v3135, %v2981
        %v3153 = vsel %vm3140, %v3136, %v2995
        %v3154 = vsel %vm3140, %v3137, %v3009
        %v3155 = vsel %vm3140, %v3138, %v3023
        %v3156 = vsel %vm3140, %v3139, %v3037
        %vm3157 = vcmp.lt.s32.totalorder %v3141, 128
        %vm3158 = vcmp.lt.s32.totalorder %v3142, 128
        %vm3159 = vcmp.lt.s32.totalorder %v3143, 128
        %vm3160 = vcmp.lt.s32.totalorder %v3144, 128
        %vm3161 = vcmp.lt.s32.totalorder %v3145, 128
        %vm3162 = vcmp.lt.s32.totalorder %v3146, 128
        %vm3163 = vcmp.lt.s32.totalorder %v3147, 128
        %vm3164 = vcmp.lt.s32.totalorder %v3148, 128
        %vm3165 = vcmp.lt.s32.totalorder %v3149, 128
        %vm3166 = vcmp.lt.s32.totalorder %v3150, 128
        %vm3167 = vcmp.lt.s32.totalorder %v3151, 128
        %vm3168 = vcmp.lt.s32.totalorder %v3152, 128
        %vm3169 = vcmp.lt.s32.totalorder %v3153, 128
        %vm3170 = vcmp.lt.s32.totalorder %v3154, 128
        %vm3171 = vcmp.lt.s32.totalorder %v3155, 128
        %vm3172 = vcmp.lt.s32.totalorder %v3156, 128
        %s3173 = smul.u32 %s21, 128
        %v3174 = vstv %s3173
        %v3175 = vadd.s32 %v3141, %v3174
        %v3176 = vadd.s32 %v3142, %v3174
        %v3177 = vadd.s32 %v3143, %v3174
        %v3178 = vadd.s32 %v3144, %v3174
        %v3179 = vadd.s32 %v3145, %v3174
        %v3180 = vadd.s32 %v3146, %v3174
        %v3181 = vadd.s32 %v3147, %v3174
        %v3182 = vadd.s32 %v3148, %v3174
        %v3183 = vadd.s32 %v3149, %v3174
        %v3184 = vadd.s32 %v3150, %v3174
        %v3185 = vadd.s32 %v3151, %v3174
        %v3186 = vadd.s32 %v3152, %v3174
        %v3187 = vadd.s32 %v3153, %v3174
        %v3188 = vadd.s32 %v3154, %v3174
        %v3189 = vadd.s32 %v3155, %v3174
        %v3190 = vadd.s32 %v3156, %v3174
        %v3191 = vsel %vm3157, %v3175, 256
        %v3192 = vsel %vm3158, %v3176, 256
        %v3193 = vsel %vm3159, %v3177, 256
        %v3194 = vsel %vm3160, %v3178, 256
        %v3195 = vsel %vm3161, %v3179, 256
        %v3196 = vsel %vm3162, %v3180, 256
        %v3197 = vsel %vm3163, %v3181, 256
        %v3198 = vsel %vm3164, %v3182, 256
        %v3199 = vsel %vm3165, %v3183, 256
        %v3200 = vsel %vm3166, %v3184, 256
        %v3201 = vsel %vm3167, %v3185, 256
        %v3202 = vsel %vm3168, %v3186, 256
        %v3203 = vsel %vm3169, %v3187, 256
        %v3204 = vsel %vm3170, %v3188, 256
        %v3205 = vsel %vm3171, %v3189, 256
        %v3206 = vsel %vm3172, %v3190, 256
        %v3207 = vld [vmem:[#allocation3] sm:$0xff]
        %v3208 = vld [vmem:[#allocation3 + $0x8] sm:$0xff]
        %v3209 = vld [vmem:[#allocation3 + $0x10] sm:$0xff]
        %v3210 = vld [vmem:[#allocation3 + $0x18] sm:$0xff]
        %v3211 = vld [vmem:[#allocation3 + $0x20] sm:$0xff]
        %v3212 = vld [vmem:[#allocation3 + $0x28] sm:$0xff]
        %v3213 = vld [vmem:[#allocation3 + $0x30] sm:$0xff]
        %v3214 = vld [vmem:[#allocation3 + $0x38] sm:$0xff]
        %v3215 = vld [vmem:[#allocation3 + $0x40] sm:$0xff]
        %v3216 = vld [vmem:[#allocation3 + $0x48] sm:$0xff]
        %v3217 = vld [vmem:[#allocation3 + $0x50] sm:$0xff]
        %v3218 = vld [vmem:[#allocation3 + $0x58] sm:$0xff]
        %v3219 = vld [vmem:[#allocation3 + $0x60] sm:$0xff]
        %v3220 = vld [vmem:[#allocation3 + $0x68] sm:$0xff]
        %v3221 = vld [vmem:[#allocation3 + $0x70] sm:$0xff]
        %v3222 = vld [vmem:[#allocation3 + $0x78] sm:$0xff]
        %vm3223 = vcmp.lt.s32.totalorder %v3207, %v3191
        %v3224 = vsel %vm3223, %v3207, %v3191
        %vm3225 = vcmp.lt.s32.totalorder %v3208, %v3192
        %v3226 = vsel %vm3225, %v3208, %v3192
        %vm3227 = vcmp.lt.s32.totalorder %v3209, %v3193
        %v3228 = vsel %vm3227, %v3209, %v3193
        %vm3229 = vcmp.lt.s32.totalorder %v3210, %v3194
        %v3230 = vsel %vm3229, %v3210, %v3194
        %vm3231 = vcmp.lt.s32.totalorder %v3211, %v3195
        %v3232 = vsel %vm3231, %v3211, %v3195
        %vm3233 = vcmp.lt.s32.totalorder %v3212, %v3196
        %v3234 = vsel %vm3233, %v3212, %v3196
        %vm3235 = vcmp.lt.s32.totalorder %v3213, %v3197
        %v3236 = vsel %vm3235, %v3213, %v3197
        %vm3237 = vcmp.lt.s32.totalorder %v3214, %v3198
        %v3238 = vsel %vm3237, %v3214, %v3198
        %vm3239 = vcmp.lt.s32.totalorder %v3215, %v3199
        %v3240 = vsel %vm3239, %v3215, %v3199
        %vm3241 = vcmp.lt.s32.totalorder %v3216, %v3200
        %v3242 = vsel %vm3241, %v3216, %v3200
        %vm3243 = vcmp.lt.s32.totalorder %v3217, %v3201
        %v3244 = vsel %vm3243, %v3217, %v3201
        %vm3245 = vcmp.lt.s32.totalorder %v3218, %v3202
        %v3246 = vsel %vm3245, %v3218, %v3202
        %vm3247 = vcmp.lt.s32.totalorder %v3219, %v3203
        %v3248 = vsel %vm3247, %v3219, %v3203
        %vm3249 = vcmp.lt.s32.totalorder %v3220, %v3204
        %v3250 = vsel %vm3249, %v3220, %v3204
        %vm3251 = vcmp.lt.s32.totalorder %v3221, %v3205
        %v3252 = vsel %vm3251, %v3221, %v3205
        %vm3253 = vcmp.lt.s32.totalorder %v3222, %v3206
        %v3254 = vsel %vm3253, %v3222, %v3206
        %vm3255 = vcmask 64512
        %3256 = vst.msk [vmem:[#allocation3] sm:$0xff] %vm3255, %v3224
        %3257 = vst.msk [vmem:[#allocation3 + $0x8] sm:$0xff] %vm3255, %v3226
        %3258 = vst.msk [vmem:[#allocation3 + $0x10] sm:$0xff] %vm3255, %v3228
        %3259 = vst.msk [vmem:[#allocation3 + $0x18] sm:$0xff] %vm3255, %v3230
        %3260 = vst.msk [vmem:[#allocation3 + $0x20] sm:$0xff] %vm3255, %v3232
        %3261 = vst.msk [vmem:[#allocation3 + $0x28] sm:$0xff] %vm3255, %v3234
        %3262 = vst.msk [vmem:[#allocation3 + $0x30] sm:$0xff] %vm3255, %v3236
        %3263 = vst.msk [vmem:[#allocation3 + $0x38] sm:$0xff] %vm3255, %v3238
        %3264 = vst.msk [vmem:[#allocation3 + $0x40] sm:$0xff] %vm3255, %v3240
        %3265 = vst.msk [vmem:[#allocation3 + $0x48] sm:$0xff] %vm3255, %v3242
        %3266 = vst.msk [vmem:[#allocation3 + $0x50] sm:$0xff] %vm3255, %v3244
        %3267 = vst.msk [vmem:[#allocation3 + $0x58] sm:$0xff] %vm3255, %v3246
        %3268 = vst.msk [vmem:[#allocation3 + $0x60] sm:$0xff] %vm3255, %v3248
        %3269 = vst.msk [vmem:[#allocation3 + $0x68] sm:$0xff] %vm3255, %v3250
        %3270 = vst.msk [vmem:[#allocation3 + $0x70] sm:$0xff] %vm3255, %v3252
        %3271 = vst.msk [vmem:[#allocation3 + $0x78] sm:$0xff] %vm3255, %v3254
        %3272 = vrot.lane.b32.xlu0 %v876, 1
        %v3273 = vpop.permute.xlu0 %3272
        %3274 = vrot.lane.b32.xlu0 %v877, 1
        %v3275 = vpop.permute.xlu0 %3274
        %3276 = vrot.lane.b32.xlu0 %v878, 1
        %v3277 = vpop.permute.xlu0 %3276
        %3278 = vrot.lane.b32.xlu0 %v879, 1
        %v3279 = vpop.permute.xlu0 %3278
        %3280 = vrot.lane.b32.xlu0 %v880, 1
        %v3281 = vpop.permute.xlu0 %3280
        %3282 = vrot.lane.b32.xlu0 %v881, 1
        %v3283 = vpop.permute.xlu0 %3282
        %3284 = vrot.lane.b32.xlu0 %v882, 1
        %v3285 = vpop.permute.xlu0 %3284
        %3286 = vrot.lane.b32.xlu0 %v883, 1
        %v3287 = vpop.permute.xlu0 %3286
        %3288 = vrot.lane.b32.xlu0 %v884, 1
        %v3289 = vpop.permute.xlu0 %3288
        %3290 = vrot.lane.b32.xlu0 %v885, 1
        %v3291 = vpop.permute.xlu0 %3290
        %3292 = vrot.lane.b32.xlu0 %v886, 1
        %v3293 = vpop.permute.xlu0 %3292
        %3294 = vrot.lane.b32.xlu0 %v887, 1
        %v3295 = vpop.permute.xlu0 %3294
        %3296 = vrot.lane.b32.xlu0 %v888, 1
        %v3297 = vpop.permute.xlu0 %3296
        %3298 = vrot.lane.b32.xlu0 %v889, 1
        %v3299 = vpop.permute.xlu0 %3298
        %3300 = vrot.lane.b32.xlu0 %v890, 1
        %v3301 = vpop.permute.xlu0 %3300
        %3302 = vrot.lane.b32.xlu0 %v891, 1
        %v3303 = vpop.permute.xlu0 %3302
        %v3304 = vadd.s32 %v892, %v3273
        %v3305 = vadd.s32 %v893, %v3275
        %v3306 = vadd.s32 %v894, %v3277
        %v3307 = vadd.s32 %v895, %v3279
        %v3308 = vadd.s32 %v896, %v3281
        %v3309 = vadd.s32 %v897, %v3283
        %v3310 = vadd.s32 %v898, %v3285
        %v3311 = vadd.s32 %v899, %v3287
        %v3312 = vadd.s32 %v900, %v3289
        %v3313 = vadd.s32 %v901, %v3291
        %v3314 = vadd.s32 %v902, %v3293
        %v3315 = vadd.s32 %v903, %v3295
        %v3316 = vadd.s32 %v904, %v3297
        %v3317 = vadd.s32 %v905, %v3299
        %v3318 = vadd.s32 %v906, %v3301
        %v3319 = vadd.s32 %v907, %v3303
        %3320 = vst.msk [vmem:[#allocation2] sm:$0xff] %vm3038, %v3304
        %3321 = vst.msk [vmem:[#allocation2 + $0x8] sm:$0xff] %vm3038, %v3305
        %3322 = vst.msk [vmem:[#allocation2 + $0x10] sm:$0xff] %vm3038, %v3306
        %3323 = vst.msk [vmem:[#allocation2 + $0x18] sm:$0xff] %vm3038, %v3307
        %3324 = vst.msk [vmem:[#allocation2 + $0x20] sm:$0xff] %vm3038, %v3308
        %3325 = vst.msk [vmem:[#allocation2 + $0x28] sm:$0xff] %vm3038, %v3309
        %3326 = vst.msk [vmem:[#allocation2 + $0x30] sm:$0xff] %vm3038, %v3310
        %3327 = vst.msk [vmem:[#allocation2 + $0x38] sm:$0xff] %vm3038, %v3311
        %3328 = vst.msk [vmem:[#allocation2 + $0x40] sm:$0xff] %vm3038, %v3312
        %3329 = vst.msk [vmem:[#allocation2 + $0x48] sm:$0xff] %vm3038, %v3313
        %3330 = vst.msk [vmem:[#allocation2 + $0x50] sm:$0xff] %vm3038, %v3314
        %3331 = vst.msk [vmem:[#allocation2 + $0x58] sm:$0xff] %vm3038, %v3315
        %3332 = vst.msk [vmem:[#allocation2 + $0x60] sm:$0xff] %vm3038, %v3316
        %3333 = vst.msk [vmem:[#allocation2 + $0x68] sm:$0xff] %vm3038, %v3317
        %3334 = vst.msk [vmem:[#allocation2 + $0x70] sm:$0xff] %vm3038, %v3318
        %3335 = vst.msk [vmem:[#allocation2 + $0x78] sm:$0xff] %vm3038, %v3319
        %v3336 = vcvt.s32.f32 %v3304
        %v3337 = vcvt.s32.f32 %v3305
        %v3338 = vcvt.s32.f32 %v3306
        %v3339 = vcvt.s32.f32 %v3307
        %v3340 = vcvt.s32.f32 %v3308
        %v3341 = vcvt.s32.f32 %v3309
        %v3342 = vcvt.s32.f32 %v3310
        %v3343 = vcvt.s32.f32 %v3311
        %v3344 = vcvt.s32.f32 %v3312
        %v3345 = vcvt.s32.f32 %v3313
        %v3346 = vcvt.s32.f32 %v3314
        %v3347 = vcvt.s32.f32 %v3315
        %v3348 = vcvt.s32.f32 %v3316
        %v3349 = vcvt.s32.f32 %v3317
        %v3350 = vcvt.s32.f32 %v3318
        %v3351 = vcvt.s32.f32 %v3319
        %v3352 = vsel %vm3038, %v3336, inf
        %v3353 = vsel %vm3038, %v3337, inf
        %v3354 = vsel %vm3038, %v3338, inf
        %v3355 = vsel %vm3038, %v3339, inf
        %v3356 = vsel %vm3038, %v3340, inf
        %v3357 = vmin.f32 %v3352, %v3356
        %v3358 = vsel %vm3038, %v3341, inf
        %v3359 = vmin.f32 %v3353, %v3358
        %v3360 = vsel %vm3038, %v3342, inf
        %v3361 = vmin.f32 %v3354, %v3360
        %v3362 = vsel %vm3038, %v3343, inf
        %v3363 = vmin.f32 %v3355, %v3362
        %v3364 = vsel %vm3038, %v3344, inf
        %v3365 = vmin.f32 %v3357, %v3364
        %v3366 = vsel %vm3038, %v3345, inf
        %v3367 = vmin.f32 %v3359, %v3366
        %v3368 = vsel %vm3038, %v3346, inf
        %v3369 = vmin.f32 %v3361, %v3368
        %v3370 = vsel %vm3038, %v3347, inf
        %v3371 = vmin.f32 %v3363, %v3370
        %v3372 = vsel %vm3038, %v3348, inf
        %v3373 = vmin.f32 %v3365, %v3372
        %v3374 = vsel %vm3038, %v3349, inf
        %v3375 = vmin.f32 %v3367, %v3374
        %v3376 = vsel %vm3038, %v3350, inf
        %v3377 = vmin.f32 %v3369, %v3376
        %v3378 = vsel %vm3038, %v3351, inf
        %v3379 = vmin.f32 %v3371, %v3378
        %v3380 = vmin.f32 %v3373, %v3375
        %v3381 = vmin.f32 %v3377, %v3379
        %v3382 = vmin.f32 %v3380, %v3381
        %3383 = vmin.xlane.f32.xlu0 %v3382
        %v3384 = vpop.xlane.xlu0 %3383
        %v3385 = vrot.slane %v3384, 4
        %v3386 = vmin.f32 %v3384, %v3385
        %v3387 = vrot.slane %v3386, 2
        %v3388 = vmin.f32 %v3386, %v3387
        %v3389 = vrot.slane %v3388, 1
        %v3390 = vmin.f32 %v3388, %v3389
        %s3391 = vtos %v3390
        %p3392 = scmp.ge.f32.partialorder %s3391, 8.0
        %s3393 = scalar_select %p3392, 1, 0
        %s3394 = scalar_lea.smem [#allocation4], 0
        %3395 = sst [smem:[%s3394]] %s3393
      $region40: #{tpu_custom_call.1} parent=31 // pred_fallthru
        _
      %p3396 = scmp.eq.s32.totalorder %s21, 1
      // Predicated region
      $region41: #{tpu_custom_call.1} parent=31 // pred_check
        %p3397 = pneg %p3396
      $region42: #{tpu_custom_call.1} parent=31 // pred_check_branch
        %3399 = sbr.rel (%p3397) target = $region44
      $region43: #{tpu_custom_call.1} parent=31 // pred_region
        %v3400 = vld [vmem:[#allocation3] sm:$0xff]
        %v3401 = vld [vmem:[#allocation3 + $0x8] sm:$0xff]
        %v3402 = vld [vmem:[#allocation3 + $0x10] sm:$0xff]
        %v3403 = vld [vmem:[#allocation3 + $0x18] sm:$0xff]
        %v3404 = vld [vmem:[#allocation3 + $0x20] sm:$0xff]
        %v3405 = vld [vmem:[#allocation3 + $0x28] sm:$0xff]
        %v3406 = vld [vmem:[#allocation3 + $0x30] sm:$0xff]
        %v3407 = vld [vmem:[#allocation3 + $0x38] sm:$0xff]
        %v3408 = vld [vmem:[#allocation3 + $0x40] sm:$0xff]
        %v3409 = vld [vmem:[#allocation3 + $0x48] sm:$0xff]
        %v3410 = vld [vmem:[#allocation3 + $0x50] sm:$0xff]
        %v3411 = vld [vmem:[#allocation3 + $0x58] sm:$0xff]
        %v3412 = vld [vmem:[#allocation3 + $0x60] sm:$0xff]
        %v3413 = vld [vmem:[#allocation3 + $0x68] sm:$0xff]
        %v3414 = vld [vmem:[#allocation3 + $0x70] sm:$0xff]
        %v3415 = vld [vmem:[#allocation3 + $0x78] sm:$0xff]
        %vm3416 = vcmp.lt.s32.totalorder %v3400, 256
        %vm3417 = vcmp.lt.s32.totalorder %v3401, 256
        %vm3418 = vcmp.lt.s32.totalorder %v3402, 256
        %vm3419 = vcmp.lt.s32.totalorder %v3403, 256
        %vm3420 = vcmp.lt.s32.totalorder %v3404, 256
        %vm3421 = vcmp.lt.s32.totalorder %v3405, 256
        %vm3422 = vcmp.lt.s32.totalorder %v3406, 256
        %vm3423 = vcmp.lt.s32.totalorder %v3407, 256
        %vm3424 = vcmp.lt.s32.totalorder %v3408, 256
        %vm3425 = vcmp.lt.s32.totalorder %v3409, 256
        %vm3426 = vcmp.lt.s32.totalorder %v3410, 256
        %vm3427 = vcmp.lt.s32.totalorder %v3411, 256
        %vm3428 = vcmp.lt.s32.totalorder %v3412, 256
        %vm3429 = vcmp.lt.s32.totalorder %v3413, 256
        %vm3430 = vcmp.lt.s32.totalorder %v3414, 256
        %vm3431 = vcmp.lt.s32.totalorder %v3415, 256
        %v3432 = vsel %vm3416, %v3400, 0
        %v3433 = vsel %vm3417, %v3401, 0
        %v3434 = vsel %vm3418, %v3402, 0
        %v3435 = vsel %vm3419, %v3403, 0
        %v3436 = vsel %vm3420, %v3404, 0
        %v3437 = vsel %vm3421, %v3405, 0
        %v3438 = vsel %vm3422, %v3406, 0
        %v3439 = vsel %vm3423, %v3407, 0
        %v3440 = vsel %vm3424, %v3408, 0
        %v3441 = vsel %vm3425, %v3409, 0
        %v3442 = vsel %vm3426, %v3410, 0
        %v3443 = vsel %vm3427, %v3411, 0
        %v3444 = vsel %vm3428, %v3412, 0
        %v3445 = vsel %vm3429, %v3413, 0
        %v3446 = vsel %vm3430, %v3414, 0
        %v3447 = vsel %vm3431, %v3415, 0
        %3448 = vset.pattern.permute.xlu0 0
        %3449 = vperm.xlu0 %3448, %v3432
        %v3450 = vpop.permute.xlu0 %3449
        %3451 = vset.pattern.permute.xlu0 0
        %3452 = vperm.xlu0 %3451, %v3433
        %v3453 = vpop.permute.xlu0 %3452
        %3454 = vset.pattern.permute.xlu0 0
        %3455 = vperm.xlu0 %3454, %v3434
        %v3456 = vpop.permute.xlu0 %3455
        %3457 = vset.pattern.permute.xlu0 0
        %3458 = vperm.xlu0 %3457, %v3435
        %v3459 = vpop.permute.xlu0 %3458
        %3460 = vset.pattern.permute.xlu0 0
        %3461 = vperm.xlu0 %3460, %v3436
        %v3462 = vpop.permute.xlu0 %3461
        %3463 = vset.pattern.permute.xlu0 0
        %3464 = vperm.xlu0 %3463, %v3437
        %v3465 = vpop.permute.xlu0 %3464
        %3466 = vset.pattern.permute.xlu0 0
        %3467 = vperm.xlu0 %3466, %v3438
        %v3468 = vpop.permute.xlu0 %3467
        %3469 = vset.pattern.permute.xlu0 0
        %3470 = vperm.xlu0 %3469, %v3439
        %v3471 = vpop.permute.xlu0 %3470
        %3472 = vset.pattern.permute.xlu0 0
        %3473 = vperm.xlu0 %3472, %v3440
        %v3474 = vpop.permute.xlu0 %3473
        %3475 = vset.pattern.permute.xlu0 0
        %3476 = vperm.xlu0 %3475, %v3441
        %v3477 = vpop.permute.xlu0 %3476
        %3478 = vset.pattern.permute.xlu0 0
        %3479 = vperm.xlu0 %3478, %v3442
        %v3480 = vpop.permute.xlu0 %3479
        %3481 = vset.pattern.permute.xlu0 0
        %3482 = vperm.xlu0 %3481, %v3443
        %v3483 = vpop.permute.xlu0 %3482
        %3484 = vset.pattern.permute.xlu0 0
        %3485 = vperm.xlu0 %3484, %v3444
        %v3486 = vpop.permute.xlu0 %3485
        %3487 = vset.pattern.permute.xlu0 0
        %3488 = vperm.xlu0 %3487, %v3445
        %v3489 = vpop.permute.xlu0 %3488
        %3490 = vset.pattern.permute.xlu0 0
        %3491 = vperm.xlu0 %3490, %v3446
        %v3492 = vpop.permute.xlu0 %3491
        %3493 = vset.pattern.permute.xlu0 0
        %3494 = vperm.xlu0 %3493, %v3447
        %v3495 = vpop.permute.xlu0 %3494
        %v3496 = vsel %vm3416, %v3400, %v3450
        %v3497 = vsel %vm3417, %v3401, %v3453
        %v3498 = vsel %vm3418, %v3402, %v3456
        %v3499 = vsel %vm3419, %v3403, %v3459
        %v3500 = vsel %vm3420, %v3404, %v3462
        %v3501 = vsel %vm3421, %v3405, %v3465
        %v3502 = vsel %vm3422, %v3406, %v3468
        %v3503 = vsel %vm3423, %v3407, %v3471
        %v3504 = vsel %vm3424, %v3408, %v3474
        %v3505 = vsel %vm3425, %v3409, %v3477
        %v3506 = vsel %vm3426, %v3410, %v3480
        %v3507 = vsel %vm3427, %v3411, %v3483
        %v3508 = vsel %vm3428, %v3412, %v3486
        %v3509 = vsel %vm3429, %v3413, %v3489
        %v3510 = vsel %vm3430, %v3414, %v3492
        %v3511 = vsel %vm3431, %v3415, %v3495
        %vm3512 = vcmask 64512
        %3513 = vst.msk [vmem:[%s246] sm:$0xff] %vm3512, %v3496
        %3514 = vst.msk [vmem:[%s246 + $0x8] sm:$0xff] %vm3512, %v3497
        %3515 = vst.msk [vmem:[%s246 + $0x10] sm:$0xff] %vm3512, %v3498
        %3516 = vst.msk [vmem:[%s246 + $0x18] sm:$0xff] %vm3512, %v3499
        %3517 = vst.msk [vmem:[%s246 + $0x20] sm:$0xff] %vm3512, %v3500
        %3518 = vst.msk [vmem:[%s246 + $0x28] sm:$0xff] %vm3512, %v3501
        %3519 = vst.msk [vmem:[%s246 + $0x30] sm:$0xff] %vm3512, %v3502
        %3520 = vst.msk [vmem:[%s246 + $0x38] sm:$0xff] %vm3512, %v3503
        %3521 = vst.msk [vmem:[%s246 + $0x40] sm:$0xff] %vm3512, %v3504
        %3522 = vst.msk [vmem:[%s246 + $0x48] sm:$0xff] %vm3512, %v3505
        %3523 = vst.msk [vmem:[%s246 + $0x50] sm:$0xff] %vm3512, %v3506
        %3524 = vst.msk [vmem:[%s246 + $0x58] sm:$0xff] %vm3512, %v3507
        %3525 = vst.msk [vmem:[%s246 + $0x60] sm:$0xff] %vm3512, %v3508
        %3526 = vst.msk [vmem:[%s246 + $0x68] sm:$0xff] %vm3512, %v3509
        %3527 = vst.msk [vmem:[%s246 + $0x70] sm:$0xff] %vm3512, %v3510
        %3528 = vst.msk [vmem:[%s246 + $0x78] sm:$0xff] %vm3512, %v3511
      $region44: #{tpu_custom_call.1} parent=31 // pred_fallthru
        _
      %s3529 = smul.u32 16, %s20
      %p3530 = scmp.lt.s32.totalorder %s19, 1
      %s3531 = scalar_select %p3530, %s19, 1
      %p3532 = scmp.lt.s32.totalorder %s3529, 31
      %s3533 = scalar_select %p3532, %s3529, 31
      %s3534 = smul.addr %s3531, 32
      %s3535 = sadd.s32 %s3533, %s3534
      %s3536 = smul.addr %s3535, 8
      %s3537 = scalar_lea.vmem %s3, %s3536
      // Predicated region
      $region45: #{tpu_custom_call.1} parent=31 // pred_check
        %p3538 = pneg %p130
      $region46: #{tpu_custom_call.1} parent=31 // pred_check_branch
        %3540 = sbr.rel (%p3538) target = $region48
      $region47: #{tpu_custom_call.1} parent=31 // pred_region
        %s3541 = smul.u32 16, %s20
      $region48: #{tpu_custom_call.1} parent=31 // pred_fallthru
        _
    $region32: #{tpu_custom_call.1} parent=5 // pred_fallthru
      _
    %p3542 = scmp.le.s32.totalorder 2, %s9
    // Predicated region
    $region49: #{tpu_custom_call.1} parent=5 // pred_check
      %p3543 = pneg %p3542
    $region50: #{tpu_custom_call.1} parent=5 // pred_check_branch
      %3545 = sbr.rel (%p3543) target = $region52
    $region51: #{tpu_custom_call.1} parent=5 // pred_region
      %s3546 = ssub.s32 %s9, 2
      // Predicated region
      $region53: #{tpu_custom_call.1} parent=51 // pred_check
        %p3547 = pneg %p136
      $region54: #{tpu_custom_call.1} parent=51 // pred_check_branch
        %3549 = sbr.rel (%p3547) target = $region56
      $region55: #{tpu_custom_call.1} parent=51 // pred_region
        %s3550 = smul.u32 16, %s23
        %p3551 = scmp.lt.s32.totalorder %s22, 1
        %s3552 = scalar_select %p3551, %s22, 1
        %p3553 = scmp.lt.s32.totalorder %s3550, 31
        %s3554 = scalar_select %p3553, %s3550, 31
        %s3555 = smul.addr %s3552, 32
        %s3556 = sadd.s32 %s3554, %s3555
        %s3557 = smul.addr %s3556, 8
        %s3558 = scalar_lea.vmem %s3, %s3557
      $region56: #{tpu_custom_call.1} parent=51 // pred_fallthru
        _
    $region52: #{tpu_custom_call.1} parent=5 // pred_fallthru
      _
  $region6: #{tpu_custom_call.1} parent=0 // loop_footer
    %s13 = sadd.s32 1, %s9
  $region7: #{tpu_custom_call.1} parent=0 // loop_footer_branch
    %8 = sbr.rel target = $region3
  $region8: #{tpu_custom_call.1} parent=0 // loop_exit
    _

</llo_original>
